<compile_context>
chip_gen: v7x
topology: tpu7x:2x2x1
jax: 0.10.0
libtpu: 0.0.40
codegen_flags: <defaults>
</compile_context>

<pallas_src>
import functools

import jax
import jax.numpy as jnp
from jax.experimental import pallas as pl
from jax.experimental.pallas import tpu as pltpu


def _round_up(x, m):
    return (x + m - 1) // m * m


def _pick_row_tile(n_rows, max_tile):
    """Pick a row tile (multiple of 8) that yields >=2 grid steps when possible."""
    n = _round_up(n_rows, 8)
    t = min(max_tile, n)
    if n // t < 2 and n >= 16 and (n // 2) % 8 == 0:
        t = n // 2
    return t


# ----------------------------------------------------------------------------
# Pallas kernel 1: char Conv1d (no bias) -> ReLU -> max over window positions
# ----------------------------------------------------------------------------
def _char_conv_kernel(x_ref, w_ref, o_ref):
    # x_ref: (P, tile_tok, KC_pad) bf16   w_ref: (KC_pad, F_pad) bf16
    # o_ref: (tile_tok, F_pad) bf16
    n_win, tile_tok, kc_pad = x_ref.shape
    # One MXU push with M = P * tile_tok (instead of P tiny M=tile_tok matmuls).
    x = x_ref[...].reshape(n_win * tile_tok, kc_pad)
    s = jnp.dot(x, w_ref[...], preferred_element_type=jnp.float32)  # (P*tile_tok, F_pad) f32
    # Max over the P window positions via tile-aligned sublane slabs, then relu.
    m = s[:tile_tok, :]
    for p in range(1, n_win):
        m = jnp.maximum(m, s[p * tile_tok:(p + 1) * tile_tok, :])
    o_ref[...] = jnp.maximum(m, 0.0).astype(o_ref.dtype)


def char_conv_maxpool(x_unf, w_pad):
    """x_unf: (P, ntok, KC_pad) bf16 position-major im2col; w_pad: (KC_pad, F_pad) bf16.
    Returns relu(conv).max(windows): (ntok, F_pad) bf16 (padded filter cols are exactly 0)."""
    n_win, ntok, kc_pad = x_unf.shape
    f_pad = w_pad.shape[1]
    tile = _pick_row_tile(ntok, max_tile=128)
    ntok_pad = _round_up(ntok, tile)
    if ntok_pad != ntok:
        x_unf = jnp.pad(x_unf, ((0, 0), (0, ntok_pad - ntok), (0, 0)))
    out = pl.pallas_call(
        _char_conv_kernel,
        out_shape=jax.ShapeDtypeStruct((ntok_pad, f_pad), jnp.bfloat16),
        grid=(ntok_pad // tile,),
        in_specs=[
            pl.BlockSpec((n_win, tile, kc_pad), lambda i: (0, i, 0)),
            pl.BlockSpec((kc_pad, f_pad), lambda i: (0, 0)),
        ],
        out_specs=pl.BlockSpec((tile, f_pad), lambda i: (i, 0)),
        compiler_params=pltpu.CompilerParams(dimension_semantics=("parallel",)),
    )(x_unf, w_pad)
    return out[:ntok]


# ----------------------------------------------------------------------------
# Pallas kernel 2: single-layer bidirectional LSTM, returns [h_fwd(T-1) | h_bwd(0)]
# (== torch h_n.transpose(0,1).reshape(N, 2H)).  The we/cv concat and the input
# projection are fused into this kernel.
# ----------------------------------------------------------------------------
def _bilstm_kernel(we_ref, cv_ref, w_we_ref, w_cv_ref, whh_f_ref, whh_b_ref,
                   b_ref, o_ref):
    # we_ref: (S, tile_n, Dwe) bf16   cv_ref: (S, tile_n, Dcv) bf16   (time-major)
    # w_we_ref: (Dwe, 8H) bf16        w_cv_ref: (Dcv, 8H) bf16        (fwd|bwd columns)
    # whh_*_ref: (H, 4H) bf16         b_ref: (1, 8H) f32              o_ref: (tile_n, 2H) f32
    seq_len, tile_n, d_we = we_ref.shape
    d_cv = cv_ref.shape[2]
    hidden = whh_f_ref.shape[0]
    h4 = 4 * hidden

    # Input projections for BOTH directions in one MXU-friendly pass (M = S*tile_n),
    # hoisted off the sequential recurrence; bias broadcast added exactly once.
    we = we_ref[...].reshape(seq_len * tile_n, d_we)
    cv = cv_ref[...].reshape(seq_len * tile_n, d_cv)
    gx = (jnp.dot(we, w_we_ref[...], preferred_element_type=jnp.float32)
          + jnp.dot(cv, w_cv_ref[...], preferred_element_type=jnp.float32)
          + b_ref[...])                                    # (S*tile_n, 8H) f32
    gx = gx.reshape(seq_len, tile_n, 2 * h4)

    whh_f = whh_f_ref[...]
    whh_b = whh_b_ref[...]

    def cell(g_pre, h, c, whh):
        g = g_pre + jnp.dot(h.astype(jnp.bfloat16), whh,
                            preferred_element_type=jnp.float32)
        i = jax.nn.sigmoid(g[:, 0 * hidden:1 * hidden])
        f = jax.nn.sigmoid(g[:, 1 * hidden:2 * hidden])
        gc = jnp.tanh(g[:, 2 * hidden:3 * hidden])
        o = jax.nn.sigmoid(g[:, 3 * hidden:4 * hidden])
        c_new = f * c + i * gc
        h_new = o * jnp.tanh(c_new)
        return h_new, c_new

    z = jnp.zeros((tile_n, hidden), jnp.float32)
    h_f, c_f, h_b, c_b = z, z, z, z
    # Short fixed seq_len -> static unroll keeps the whole recurrence visible to the scheduler.
    # TODO(synk): for long sequences switch to a lax.fori_loop carry to bound vreg live ranges.
    for t in range(seq_len):
        h_f, c_f = cell(gx[t, :, :h4], h_f, c_f, whh_f)
        h_b, c_b = cell(gx[seq_len - 1 - t, :, h4:], h_b, c_b, whh_b)

    # Slice stores: avoids an XLU lane-concat of the two direction halves.
    o_ref[:, :hidden] = h_f
    o_ref[:, hidden:] = h_b


def bilstm_final_hidden(we_t, cv_t, w_we, w_cv, whh_f_t, whh_b_t, b_all):
    seq_len, n_rows, d_we = we_t.shape
    d_cv = cv_t.shape[2]
    hidden = whh_f_t.shape[0]
    tile_n = _pick_row_tile(n_rows, max_tile=128)   # >=2 parallel grid steps -> both v7x TCs busy
    n_pad = _round_up(n_rows, tile_n)
    if n_pad != n_rows:
        we_t = jnp.pad(we_t, ((0, 0), (0, n_pad - n_rows), (0, 0)))
        cv_t = jnp.pad(cv_t, ((0, 0), (0, n_pad - n_rows), (0, 0)))
    out = pl.pallas_call(
        _bilstm_kernel,
        out_shape=jax.ShapeDtypeStruct((n_pad, 2 * hidden), jnp.float32),
        grid=(n_pad // tile_n,),
        in_specs=[
            pl.BlockSpec((seq_len, tile_n, d_we), lambda i: (0, i, 0)),
            pl.BlockSpec((seq_len, tile_n, d_cv), lambda i: (0, i, 0)),
            pl.BlockSpec(w_we.shape, lambda i: (0, 0)),
            pl.BlockSpec(w_cv.shape, lambda i: (0, 0)),
            pl.BlockSpec(whh_f_t.shape, lambda i: (0, 0)),
            pl.BlockSpec(whh_b_t.shape, lambda i: (0, 0)),
            pl.BlockSpec(b_all.shape, lambda i: (0, 0)),
        ],
        out_specs=pl.BlockSpec((tile_n, 2 * hidden), lambda i: (i, 0)),
        compiler_params=pltpu.CompilerParams(dimension_semantics=("parallel",)),
    )(we_t, cv_t, w_we, w_cv, whh_f_t, whh_b_t, b_all)
    return out[:n_rows]


# ----------------------------------------------------------------------------
# CellEmbedder forward (glue in plain JAX under one jit, hot paths in Pallas)
# ----------------------------------------------------------------------------
@functools.partial(jax.jit, static_argnames=("conv_k",))
def cell_embedder_forward(word_input, char_input, kp, *, conv_k):
    B, Hh, Ww, S = word_input.shape
    Lc = char_input.shape[-1]
    K = conv_k

    # Embedding lookups (gathers; padding_idx only affects grads -> forward is a plain lookup).
    we = jnp.take(kp["word_emb"], word_input, axis=0)      # (B,Hh,Ww,S,wv)   f32
    ce = jnp.take(kp["char_emb"], char_input, axis=0)      # (B,Hh,Ww,S,Lc,C) f32

    n_rows = B * Hh * Ww
    ntok = n_rows * S
    cemb = ce.shape[-1]
    wv = we.shape[-1]

    # Position-major im2col for the char conv, zero-padded to a 128-lane feature dim, bf16.
    n_win = Lc - K + 1
    kc = K * cemb
    kc_pad = _round_up(kc, 128)
    ce = ce.reshape(ntok, Lc, cemb)
    x_unf = jnp.stack(
        [ce[:, p:p + K, :].reshape(ntok, kc) for p in range(n_win)], axis=0)  # (P, ntok, kc)
    x_unf = jnp.pad(x_unf, ((0, 0), (0, 0), (0, kc_pad - kc))).astype(jnp.bfloat16)

    cv = char_conv_maxpool(x_unf, kp["conv_w_pad"])        # (ntok, F_pad) bf16; padded cols == 0
    f_pad = cv.shape[-1]

    # BiLSTM inputs in time-major layout; the torch concat([we, cv], dim=4) is fused
    # into the LSTM kernel by splitting W_ih, so x is never materialized in HBM.
    we_t = we.reshape(n_rows, S, wv).transpose(1, 0, 2).astype(jnp.bfloat16)
    cv_t = cv.reshape(n_rows, S, f_pad).transpose(1, 0, 2)

    h = bilstm_final_hidden(we_t, cv_t, kp["w_we"], kp["w_cv"],
                            kp["whh_f_t"], kp["whh_b_t"], kp["b_all"])  # (n_rows, 2H) f32
    two_h = h.shape[-1]
    h = h.reshape(B, Hh, Ww, two_h)
    return jnp.transpose(h, (0, 3, 1, 2))                  # (B, 2H, Hh, Ww) like the torch module


# ----------------------------------------------------------------------------
# Deterministic parameter init (torch-layout) + kernel-layout preparation
# ----------------------------------------------------------------------------
def init_torch_params(key, *, word_vocab, char_vocab, wv_dim, char_emb_dim,
                      num_filters, conv_k, hidden):
    in_dim = wv_dim + num_filters
    keys = jax.random.split(key, 11)

    word_emb = 0.1 * jax.random.normal(keys[0], (word_vocab, wv_dim), jnp.float32)
    char_emb = 0.1 * jax.random.normal(keys[1], (char_vocab, char_emb_dim), jnp.float32)
    char_emb = char_emb.at[0].set(0.0)     # nn.Embedding(padding_idx=0)

    # Conv1d weight (num_filters, char_emb_dim, K), bias=False.
    conv_w = 0.1 * jax.random.normal(keys[2], (num_filters, char_emb_dim, conv_k), jnp.float32)

    scale = 1.0 / jnp.sqrt(jnp.float32(hidden))

    def u(k, shape):
        return jax.random.uniform(k, shape, jnp.float32, -scale, scale)

    # torch LSTM params: weight_ih (4H, D), weight_hh (4H, H), bias_ih/bias_hh (4H,);
    # gate order i, f, g, o.
    return dict(
        word_emb=word_emb, char_emb=char_emb, conv_w=conv_w,
        wih_f=u(keys[3], (4 * hidden, in_dim)), whh_f=u(keys[4], (4 * hidden, hidden)),
        b_ih_f=u(keys[5], (4 * hidden,)), b_hh_f=u(keys[6], (4 * hidden,)),
        wih_b=u(keys[7], (4 * hidden, in_dim)), whh_b=u(keys[8], (4 * hidden, hidden)),
        b_ih_b=u(keys[9], (4 * hidden,)), b_hh_b=u(keys[10], (4 * hidden,)),
    )


def prepare_kernel_params(tp, *, wv_dim, char_emb_dim, num_filters, conv_k, hidden):
    kc = conv_k * char_emb_dim
    kc_pad = _round_up(kc, 128)
    f_pad = _round_up(num_filters, 128)

    # Conv weight flattened in (k, c) order to match the im2col rows, zero-padded to 128 lanes.
    w_flat = tp["conv_w"].transpose(0, 2, 1).reshape(num_filters, kc).T      # (kc, nf)
    conv_w_pad = jnp.zeros((kc_pad, f_pad), jnp.float32).at[:kc, :num_filters].set(w_flat)

    def split_ih(w_ih):   # torch (4H, D) -> word part (wv, 4H), char part (nf, 4H)
        w_t = w_ih.T
        return w_t[:wv_dim], w_t[wv_dim:]

    wf_we, wf_cv = split_ih(tp["wih_f"])
    wb_we, wb_cv = split_ih(tp["wih_b"])
    w_we = jnp.concatenate([wf_we, wb_we], axis=1)                           # (wv, 8H)
    w_cv = jnp.zeros((f_pad, 8 * hidden), jnp.float32)
    w_cv = w_cv.at[:num_filters].set(jnp.concatenate([wf_cv, wb_cv], axis=1))
    b_all = jnp.concatenate([tp["b_ih_f"] + tp["b_hh_f"],
                             tp["b_ih_b"] + tp["b_hh_b"]]).reshape(1, 8 * hidden)

    return dict(
        word_emb=tp["word_emb"], char_emb=tp["char_emb"],
        conv_w_pad=conv_w_pad.astype(jnp.bfloat16),
        w_we=w_we.astype(jnp.bfloat16), w_cv=w_cv.astype(jnp.bfloat16),
        whh_f_t=tp["whh_f"].T.astype(jnp.bfloat16),
        whh_b_t=tp["whh_b"].T.astype(jnp.bfloat16),
        b_all=b_all,   # kept f32, added to the f32 gate accumulator
    )


# ----------------------------------------------------------------------------
# Pure-JAX f32 reference (torch-layout params) for correctness check
# ----------------------------------------------------------------------------
def reference_forward(word_input, char_input, tp, *, hidden, conv_k):
    B, Hh, Ww, S = word_input.shape
    Lc = char_input.shape[-1]
    cemb = tp["char_emb"].shape[-1]
    nf = tp["conv_w"].shape[0]
    hp = jax.lax.Precision.HIGHEST

    we = jnp.take(tp["word_emb"], word_input, axis=0)
    ce = jnp.take(tp["char_emb"], char_input, axis=0)
    ntok = B * Hh * Ww * S
    ce = ce.reshape(ntok, Lc, cemb)
    n_win = Lc - conv_k + 1
    w_flat = tp["conv_w"].transpose(0, 2, 1).reshape(nf, conv_k * cemb).T
    x_unf = jnp.stack(
        [ce[:, p:p + conv_k, :].reshape(ntok, conv_k * cemb) for p in range(n_win)], axis=1)
    s = jnp.einsum("npk,kf->npf", x_unf, w_flat, precision=hp)
    cv = jnp.max(jax.nn.relu(s), axis=1).reshape(B, Hh, Ww, S, nf)

    x = jnp.concatenate([we, cv], axis=4).reshape(B * Hh * Ww, S, -1)

    def lstm_dir(w_ih, w_hh, b_ih, b_hh, reverse):
        n = x.shape[0]
        h = jnp.zeros((n, hidden), jnp.float32)
        c = jnp.zeros((n, hidden), jnp.float32)
        order = range(S - 1, -1, -1) if reverse else range(S)
        for t in order:
            g_all = (jnp.dot(x[:, t, :], w_ih.T, precision=hp)
                     + jnp.dot(h, w_hh.T, precision=hp) + b_ih + b_hh)
            i = jax.nn.sigmoid(g_all[:, :hidden])
            f = jax.nn.sigmoid(g_all[:, hidden:2 * hidden])
            g = jnp.tanh(g_all[:, 2 * hidden:3 * hidden])
            o = jax.nn.sigmoid(g_all[:, 3 * hidden:])
            c = f * c + i * g
            h = o * jnp.tanh(c)
        return h

    h_f = lstm_dir(tp["wih_f"], tp["whh_f"], tp["b_ih_f"], tp["b_hh_f"], False)
    h_b = lstm_dir(tp["wih_b"], tp["whh_b"], tp["b_ih_b"], tp["b_hh_b"], True)
    h = jnp.concatenate([h_f, h_b], axis=1).reshape(B, Hh, Ww, 2 * hidden)
    return jnp.transpose(h, (0, 3, 1, 2))


if __name__ == "__main__":
    # Small shapes consistent with CellEmbedder.forward (attention_dim=None path).
    B, Hh, Ww, S, Lc = 2, 4, 4, 4, 8
    WORD_VOCAB, CHAR_VOCAB = 30, 20
    WV_DIM, CHAR_EMB_DIM, NUM_FILTERS, CONV_K, HIDDEN = 32, 30, 50, 3, 64

    key = jax.random.PRNGKey(0)
    k_params, k_word, k_char = jax.random.split(key, 3)

    torch_params = init_torch_params(
        k_params, word_vocab=WORD_VOCAB, char_vocab=CHAR_VOCAB, wv_dim=WV_DIM,
        char_emb_dim=CHAR_EMB_DIM, num_filters=NUM_FILTERS, conv_k=CONV_K, hidden=HIDDEN)
    kparams = prepare_kernel_params(
        torch_params, wv_dim=WV_DIM, char_emb_dim=CHAR_EMB_DIM,
        num_filters=NUM_FILTERS, conv_k=CONV_K, hidden=HIDDEN)

    word_input = jax.random.randint(k_word, (B, Hh, Ww, S), 0, WORD_VOCAB, jnp.int32)
    char_input = jax.random.randint(k_char, (B, Hh, Ww, S, Lc), 0, CHAR_VOCAB, jnp.int32)

    out = cell_embedder_forward(word_input, char_input, kparams, conv_k=CONV_K)
    out = jax.block_until_ready(out)

    ref = jax.block_until_ready(
        reference_forward(word_input, char_input, torch_params,
                          hidden=HIDDEN, conv_k=CONV_K))

    assert out.shape == (B, 2 * HIDDEN, Hh, Ww), out.shape
    assert out.dtype == jnp.float32
    max_err = float(jnp.max(jnp.abs(out - ref)))
    assert jnp.allclose(out, ref, atol=5e-3, rtol=5e-3), max_err

    print("KERNEL_OK")
</pallas_src>

<mosaic_0001>
module attributes {stable_mosaic.version = 11 : i64} {
  func.func @_char_conv_kernel(%arg0: i32, %arg1: memref<6x64x128xbf16, #tpu.memory_space<vmem>>, %arg2: memref<128x128xbf16, #tpu.memory_space<vmem>>, %arg3: memref<64x128xbf16, #tpu.memory_space<vmem>>) attributes {dimension_semantics = [#tpu.dimension_semantics<parallel>], iteration_bounds = array<i64: 2>, scalar_prefetch = 0 : i64, scratch_operands = 0 : i64, tpu.core_type = #tpu.core_type<tc>, window_params = [{transform_indices = @transform_0, window_bounds = array<i64: 6, 64, 128>}, {pipeline_mode = #tpu.pipeline_mode<synchronous>, transform_indices = @transform_1, window_bounds = array<i64: 128, 128>}, {transform_indices = @transform_2, window_bounds = array<i64: 64, 128>}]} {
    %c0 = arith.constant 0 : index
    %c0_0 = arith.constant 0 : index
    %c0_1 = arith.constant 0 : index
    %0 = vector.load %arg1[%c0, %c0_0, %c0_1] : memref<6x64x128xbf16, #tpu.memory_space<vmem>>, vector<6x64x128xbf16>
    %1 = vector.shape_cast %0 : vector<6x64x128xbf16> to vector<384x128xbf16>
    %c0_2 = arith.constant 0 : index
    %c0_3 = arith.constant 0 : index
    %2 = vector.load %arg2[%c0_2, %c0_3] : memref<128x128xbf16, #tpu.memory_space<vmem>>, vector<128x128xbf16>
    %cst = arith.constant dense<0.000000e+00> : vector<384x128xf32>
    %3 = tpu.matmul %1, %2, %cst {dimension_numbers = #tpu.dot_dimension_numbers<[1], [0], [0], [1], [0, 0, 1, 1], [], []>} : vector<384x128xbf16>, vector<128x128xbf16>, vector<384x128xf32> -> vector<384x128xf32>
    %4 = vector.extract_strided_slice %3 {offsets = [0, 0], sizes = [64, 128], strides = [1, 1]} : vector<384x128xf32> to vector<64x128xf32>
    %5 = vector.extract_strided_slice %3 {offsets = [64, 0], sizes = [64, 128], strides = [1, 1]} : vector<384x128xf32> to vector<64x128xf32>
    %6 = arith.maximumf %4, %5 : vector<64x128xf32>
    %7 = vector.extract_strided_slice %3 {offsets = [128, 0], sizes = [64, 128], strides = [1, 1]} : vector<384x128xf32> to vector<64x128xf32>
    %8 = arith.maximumf %6, %7 : vector<64x128xf32>
    %9 = vector.extract_strided_slice %3 {offsets = [192, 0], sizes = [64, 128], strides = [1, 1]} : vector<384x128xf32> to vector<64x128xf32>
    %10 = arith.maximumf %8, %9 : vector<64x128xf32>
    %11 = vector.extract_strided_slice %3 {offsets = [256, 0], sizes = [64, 128], strides = [1, 1]} : vector<384x128xf32> to vector<64x128xf32>
    %12 = arith.maximumf %10, %11 : vector<64x128xf32>
    %13 = vector.extract_strided_slice %3 {offsets = [320, 0], sizes = [64, 128], strides = [1, 1]} : vector<384x128xf32> to vector<64x128xf32>
    %14 = arith.maximumf %12, %13 : vector<64x128xf32>
    %cst_4 = arith.constant 0.000000e+00 : f32
    %15 = vector.broadcast %cst_4 : f32 to vector<64x128xf32>
    %16 = arith.maximumf %14, %15 : vector<64x128xf32>
    %17 = arith.truncf %16 : vector<64x128xf32> to vector<64x128xbf16>
    %c0_5 = arith.constant 0 : index
    %c0_6 = arith.constant 0 : index
    %18 = vector.load %arg3[%c0_5, %c0_6] : memref<64x128xbf16, #tpu.memory_space<vmem>>, vector<64x128xbf16>
    tpu.vector_store %arg3[%c0_5, %c0_6], %17 {strides = array<i32>} : memref<64x128xbf16, #tpu.memory_space<vmem>>, vector<64x128xbf16>,
    return
  }
  func.func @transform_0(%arg0: i32) -> (i32, i32, i32) {
    %c0_i32 = arith.constant 0 : i32
    %c0_i32_0 = arith.constant 0 : i32
    %c0_i32_1 = arith.constant 0 : i32
    return %c0_i32, %arg0, %c0_i32_0 : i32, i32, i32
  }
  func.func @transform_1(%arg0: i32) -> (i32, i32) {
    %c0_i32 = arith.constant 0 : i32
    %c0_i32_0 = arith.constant 0 : i32
    %c0_i32_1 = arith.constant 0 : i32
    return %c0_i32, %c0_i32_0 : i32, i32
  }
  func.func @transform_2(%arg0: i32) -> (i32, i32) {
    %c0_i32 = arith.constant 0 : i32
    %c0_i32_0 = arith.constant 0 : i32
    return %arg0, %c0_i32 : i32, i32
  }
}

module attributes {stable_mosaic.version = 11 : i64} {
  func.func @_bilstm_kernel(%arg0: i32, %arg1: memref<4x16x32xbf16, #tpu.memory_space<vmem>>, %arg2: memref<4x16x128xbf16, #tpu.memory_space<vmem>>, %arg3: memref<32x512xbf16, #tpu.memory_space<vmem>>, %arg4: memref<128x512xbf16, #tpu.memory_space<vmem>>, %arg5: memref<64x256xbf16, #tpu.memory_space<vmem>>, %arg6: memref<64x256xbf16, #tpu.memory_space<vmem>>, %arg7: memref<1x512xf32, #tpu.memory_space<vmem>>, %arg8: memref<16x128xf32, #tpu.memory_space<vmem>>) attributes {dimension_semantics = [#tpu.dimension_semantics<parallel>], iteration_bounds = array<i64: 2>, scalar_prefetch = 0 : i64, scratch_operands = 0 : i64, tpu.core_type = #tpu.core_type<tc>, window_params = [{transform_indices = @transform_0, window_bounds = array<i64: 4, 16, 32>}, {transform_indices = @transform_1, window_bounds = array<i64: 4, 16, 128>}, {pipeline_mode = #tpu.pipeline_mode<synchronous>, transform_indices = @transform_2, window_bounds = array<i64: 32, 512>}, {pipeline_mode = #tpu.pipeline_mode<synchronous>, transform_indices = @transform_3, window_bounds = array<i64: 128, 512>}, {pipeline_mode = #tpu.pipeline_mode<synchronous>, transform_indices = @transform_4, window_bounds = array<i64: 64, 256>}, {pipeline_mode = #tpu.pipeline_mode<synchronous>, transform_indices = @transform_5, window_bounds = array<i64: 64, 256>}, {pipeline_mode = #tpu.pipeline_mode<synchronous>, transform_indices = @transform_6, window_bounds = array<i64: 1, 512>}, {transform_indices = @transform_7, window_bounds = array<i64: 16, 128>}]} {
    %c0 = arith.constant 0 : index
    %c0_0 = arith.constant 0 : index
    %c0_1 = arith.constant 0 : index
    %0 = vector.load %arg1[%c0, %c0_0, %c0_1] : memref<4x16x32xbf16, #tpu.memory_space<vmem>>, vector<4x16x32xbf16>
    %1 = vector.shape_cast %0 : vector<4x16x32xbf16> to vector<64x32xbf16>
    %c0_2 = arith.constant 0 : index
    %c0_3 = arith.constant 0 : index
    %c0_4 = arith.constant 0 : index
    %2 = vector.load %arg2[%c0_2, %c0_3, %c0_4] : memref<4x16x128xbf16, #tpu.memory_space<vmem>>, vector<4x16x128xbf16>
    %3 = vector.shape_cast %2 : vector<4x16x128xbf16> to vector<64x128xbf16>
    %c0_5 = arith.constant 0 : index
    %c0_6 = arith.constant 0 : index
    %4 = vector.load %arg3[%c0_5, %c0_6] : memref<32x512xbf16, #tpu.memory_space<vmem>>, vector<32x512xbf16>
    %cst = arith.constant dense<0.000000e+00> : vector<64x512xf32>
    %5 = tpu.matmul %1, %4, %cst {dimension_numbers = #tpu.dot_dimension_numbers<[1], [0], [0], [1], [0, 0, 1, 1], [], []>} : vector<64x32xbf16>, vector<32x512xbf16>, vector<64x512xf32> -> vector<64x512xf32>
    %c0_7 = arith.constant 0 : index
    %c0_8 = arith.constant 0 : index
    %6 = vector.load %arg4[%c0_7, %c0_8] : memref<128x512xbf16, #tpu.memory_space<vmem>>, vector<128x512xbf16>
    %cst_9 = arith.constant dense<0.000000e+00> : vector<64x512xf32>
    %7 = tpu.matmul %3, %6, %cst_9 {dimension_numbers = #tpu.dot_dimension_numbers<[1], [0], [0], [1], [0, 0, 1, 1], [], []>} : vector<64x128xbf16>, vector<128x512xbf16>, vector<64x512xf32> -> vector<64x512xf32>
    %8 = arith.addf %5, %7 : vector<64x512xf32>
    %c0_10 = arith.constant 0 : index
    %c0_11 = arith.constant 0 : index
    %9 = vector.load %arg7[%c0_10, %c0_11] : memref<1x512xf32, #tpu.memory_space<vmem>>, vector<1x512xf32>
    %10 = vector.broadcast %9 : vector<1x512xf32> to vector<64x512xf32>
    %11 = arith.addf %8, %10 : vector<64x512xf32>
    %12 = vector.shape_cast %11 : vector<64x512xf32> to vector<4x16x512xf32>
    %c0_12 = arith.constant 0 : index
    %c0_13 = arith.constant 0 : index
    %13 = vector.load %arg5[%c0_12, %c0_13] : memref<64x256xbf16, #tpu.memory_space<vmem>>, vector<64x256xbf16>
    %c0_14 = arith.constant 0 : index
    %c0_15 = arith.constant 0 : index
    %14 = vector.load %arg6[%c0_14, %c0_15] : memref<64x256xbf16, #tpu.memory_space<vmem>>, vector<64x256xbf16>
    %cst_16 = arith.constant 0.000000e+00 : f32
    %15 = vector.broadcast %cst_16 : f32 to vector<16x64xf32>
    %16 = vector.extract_strided_slice %12 {offsets = [0, 0, 0], sizes = [1, 16, 256], strides = [1, 1, 1]} : vector<4x16x512xf32> to vector<1x16x256xf32>
    %17 = vector.shape_cast %16 : vector<1x16x256xf32> to vector<16x256xf32>
    %18 = arith.truncf %15 : vector<16x64xf32> to vector<16x64xbf16>
    %cst_17 = arith.constant dense<0.000000e+00> : vector<16x256xf32>
    %19 = tpu.matmul %18, %13, %cst_17 {dimension_numbers = #tpu.dot_dimension_numbers<[1], [0], [0], [1], [0, 0, 1, 1], [], []>} : vector<16x64xbf16>, vector<64x256xbf16>, vector<16x256xf32> -> vector<16x256xf32>
    %20 = arith.addf %17, %19 : vector<16x256xf32>
    %21 = vector.extract_strided_slice %20 {offsets = [0, 0], sizes = [16, 64], strides = [1, 1]} : vector<16x256xf32> to vector<16x64xf32>
    %22 = arith.negf %21 : vector<16x64xf32>
    %23 = math.exp %22 : vector<16x64xf32>
    %cst_18 = arith.constant 1.000000e+00 : f32
    %24 = vector.broadcast %cst_18 : f32 to vector<16x64xf32>
    %25 = arith.addf %24, %23 : vector<16x64xf32>
    %26 = arith.divf %24, %25 : vector<16x64xf32>
    %27 = vector.extract_strided_slice %20 {offsets = [0, 64], sizes = [16, 64], strides = [1, 1]} : vector<16x256xf32> to vector<16x64xf32>
    %28 = arith.negf %27 : vector<16x64xf32>
    %29 = math.exp %28 : vector<16x64xf32>
    %cst_19 = arith.constant 1.000000e+00 : f32
    %30 = vector.broadcast %cst_19 : f32 to vector<16x64xf32>
    %31 = arith.addf %30, %29 : vector<16x64xf32>
    %32 = arith.divf %30, %31 : vector<16x64xf32>
    %33 = vector.extract_strided_slice %20 {offsets = [0, 128], sizes = [16, 64], strides = [1, 1]} : vector<16x256xf32> to vector<16x64xf32>
    %34 = math.tanh %33 : vector<16x64xf32>
    %35 = vector.extract_strided_slice %20 {offsets = [0, 192], sizes = [16, 64], strides = [1, 1]} : vector<16x256xf32> to vector<16x64xf32>
    %36 = arith.negf %35 : vector<16x64xf32>
    %37 = math.exp %36 : vector<16x64xf32>
    %cst_20 = arith.constant 1.000000e+00 : f32
    %38 = vector.broadcast %cst_20 : f32 to vector<16x64xf32>
    %39 = arith.addf %38, %37 : vector<16x64xf32>
    %40 = arith.divf %38, %39 : vector<16x64xf32>
    %41 = arith.mulf %32, %15 : vector<16x64xf32>
    %42 = arith.mulf %26, %34 : vector<16x64xf32>
    %43 = arith.addf %41, %42 : vector<16x64xf32>
    %44 = math.tanh %43 : vector<16x64xf32>
    %45 = arith.mulf %40, %44 : vector<16x64xf32>
    %46 = vector.extract_strided_slice %12 {offsets = [3, 0, 256], sizes = [1, 16, 256], strides = [1, 1, 1]} : vector<4x16x512xf32> to vector<1x16x256xf32>
    %47 = vector.shape_cast %46 : vector<1x16x256xf32> to vector<16x256xf32>
    %48 = arith.truncf %15 : vector<16x64xf32> to vector<16x64xbf16>
    %cst_21 = arith.constant dense<0.000000e+00> : vector<16x256xf32>
    %49 = tpu.matmul %48, %14, %cst_21 {dimension_numbers = #tpu.dot_dimension_numbers<[1], [0], [0], [1], [0, 0, 1, 1], [], []>} : vector<16x64xbf16>, vector<64x256xbf16>, vector<16x256xf32> -> vector<16x256xf32>
    %50 = arith.addf %47, %49 : vector<16x256xf32>
    %51 = vector.extract_strided_slice %50 {offsets = [0, 0], sizes = [16, 64], strides = [1, 1]} : vector<16x256xf32> to vector<16x64xf32>
    %52 = arith.negf %51 : vector<16x64xf32>
    %53 = math.exp %52 : vector<16x64xf32>
    %cst_22 = arith.constant 1.000000e+00 : f32
    %54 = vector.broadcast %cst_22 : f32 to vector<16x64xf32>
    %55 = arith.addf %54, %53 : vector<16x64xf32>
    %56 = arith.divf %54, %55 : vector<16x64xf32>
    %57 = vector.extract_strided_slice %50 {offsets = [0, 64], sizes = [16, 64], strides = [1, 1]} : vector<16x256xf32> to vector<16x64xf32>
    %58 = arith.negf %57 : vector<16x64xf32>
    %59 = math.exp %58 : vector<16x64xf32>
    %cst_23 = arith.constant 1.000000e+00 : f32
    %60 = vector.broadcast %cst_23 : f32 to vector<16x64xf32>
    %61 = arith.addf %60, %59 : vector<16x64xf32>
    %62 = arith.divf %60, %61 : vector<16x64xf32>
    %63 = vector.extract_strided_slice %50 {offsets = [0, 128], sizes = [16, 64], strides = [1, 1]} : vector<16x256xf32> to vector<16x64xf32>
    %64 = math.tanh %63 : vector<16x64xf32>
    %65 = vector.extract_strided_slice %50 {offsets = [0, 192], sizes = [16, 64], strides = [1, 1]} : vector<16x256xf32> to vector<16x64xf32>
    %66 = arith.negf %65 : vector<16x64xf32>
    %67 = math.exp %66 : vector<16x64xf32>
    %cst_24 = arith.constant 1.000000e+00 : f32
    %68 = vector.broadcast %cst_24 : f32 to vector<16x64xf32>
    %69 = arith.addf %68, %67 : vector<16x64xf32>
    %70 = arith.divf %68, %69 : vector<16x64xf32>
    %71 = arith.mulf %62, %15 : vector<16x64xf32>
    %72 = arith.mulf %56, %64 : vector<16x64xf32>
    %73 = arith.addf %71, %72 : vector<16x64xf32>
    %74 = math.tanh %73 : vector<16x64xf32>
    %75 = arith.mulf %70, %74 : vector<16x64xf32>
    %76 = vector.extract_strided_slice %12 {offsets = [1, 0, 0], sizes = [1, 16, 256], strides = [1, 1, 1]} : vector<4x16x512xf32> to vector<1x16x256xf32>
    %77 = vector.shape_cast %76 : vector<1x16x256xf32> to vector<16x256xf32>
    %78 = arith.truncf %45 : vector<16x64xf32> to vector<16x64xbf16>
    %cst_25 = arith.constant dense<0.000000e+00> : vector<16x256xf32>
    %79 = tpu.matmul %78, %13, %cst_25 {dimension_numbers = #tpu.dot_dimension_numbers<[1], [0], [0], [1], [0, 0, 1, 1], [], []>} : vector<16x64xbf16>, vector<64x256xbf16>, vector<16x256xf32> -> vector<16x256xf32>
    %80 = arith.addf %77, %79 : vector<16x256xf32>
    %81 = vector.extract_strided_slice %80 {offsets = [0, 0], sizes = [16, 64], strides = [1, 1]} : vector<16x256xf32> to vector<16x64xf32>
    %82 = arith.negf %81 : vector<16x64xf32>
    %83 = math.exp %82 : vector<16x64xf32>
    %cst_26 = arith.constant 1.000000e+00 : f32
    %84 = vector.broadcast %cst_26 : f32 to vector<16x64xf32>
    %85 = arith.addf %84, %83 : vector<16x64xf32>
    %86 = arith.divf %84, %85 : vector<16x64xf32>
    %87 = vector.extract_strided_slice %80 {offsets = [0, 64], sizes = [16, 64], strides = [1, 1]} : vector<16x256xf32> to vector<16x64xf32>
    %88 = arith.negf %87 : vector<16x64xf32>
    %89 = math.exp %88 : vector<16x64xf32>
    %cst_27 = arith.constant 1.000000e+00 : f32
    %90 = vector.broadcast %cst_27 : f32 to vector<16x64xf32>
    %91 = arith.addf %90, %89 : vector<16x64xf32>
    %92 = arith.divf %90, %91 : vector<16x64xf32>
    %93 = vector.extract_strided_slice %80 {offsets = [0, 128], sizes = [16, 64], strides = [1, 1]} : vector<16x256xf32> to vector<16x64xf32>
    %94 = math.tanh %93 : vector<16x64xf32>
    %95 = vector.extract_strided_slice %80 {offsets = [0, 192], sizes = [16, 64], strides = [1, 1]} : vector<16x256xf32> to vector<16x64xf32>
    %96 = arith.negf %95 : vector<16x64xf32>
    %97 = math.exp %96 : vector<16x64xf32>
    %cst_28 = arith.constant 1.000000e+00 : f32
    %98 = vector.broadcast %cst_28 : f32 to vector<16x64xf32>
    %99 = arith.addf %98, %97 : vector<16x64xf32>
    %100 = arith.divf %98, %99 : vector<16x64xf32>
    %101 = arith.mulf %92, %43 : vector<16x64xf32>
    %102 = arith.mulf %86, %94 : vector<16x64xf32>
    %103 = arith.addf %101, %102 : vector<16x64xf32>
    %104 = math.tanh %103 : vector<16x64xf32>
    %105 = arith.mulf %100, %104 : vector<16x64xf32>
    %106 = vector.extract_strided_slice %12 {offsets = [2, 0, 256], sizes = [1, 16, 256], strides = [1, 1, 1]} : vector<4x16x512xf32> to vector<1x16x256xf32>
    %107 = vector.shape_cast %106 : vector<1x16x256xf32> to vector<16x256xf32>
    %108 = arith.truncf %75 : vector<16x64xf32> to vector<16x64xbf16>
    %cst_29 = arith.constant dense<0.000000e+00> : vector<16x256xf32>
    %109 = tpu.matmul %108, %14, %cst_29 {dimension_numbers = #tpu.dot_dimension_numbers<[1], [0], [0], [1], [0, 0, 1, 1], [], []>} : vector<16x64xbf16>, vector<64x256xbf16>, vector<16x256xf32> -> vector<16x256xf32>
    %110 = arith.addf %107, %109 : vector<16x256xf32>
    %111 = vector.extract_strided_slice %110 {offsets = [0, 0], sizes = [16, 64], strides = [1, 1]} : vector<16x256xf32> to vector<16x64xf32>
    %112 = arith.negf %111 : vector<16x64xf32>
    %113 = math.exp %112 : vector<16x64xf32>
    %cst_30 = arith.constant 1.000000e+00 : f32
    %114 = vector.broadcast %cst_30 : f32 to vector<16x64xf32>
    %115 = arith.addf %114, %113 : vector<16x64xf32>
    %116 = arith.divf %114, %115 : vector<16x64xf32>
    %117 = vector.extract_strided_slice %110 {offsets = [0, 64], sizes = [16, 64], strides = [1, 1]} : vector<16x256xf32> to vector<16x64xf32>
    %118 = arith.negf %117 : vector<16x64xf32>
    %119 = math.exp %118 : vector<16x64xf32>
    %cst_31 = arith.constant 1.000000e+00 : f32
    %120 = vector.broadcast %cst_31 : f32 to vector<16x64xf32>
    %121 = arith.addf %120, %119 : vector<16x64xf32>
    %122 = arith.divf %120, %121 : vector<16x64xf32>
    %123 = vector.extract_strided_slice %110 {offsets = [0, 128], sizes = [16, 64], strides = [1, 1]} : vector<16x256xf32> to vector<16x64xf32>
    %124 = math.tanh %123 : vector<16x64xf32>
    %125 = vector.extract_strided_slice %110 {offsets = [0, 192], sizes = [16, 64], strides = [1, 1]} : vector<16x256xf32> to vector<16x64xf32>
    %126 = arith.negf %125 : vector<16x64xf32>
    %127 = math.exp %126 : vector<16x64xf32>
    %cst_32 = arith.constant 1.000000e+00 : f32
    %128 = vector.broadcast %cst_32 : f32 to vector<16x64xf32>
    %129 = arith.addf %128, %127 : vector<16x64xf32>
    %130 = arith.divf %128, %129 : vector<16x64xf32>
    %131 = arith.mulf %122, %73 : vector<16x64xf32>
    %132 = arith.mulf %116, %124 : vector<16x64xf32>
    %133 = arith.addf %131, %132 : vector<16x64xf32>
    %134 = math.tanh %133 : vector<16x64xf32>
    %135 = arith.mulf %130, %134 : vector<16x64xf32>
    %136 = vector.extract_strided_slice %12 {offsets = [2, 0, 0], sizes = [1, 16, 256], strides = [1, 1, 1]} : vector<4x16x512xf32> to vector<1x16x256xf32>
    %137 = vector.shape_cast %136 : vector<1x16x256xf32> to vector<16x256xf32>
    %138 = arith.truncf %105 : vector<16x64xf32> to vector<16x64xbf16>
    %cst_33 = arith.constant dense<0.000000e+00> : vector<16x256xf32>
    %139 = tpu.matmul %138, %13, %cst_33 {dimension_numbers = #tpu.dot_dimension_numbers<[1], [0], [0], [1], [0, 0, 1, 1], [], []>} : vector<16x64xbf16>, vector<64x256xbf16>, vector<16x256xf32> -> vector<16x256xf32>
    %140 = arith.addf %137, %139 : vector<16x256xf32>
    %141 = vector.extract_strided_slice %140 {offsets = [0, 0], sizes = [16, 64], strides = [1, 1]} : vector<16x256xf32> to vector<16x64xf32>
    %142 = arith.negf %141 : vector<16x64xf32>
    %143 = math.exp %142 : vector<16x64xf32>
    %cst_34 = arith.constant 1.000000e+00 : f32
    %144 = vector.broadcast %cst_34 : f32 to vector<16x64xf32>
    %145 = arith.addf %144, %143 : vector<16x64xf32>
    %146 = arith.divf %144, %145 : vector<16x64xf32>
    %147 = vector.extract_strided_slice %140 {offsets = [0, 64], sizes = [16, 64], strides = [1, 1]} : vector<16x256xf32> to vector<16x64xf32>
    %148 = arith.negf %147 : vector<16x64xf32>
    %149 = math.exp %148 : vector<16x64xf32>
    %cst_35 = arith.constant 1.000000e+00 : f32
    %150 = vector.broadcast %cst_35 : f32 to vector<16x64xf32>
    %151 = arith.addf %150, %149 : vector<16x64xf32>
    %152 = arith.divf %150, %151 : vector<16x64xf32>
    %153 = vector.extract_strided_slice %140 {offsets = [0, 128], sizes = [16, 64], strides = [1, 1]} : vector<16x256xf32> to vector<16x64xf32>
    %154 = math.tanh %153 : vector<16x64xf32>
    %155 = vector.extract_strided_slice %140 {offsets = [0, 192], sizes = [16, 64], strides = [1, 1]} : vector<16x256xf32> to vector<16x64xf32>
    %156 = arith.negf %155 : vector<16x64xf32>
    %157 = math.exp %156 : vector<16x64xf32>
    %cst_36 = arith.constant 1.000000e+00 : f32
    %158 = vector.broadcast %cst_36 : f32 to vector<16x64xf32>
    %159 = arith.addf %158, %157 : vector<16x64xf32>
    %160 = arith.divf %158, %159 : vector<16x64xf32>
    %161 = arith.mulf %152, %103 : vector<16x64xf32>
    %162 = arith.mulf %146, %154 : vector<16x64xf32>
    %163 = arith.addf %161, %162 : vector<16x64xf32>
    %164 = math.tanh %163 : vector<16x64xf32>
    %165 = arith.mulf %160, %164 : vector<16x64xf32>
    %166 = vector.extract_strided_slice %12 {offsets = [1, 0, 256], sizes = [1, 16, 256], strides = [1, 1, 1]} : vector<4x16x512xf32> to vector<1x16x256xf32>
    %167 = vector.shape_cast %166 : vector<1x16x256xf32> to vector<16x256xf32>
    %168 = arith.truncf %135 : vector<16x64xf32> to vector<16x64xbf16>
    %cst_37 = arith.constant dense<0.000000e+00> : vector<16x256xf32>
    %169 = tpu.matmul %168, %14, %cst_37 {dimension_numbers = #tpu.dot_dimension_numbers<[1], [0], [0], [1], [0, 0, 1, 1], [], []>} : vector<16x64xbf16>, vector<64x256xbf16>, vector<16x256xf32> -> vector<16x256xf32>
    %170 = arith.addf %167, %169 : vector<16x256xf32>
    %171 = vector.extract_strided_slice %170 {offsets = [0, 0], sizes = [16, 64], strides = [1, 1]} : vector<16x256xf32> to vector<16x64xf32>
    %172 = arith.negf %171 : vector<16x64xf32>
    %173 = math.exp %172 : vector<16x64xf32>
    %cst_38 = arith.constant 1.000000e+00 : f32
    %174 = vector.broadcast %cst_38 : f32 to vector<16x64xf32>
    %175 = arith.addf %174, %173 : vector<16x64xf32>
    %176 = arith.divf %174, %175 : vector<16x64xf32>
    %177 = vector.extract_strided_slice %170 {offsets = [0, 64], sizes = [16, 64], strides = [1, 1]} : vector<16x256xf32> to vector<16x64xf32>
    %178 = arith.negf %177 : vector<16x64xf32>
    %179 = math.exp %178 : vector<16x64xf32>
    %cst_39 = arith.constant 1.000000e+00 : f32
    %180 = vector.broadcast %cst_39 : f32 to vector<16x64xf32>
    %181 = arith.addf %180, %179 : vector<16x64xf32>
    %182 = arith.divf %180, %181 : vector<16x64xf32>
    %183 = vector.extract_strided_slice %170 {offsets = [0, 128], sizes = [16, 64], strides = [1, 1]} : vector<16x256xf32> to vector<16x64xf32>
    %184 = math.tanh %183 : vector<16x64xf32>
    %185 = vector.extract_strided_slice %170 {offsets = [0, 192], sizes = [16, 64], strides = [1, 1]} : vector<16x256xf32> to vector<16x64xf32>
    %186 = arith.negf %185 : vector<16x64xf32>
    %187 = math.exp %186 : vector<16x64xf32>
    %cst_40 = arith.constant 1.000000e+00 : f32
    %188 = vector.broadcast %cst_40 : f32 to vector<16x64xf32>
    %189 = arith.addf %188, %187 : vector<16x64xf32>
    %190 = arith.divf %188, %189 : vector<16x64xf32>
    %191 = arith.mulf %182, %133 : vector<16x64xf32>
    %192 = arith.mulf %176, %184 : vector<16x64xf32>
    %193 = arith.addf %191, %192 : vector<16x64xf32>
    %194 = math.tanh %193 : vector<16x64xf32>
    %195 = arith.mulf %190, %194 : vector<16x64xf32>
    %196 = vector.extract_strided_slice %12 {offsets = [3, 0, 0], sizes = [1, 16, 256], strides = [1, 1, 1]} : vector<4x16x512xf32> to vector<1x16x256xf32>
    %197 = vector.shape_cast %196 : vector<1x16x256xf32> to vector<16x256xf32>
    %198 = arith.truncf %165 : vector<16x64xf32> to vector<16x64xbf16>
    %cst_41 = arith.constant dense<0.000000e+00> : vector<16x256xf32>
    %199 = tpu.matmul %198, %13, %cst_41 {dimension_numbers = #tpu.dot_dimension_numbers<[1], [0], [0], [1], [0, 0, 1, 1], [], []>} : vector<16x64xbf16>, vector<64x256xbf16>, vector<16x256xf32> -> vector<16x256xf32>
    %200 = arith.addf %197, %199 : vector<16x256xf32>
    %201 = vector.extract_strided_slice %200 {offsets = [0, 0], sizes = [16, 64], strides = [1, 1]} : vector<16x256xf32> to vector<16x64xf32>
    %202 = arith.negf %201 : vector<16x64xf32>
    %203 = math.exp %202 : vector<16x64xf32>
    %cst_42 = arith.constant 1.000000e+00 : f32
    %204 = vector.broadcast %cst_42 : f32 to vector<16x64xf32>
    %205 = arith.addf %204, %203 : vector<16x64xf32>
    %206 = arith.divf %204, %205 : vector<16x64xf32>
    %207 = vector.extract_strided_slice %200 {offsets = [0, 64], sizes = [16, 64], strides = [1, 1]} : vector<16x256xf32> to vector<16x64xf32>
    %208 = arith.negf %207 : vector<16x64xf32>
    %209 = math.exp %208 : vector<16x64xf32>
    %cst_43 = arith.constant 1.000000e+00 : f32
    %210 = vector.broadcast %cst_43 : f32 to vector<16x64xf32>
    %211 = arith.addf %210, %209 : vector<16x64xf32>
    %212 = arith.divf %210, %211 : vector<16x64xf32>
    %213 = vector.extract_strided_slice %200 {offsets = [0, 128], sizes = [16, 64], strides = [1, 1]} : vector<16x256xf32> to vector<16x64xf32>
    %214 = math.tanh %213 : vector<16x64xf32>
    %215 = vector.extract_strided_slice %200 {offsets = [0, 192], sizes = [16, 64], strides = [1, 1]} : vector<16x256xf32> to vector<16x64xf32>
    %216 = arith.negf %215 : vector<16x64xf32>
    %217 = math.exp %216 : vector<16x64xf32>
    %cst_44 = arith.constant 1.000000e+00 : f32
    %218 = vector.broadcast %cst_44 : f32 to vector<16x64xf32>
    %219 = arith.addf %218, %217 : vector<16x64xf32>
    %220 = arith.divf %218, %219 : vector<16x64xf32>
    %221 = arith.mulf %212, %163 : vector<16x64xf32>
    %222 = arith.mulf %206, %214 : vector<16x64xf32>
    %223 = arith.addf %221, %222 : vector<16x64xf32>
    %224 = math.tanh %223 : vector<16x64xf32>
    %225 = arith.mulf %220, %224 : vector<16x64xf32>
    %226 = vector.extract_strided_slice %12 {offsets = [0, 0, 256], sizes = [1, 16, 256], strides = [1, 1, 1]} : vector<4x16x512xf32> to vector<1x16x256xf32>
    %227 = vector.shape_cast %226 : vector<1x16x256xf32> to vector<16x256xf32>
    %228 = arith.truncf %195 : vector<16x64xf32> to vector<16x64xbf16>
    %cst_45 = arith.constant dense<0.000000e+00> : vector<16x256xf32>
    %229 = tpu.matmul %228, %14, %cst_45 {dimension_numbers = #tpu.dot_dimension_numbers<[1], [0], [0], [1], [0, 0, 1, 1], [], []>} : vector<16x64xbf16>, vector<64x256xbf16>, vector<16x256xf32> -> vector<16x256xf32>
    %230 = arith.addf %227, %229 : vector<16x256xf32>
    %231 = vector.extract_strided_slice %230 {offsets = [0, 0], sizes = [16, 64], strides = [1, 1]} : vector<16x256xf32> to vector<16x64xf32>
    %232 = arith.negf %231 : vector<16x64xf32>
    %233 = math.exp %232 : vector<16x64xf32>
    %cst_46 = arith.constant 1.000000e+00 : f32
    %234 = vector.broadcast %cst_46 : f32 to vector<16x64xf32>
    %235 = arith.addf %234, %233 : vector<16x64xf32>
    %236 = arith.divf %234, %235 : vector<16x64xf32>
    %237 = vector.extract_strided_slice %230 {offsets = [0, 64], sizes = [16, 64], strides = [1, 1]} : vector<16x256xf32> to vector<16x64xf32>
    %238 = arith.negf %237 : vector<16x64xf32>
    %239 = math.exp %238 : vector<16x64xf32>
    %cst_47 = arith.constant 1.000000e+00 : f32
    %240 = vector.broadcast %cst_47 : f32 to vector<16x64xf32>
    %241 = arith.addf %240, %239 : vector<16x64xf32>
    %242 = arith.divf %240, %241 : vector<16x64xf32>
    %243 = vector.extract_strided_slice %230 {offsets = [0, 128], sizes = [16, 64], strides = [1, 1]} : vector<16x256xf32> to vector<16x64xf32>
    %244 = math.tanh %243 : vector<16x64xf32>
    %245 = vector.extract_strided_slice %230 {offsets = [0, 192], sizes = [16, 64], strides = [1, 1]} : vector<16x256xf32> to vector<16x64xf32>
    %246 = arith.negf %245 : vector<16x64xf32>
    %247 = math.exp %246 : vector<16x64xf32>
    %cst_48 = arith.constant 1.000000e+00 : f32
    %248 = vector.broadcast %cst_48 : f32 to vector<16x64xf32>
    %249 = arith.addf %248, %247 : vector<16x64xf32>
    %250 = arith.divf %248, %249 : vector<16x64xf32>
    %251 = arith.mulf %242, %193 : vector<16x64xf32>
    %252 = arith.mulf %236, %244 : vector<16x64xf32>
    %253 = arith.addf %251, %252 : vector<16x64xf32>
    %254 = math.tanh %253 : vector<16x64xf32>
    %255 = arith.mulf %250, %254 : vector<16x64xf32>
    %c0_49 = arith.constant 0 : index
    %c0_50 = arith.constant 0 : index
    %256 = vector.load %arg8[%c0_49, %c0_50] : memref<16x128xf32, #tpu.memory_space<vmem>>, vector<16x64xf32>
    tpu.vector_store %arg8[%c0_49, %c0_50], %225 {strides = array<i32>} : memref<16x128xf32, #tpu.memory_space<vmem>>, vector<16x64xf32>,
    %c0_51 = arith.constant 0 : index
    %c64 = arith.constant 64 : index
    %257 = vector.load %arg8[%c0_51, %c64] : memref<16x128xf32, #tpu.memory_space<vmem>>, vector<16x64xf32>
    tpu.vector_store %arg8[%c0_51, %c64], %255 {strides = array<i32>} : memref<16x128xf32, #tpu.memory_space<vmem>>, vector<16x64xf32>,
    return
  }
  func.func @transform_0(%arg0: i32) -> (i32, i32, i32) {
    %c0_i32 = arith.constant 0 : i32
    %c0_i32_0 = arith.constant 0 : i32
    %c0_i32_1 = arith.constant 0 : i32
    return %c0_i32, %arg0, %c0_i32_0 : i32, i32, i32
  }
  func.func @transform_1(%arg0: i32) -> (i32, i32, i32) {
    %c0_i32 = arith.constant 0 : i32
    %c0_i32_0 = arith.constant 0 : i32
    %c0_i32_1 = arith.constant 0 : i32
    return %c0_i32, %arg0, %c0_i32_0 : i32, i32, i32
  }
  func.func @transform_2(%arg0: i32) -> (i32, i32) {
    %c0_i32 = arith.constant 0 : i32
    %c0_i32_0 = arith.constant 0 : i32
    %c0_i32_1 = arith.constant 0 : i32
    return %c0_i32, %c0_i32_0 : i32, i32
  }
  func.func @transform_3(%arg0: i32) -> (i32, i32) {
    %c0_i32 = arith.constant 0 : i32
    %c0_i32_0 = arith.constant 0 : i32
    %c0_i32_1 = arith.constant 0 : i32
    return %c0_i32, %c0_i32_0 : i32, i32
  }
  func.func @transform_4(%arg0: i32) -> (i32, i32) {
    %c0_i32 = arith.constant 0 : i32
    %c0_i32_0 = arith.constant 0 : i32
    %c0_i32_1 = arith.constant 0 : i32
    return %c0_i32, %c0_i32_0 : i32, i32
  }
  func.func @transform_5(%arg0: i32) -> (i32, i32) {
    %c0_i32 = arith.constant 0 : i32
    %c0_i32_0 = arith.constant 0 : i32
    %c0_i32_1 = arith.constant 0 : i32
    return %c0_i32, %c0_i32_0 : i32, i32
  }
  func.func @transform_6(%arg0: i32) -> (i32, i32) {
    %c0_i32 = arith.constant 0 : i32
    %c0_i32_0 = arith.constant 0 : i32
    %c0_i32_1 = arith.constant 0 : i32
    return %c0_i32, %c0_i32_0 : i32, i32
  }
  func.func @transform_7(%arg0: i32) -> (i32, i32) {
    %c0_i32 = arith.constant 0 : i32
    %c0_i32_0 = arith.constant 0 : i32
    return %arg0, %c0_i32 : i32, i32
  }
}

</mosaic_0001>

<llo_original>
// kernel: cell_embedder_forward.2
$region0: #{cell_embedder_forward.2}
  #allocation0 [shape = 'u32[]', space=smem, size = 0x4, offset = 0x4, fixed_abs, tag = 'smem constant byte address 0x4 - core index']
  #allocation1 [shape = 'u32[144,128]{1,0:T(1,128)}', space=vmem, size = 0x12000, scoped, tag = 'internal scratch']
  %s0 = inlined_call_operand.vmem [shape: bf16[6,128,128], index: 0, kind: input, shape index: {}]
  %s1 = inlined_call_operand.vmem [shape: bf16[128,128], index: 1, kind: input, shape index: {}]
  %s2 = inlined_call_operand.vmem [shape: bf16[128,128], index: 2, kind: output, shape index: {}]
  %s3 = sld [smem:[#allocation0]]
  $region82: #{cell_embedder_forward.2} parent=0
    _
  %s5 = ssub.s32 1, %s3
  %s6 = scalar_select 0, %s5, %s3
  $region1: #{cell_embedder_forward.2} parent=0
    #allocation2 [shape = 'u8[196608]{0}', space=vmem, size = 0x30000, scoped, tag = 'input window, operand 0']
    loop: start=0, step=1, limit=4
    $region2: #{cell_embedder_forward.2} parent=1 // loop_pre_header
      _
    $region3: #{cell_embedder_forward.2} parent=1 // loop_header
      %s8 = sphi 0, %s12
      %p9 = scmp.ge.s32.totalorder %s8, 4
      %s18 = sphi 0, %s20
      %s21 = sphi 0, %s18
      %s22 = sphi 0, %s21
      %s38 = sphi 0, %s22
      %s42 = sphi 0, %s42
      %s44 = sphi 0, %s42
      %s45 = sphi 0, %s44
      %s59 = sphi 0, %s45
      %s65 = sphi 0, %s67
      %s68 = sphi 0, %s65
      %s69 = sphi 0, %s68
      %s85 = sphi 0, %s69
    $region4: #{cell_embedder_forward.2} parent=1 // loop_header_branch
      %11 = sbr.rel (%p9) target = $region8
    $region5: #{cell_embedder_forward.2} parent=1 // loop_body
      %s13 = ssub.s32 %s8, 1
      %s14 = ssub.s32 %s8, 2
      %s15 = sadd.s32 %s8, 1
      %s16 = ssub.s32 %s8, %s15
      %p17 = scmp.eq.s32.totalorder %s16, 0
      %s19 = sadd.s32 %s18, 1
      %s20 = scalar_select %p17, %s18, %s19
      %p23 = pneg %p17
      %p24 = scmp.eq.s32.totalorder %s8, 1
      %p25 = por %p23, %p24
      %p26 = scmp.ne.s32.totalorder %s18, %s21
      %p27 = scmp.eq.s32.totalorder %s8, 0
      %p28 = por %p26, %p27
      %p29 = scmp.ne.s32.totalorder %s18, %s21
      %p30 = scmp.eq.s32.totalorder %s13, 1
      %p31 = por %p29, %p30
      %p32 = scmp.ne.s32.totalorder %s21, %s22
      %p33 = scmp.eq.s32.totalorder %s13, 0
      %p34 = por %p32, %p33
      %p35 = scmp.ne.s32.totalorder %s21, %s22
      %p36 = scmp.eq.s32.totalorder %s14, 1
      %p37 = por %p35, %p36
      %p39 = scmp.ne.s32.totalorder %s22, %s38
      %p40 = scmp.eq.s32.totalorder %s14, 0
      %p41 = por %p39, %p40
      %s43 = sadd.s32 %s42, 1
      %p46 = scmp.eq.s32.totalorder %s8, 1
      %p47 = scmp.ne.s32.totalorder %s42, %s44
      %p48 = scmp.eq.s32.totalorder %s8, 0
      %p49 = por %p47, %p48
      %p50 = scmp.ne.s32.totalorder %s42, %s44
      %p51 = scmp.eq.s32.totalorder %s13, 1
      %p52 = por %p50, %p51
      %p53 = scmp.ne.s32.totalorder %s44, %s45
      %p54 = scmp.eq.s32.totalorder %s13, 0
      %p55 = por %p53, %p54
      %p56 = scmp.ne.s32.totalorder %s44, %s45
      %p57 = scmp.eq.s32.totalorder %s14, 1
      %p58 = por %p56, %p57
      %p60 = scmp.ne.s32.totalorder %s45, %s59
      %p61 = scmp.eq.s32.totalorder %s14, 0
      %p62 = por %p60, %p61
      %s63 = ssub.s32 %s8, %s15
      %p64 = scmp.eq.s32.totalorder %s63, 0
      %s66 = sadd.s32 %s65, 1
      %s67 = scalar_select %p64, %s65, %s66
      %p70 = pneg %p64
      %p71 = scmp.eq.s32.totalorder %s8, 1
      %p72 = por %p70, %p71
      %p73 = scmp.ne.s32.totalorder %s65, %s68
      %p74 = scmp.eq.s32.totalorder %s8, 0
      %p75 = por %p73, %p74
      %p76 = scmp.ne.s32.totalorder %s65, %s68
      %p77 = scmp.eq.s32.totalorder %s13, 1
      %p78 = por %p76, %p77
      %p79 = scmp.ne.s32.totalorder %s68, %s69
      %p80 = scmp.eq.s32.totalorder %s13, 0
      %p81 = por %p79, %p80
      %p82 = scmp.ne.s32.totalorder %s68, %s69
      %p83 = scmp.eq.s32.totalorder %s14, 1
      %p84 = por %p82, %p83
      %p86 = scmp.ne.s32.totalorder %s69, %s85
      %p87 = scmp.eq.s32.totalorder %s14, 0
      %p88 = por %p86, %p87
      %p89 = scmp.le.s32.totalorder 1, %s8
      %p90 = scmp.lt.s32.totalorder %s8, 3
      %p91 = pnand %p89, %p90
      %p92 = pneg %p91
      // Predicated region
      $region9: #{cell_embedder_forward.2} parent=5 // pred_check
        _
      $region10: #{cell_embedder_forward.2} parent=5 // pred_check_branch
        %94 = sbr.rel (%p91) target = $region12
      $region11: #{cell_embedder_forward.2} parent=5 // pred_region
        %s95 = ssub.s32 %s8, 1
        // Predicated region
        $region13: #{cell_embedder_forward.2} parent=11 // pred_check
          %p96 = pneg %p55
        $region14: #{cell_embedder_forward.2} parent=11 // pred_check_branch
          %98 = sbr.rel (%p96) target = $region16
        $region15: #{cell_embedder_forward.2} parent=11 // pred_region
          _
        $region16: #{cell_embedder_forward.2} parent=11 // pred_fallthru
          _
      $region12: #{cell_embedder_forward.2} parent=5 // pred_fallthru
        _
      %p99 = scmp.lt.s32.totalorder %s8, 2
      // Predicated region
      $region17: #{cell_embedder_forward.2} parent=5 // pred_check
        %p100 = pneg %p99
      $region18: #{cell_embedder_forward.2} parent=5 // pred_check_branch
        %102 = sbr.rel (%p100) target = $region20
      $region19: #{cell_embedder_forward.2} parent=5 // pred_region
        // Predicated region
        $region21: #{cell_embedder_forward.2} parent=19 // pred_check
          %p103 = pneg %p28
        $region22: #{cell_embedder_forward.2} parent=19 // pred_check_branch
          %105 = sbr.rel (%p103) target = $region24
        $region23: #{cell_embedder_forward.2} parent=19 // pred_region
          %s106 = sand.u32 %s18, 1
          %s107 = sand.u32 %s18, 1
          %s108 = smul.addr %s107, 192
          %s109 = scalar_lea.vmem [#allocation2], %s108
          %s110 = smul.u32 8, %s8
          %s111 = smul.addr %s110, 4
          %s112 = scalar_lea.vmem %s0, %s111
          // Predicated region
          $region25: #{cell_embedder_forward.2} parent=23 // pred_check
            _
          $region26: #{cell_embedder_forward.2} parent=23 // pred_check_branch
            %114 = sbr.rel (0) target = $region28
          $region27: #{cell_embedder_forward.2} parent=23 // pred_region
            // Predicated region
            $region29: #{cell_embedder_forward.2} parent=27 // pred_check
              _
            $region30: #{cell_embedder_forward.2} parent=27 // pred_check_branch
              %116 = sbr.rel target = $region32
            $region31: #{cell_embedder_forward.2} parent=27 // pred_region
              // Predicated region
              $region44: #{cell_embedder_forward.2} parent=31 // pred_check
                _
              $region45: #{cell_embedder_forward.2} parent=31 // pred_check_branch
                %225 = sbr.rel (0) target = $region47
              $region46: #{cell_embedder_forward.2} parent=31 // pred_region
                loop: start=0, step=1, limit=1
                $region48: #{cell_embedder_forward.2} parent=46 // loop_pre_header
                  _
                $region49: #{cell_embedder_forward.2} parent=46 // loop_header
                  %s227 = sphi 0, %s231
                  %p228 = scmp.ge.s32.totalorder %s227, 1
                  %s232 = sphi %s112, %s112
                  %s233 = sphi %s109, %s109
                $region50: #{cell_embedder_forward.2} parent=46 // loop_header_branch
                  %230 = sbr.rel (%p228) target = $region54
                $region51: #{cell_embedder_forward.2} parent=46 // loop_body
                  _
                $region52: #{cell_embedder_forward.2} parent=46 // loop_footer
                  %s231 = sadd.s32 1, %s227
                $region53: #{cell_embedder_forward.2} parent=46 // loop_footer_branch
                  %226 = sbr.rel target = $region49
                $region54: #{cell_embedder_forward.2} parent=46 // loop_exit
                  _
                loop: start=0, step=1, limit=1
                $region55: #{cell_embedder_forward.2} parent=46 // loop_pre_header
                  _
                $region56: #{cell_embedder_forward.2} parent=46 // loop_header
                  %s236 = sphi 0, %s240
                  %p237 = scmp.ge.s32.totalorder %s236, 1
                  %s241 = sphi %s112, %s112
                  %s242 = sphi %s109, %s109
                $region57: #{cell_embedder_forward.2} parent=46 // loop_header_branch
                  %239 = sbr.rel (%p237) target = $region61
                $region58: #{cell_embedder_forward.2} parent=46 // loop_body
                  %v243 = vld [vmem:[%s241] sm:$0xf]
                  %244 = vst [vmem:[%s242] sm:$0xf] %v243
                  %v245 = vld [vmem:[%s241 + $0x4] sm:$0xf]
                  %246 = vst [vmem:[%s242 + $0x4] sm:$0xf] %v245
                  %v247 = vld [vmem:[%s241 + $0x8] sm:$0xf]
                  %248 = vst [vmem:[%s242 + $0x8] sm:$0xf] %v247
                  %v249 = vld [vmem:[%s241 + $0xc] sm:$0xf]
                  %250 = vst [vmem:[%s242 + $0xc] sm:$0xf] %v249
                  %v251 = vld [vmem:[%s241 + $0x10] sm:$0xf]
                  %252 = vst [vmem:[%s242 + $0x10] sm:$0xf] %v251
                  %v253 = vld [vmem:[%s241 + $0x14] sm:$0xf]
                  %254 = vst [vmem:[%s242 + $0x14] sm:$0xf] %v253
                  %v255 = vld [vmem:[%s241 + $0x18] sm:$0xf]
                  %256 = vst [vmem:[%s242 + $0x18] sm:$0xf] %v255
                  %v257 = vld [vmem:[%s241 + $0x1c] sm:$0xf]
                  %258 = vst [vmem:[%s242 + $0x1c] sm:$0xf] %v257
                  %v259 = vld [vmem:[%s241 + $0x40] sm:$0xf]
                  %260 = vst [vmem:[%s242 + $0x20] sm:$0xf] %v259
                  %v261 = vld [vmem:[%s241 + $0x44] sm:$0xf]
                  %262 = vst [vmem:[%s242 + $0x24] sm:$0xf] %v261
                  %v263 = vld [vmem:[%s241 + $0x48] sm:$0xf]
                  %264 = vst [vmem:[%s242 + $0x28] sm:$0xf] %v263
                  %v265 = vld [vmem:[%s241 + $0x4c] sm:$0xf]
                  %266 = vst [vmem:[%s242 + $0x2c] sm:$0xf] %v265
                  %v267 = vld [vmem:[%s241 + $0x50] sm:$0xf]
                  %268 = vst [vmem:[%s242 + $0x30] sm:$0xf] %v267
                  %v269 = vld [vmem:[%s241 + $0x54] sm:$0xf]
                  %270 = vst [vmem:[%s242 + $0x34] sm:$0xf] %v269
                  %v271 = vld [vmem:[%s241 + $0x58] sm:$0xf]
                  %272 = vst [vmem:[%s242 + $0x38] sm:$0xf] %v271
                  %v273 = vld [vmem:[%s241 + $0x5c] sm:$0xf]
                  %274 = vst [vmem:[%s242 + $0x3c] sm:$0xf] %v273
                  %v275 = vld [vmem:[%s241 + $0x80] sm:$0xf]
                  %276 = vst [vmem:[%s242 + $0x40] sm:$0xf] %v275
                  %v277 = vld [vmem:[%s241 + $0x84] sm:$0xf]
                  %278 = vst [vmem:[%s242 + $0x44] sm:$0xf] %v277
                  %v279 = vld [vmem:[%s241 + $0x88] sm:$0xf]
                  %280 = vst [vmem:[%s242 + $0x48] sm:$0xf] %v279
                  %v281 = vld [vmem:[%s241 + $0x8c] sm:$0xf]
                  %282 = vst [vmem:[%s242 + $0x4c] sm:$0xf] %v281
                  %v283 = vld [vmem:[%s241 + $0x90] sm:$0xf]
                  %284 = vst [vmem:[%s242 + $0x50] sm:$0xf] %v283
                  %v285 = vld [vmem:[%s241 + $0x94] sm:$0xf]
                  %286 = vst [vmem:[%s242 + $0x54] sm:$0xf] %v285
                  %v287 = vld [vmem:[%s241 + $0x98] sm:$0xf]
                  %288 = vst [vmem:[%s242 + $0x58] sm:$0xf] %v287
                  %v289 = vld [vmem:[%s241 + $0x9c] sm:$0xf]
                  %290 = vst [vmem:[%s242 + $0x5c] sm:$0xf] %v289
                  %v291 = vld [vmem:[%s241 + $0xc0] sm:$0xf]
                  %292 = vst [vmem:[%s242 + $0x60] sm:$0xf] %v291
                  %v293 = vld [vmem:[%s241 + $0xc4] sm:$0xf]
                  %294 = vst [vmem:[%s242 + $0x64] sm:$0xf] %v293
                  %v295 = vld [vmem:[%s241 + $0xc8] sm:$0xf]
                  %296 = vst [vmem:[%s242 + $0x68] sm:$0xf] %v295
                  %v297 = vld [vmem:[%s241 + $0xcc] sm:$0xf]
                  %298 = vst [vmem:[%s242 + $0x6c] sm:$0xf] %v297
                  %v299 = vld [vmem:[%s241 + $0xd0] sm:$0xf]
                  %300 = vst [vmem:[%s242 + $0x70] sm:$0xf] %v299
                  %v301 = vld [vmem:[%s241 + $0xd4] sm:$0xf]
                  %302 = vst [vmem:[%s242 + $0x74] sm:$0xf] %v301
                  %v303 = vld [vmem:[%s241 + $0xd8] sm:$0xf]
                  %304 = vst [vmem:[%s242 + $0x78] sm:$0xf] %v303
                  %v305 = vld [vmem:[%s241 + $0xdc] sm:$0xf]
                  %306 = vst [vmem:[%s242 + $0x7c] sm:$0xf] %v305
                  %v307 = vld [vmem:[%s241 + $0x100] sm:$0xf]
                  %308 = vst [vmem:[%s242 + $0x80] sm:$0xf] %v307
                  %v309 = vld [vmem:[%s241 + $0x104] sm:$0xf]
                  %310 = vst [vmem:[%s242 + $0x84] sm:$0xf] %v309
                  %v311 = vld [vmem:[%s241 + $0x108] sm:$0xf]
                  %312 = vst [vmem:[%s242 + $0x88] sm:$0xf] %v311
                  %v313 = vld [vmem:[%s241 + $0x10c] sm:$0xf]
                  %314 = vst [vmem:[%s242 + $0x8c] sm:$0xf] %v313
                  %v315 = vld [vmem:[%s241 + $0x110] sm:$0xf]
                  %316 = vst [vmem:[%s242 + $0x90] sm:$0xf] %v315
                  %v317 = vld [vmem:[%s241 + $0x114] sm:$0xf]
                  %318 = vst [vmem:[%s242 + $0x94] sm:$0xf] %v317
                  %v319 = vld [vmem:[%s241 + $0x118] sm:$0xf]
                  %320 = vst [vmem:[%s242 + $0x98] sm:$0xf] %v319
                  %v321 = vld [vmem:[%s241 + $0x11c] sm:$0xf]
                  %322 = vst [vmem:[%s242 + $0x9c] sm:$0xf] %v321
                  %v323 = vld [vmem:[%s241 + $0x140] sm:$0xf]
                  %324 = vst [vmem:[%s242 + $0xa0] sm:$0xf] %v323
                  %v325 = vld [vmem:[%s241 + $0x144] sm:$0xf]
                  %326 = vst [vmem:[%s242 + $0xa4] sm:$0xf] %v325
                  %v327 = vld [vmem:[%s241 + $0x148] sm:$0xf]
                  %328 = vst [vmem:[%s242 + $0xa8] sm:$0xf] %v327
                  %v329 = vld [vmem:[%s241 + $0x14c] sm:$0xf]
                  %330 = vst [vmem:[%s242 + $0xac] sm:$0xf] %v329
                  %v331 = vld [vmem:[%s241 + $0x150] sm:$0xf]
                  %332 = vst [vmem:[%s242 + $0xb0] sm:$0xf] %v331
                  %v333 = vld [vmem:[%s241 + $0x154] sm:$0xf]
                  %334 = vst [vmem:[%s242 + $0xb4] sm:$0xf] %v333
                  %v335 = vld [vmem:[%s241 + $0x158] sm:$0xf]
                  %336 = vst [vmem:[%s242 + $0xb8] sm:$0xf] %v335
                  %v337 = vld [vmem:[%s241 + $0x15c] sm:$0xf]
                  %338 = vst [vmem:[%s242 + $0xbc] sm:$0xf] %v337
                $region59: #{cell_embedder_forward.2} parent=46 // loop_footer
                  %s240 = sadd.s32 1, %s236
                $region60: #{cell_embedder_forward.2} parent=46 // loop_footer_branch
                  %235 = sbr.rel target = $region56
                $region61: #{cell_embedder_forward.2} parent=46 // loop_exit
                  _
              $region47: #{cell_embedder_forward.2} parent=31 // pred_fallthru
                _
            $region32: #{cell_embedder_forward.2} parent=27 // pred_fallthru
              _
            // Predicated region
            $region33: #{cell_embedder_forward.2} parent=27 // pred_check
              _
            $region34: #{cell_embedder_forward.2} parent=27 // pred_check_branch
              %118 = sbr.rel (0) target = $region36
            $region35: #{cell_embedder_forward.2} parent=27 // pred_region
              loop: start=0, step=1, limit=1
              $region37: #{cell_embedder_forward.2} parent=35 // loop_pre_header
                _
              $region38: #{cell_embedder_forward.2} parent=35 // loop_header
                %s121 = sphi 0, %s125
                %p122 = scmp.ge.s32.totalorder %s121, 1
                %s126 = sphi %s112, %s112
                %s127 = sphi %s109, %s109
              $region39: #{cell_embedder_forward.2} parent=35 // loop_header_branch
                %124 = sbr.rel (%p122) target = $region43
              $region40: #{cell_embedder_forward.2} parent=35 // loop_body
                %v128 = vld [vmem:[%s126] sm:$0xf]
                %129 = vst [vmem:[%s127] sm:$0xf] %v128
                %v130 = vld [vmem:[%s126 + $0x4] sm:$0xf]
                %131 = vst [vmem:[%s127 + $0x4] sm:$0xf] %v130
                %v132 = vld [vmem:[%s126 + $0x8] sm:$0xf]
                %133 = vst [vmem:[%s127 + $0x8] sm:$0xf] %v132
                %v134 = vld [vmem:[%s126 + $0xc] sm:$0xf]
                %135 = vst [vmem:[%s127 + $0xc] sm:$0xf] %v134
                %v136 = vld [vmem:[%s126 + $0x10] sm:$0xf]
                %137 = vst [vmem:[%s127 + $0x10] sm:$0xf] %v136
                %v138 = vld [vmem:[%s126 + $0x14] sm:$0xf]
                %139 = vst [vmem:[%s127 + $0x14] sm:$0xf] %v138
                %v140 = vld [vmem:[%s126 + $0x18] sm:$0xf]
                %141 = vst [vmem:[%s127 + $0x18] sm:$0xf] %v140
                %v142 = vld [vmem:[%s126 + $0x1c] sm:$0xf]
                %143 = vst [vmem:[%s127 + $0x1c] sm:$0xf] %v142
                %v144 = vld [vmem:[%s126 + $0x40] sm:$0xf]
                %145 = vst [vmem:[%s127 + $0x20] sm:$0xf] %v144
                %v146 = vld [vmem:[%s126 + $0x44] sm:$0xf]
                %147 = vst [vmem:[%s127 + $0x24] sm:$0xf] %v146
                %v148 = vld [vmem:[%s126 + $0x48] sm:$0xf]
                %149 = vst [vmem:[%s127 + $0x28] sm:$0xf] %v148
                %v150 = vld [vmem:[%s126 + $0x4c] sm:$0xf]
                %151 = vst [vmem:[%s127 + $0x2c] sm:$0xf] %v150
                %v152 = vld [vmem:[%s126 + $0x50] sm:$0xf]
                %153 = vst [vmem:[%s127 + $0x30] sm:$0xf] %v152
                %v154 = vld [vmem:[%s126 + $0x54] sm:$0xf]
                %155 = vst [vmem:[%s127 + $0x34] sm:$0xf] %v154
                %v156 = vld [vmem:[%s126 + $0x58] sm:$0xf]
                %157 = vst [vmem:[%s127 + $0x38] sm:$0xf] %v156
                %v158 = vld [vmem:[%s126 + $0x5c] sm:$0xf]
                %159 = vst [vmem:[%s127 + $0x3c] sm:$0xf] %v158
                %v160 = vld [vmem:[%s126 + $0x80] sm:$0xf]
                %161 = vst [vmem:[%s127 + $0x40] sm:$0xf] %v160
                %v162 = vld [vmem:[%s126 + $0x84] sm:$0xf]
                %163 = vst [vmem:[%s127 + $0x44] sm:$0xf] %v162
                %v164 = vld [vmem:[%s126 + $0x88] sm:$0xf]
                %165 = vst [vmem:[%s127 + $0x48] sm:$0xf] %v164
                %v166 = vld [vmem:[%s126 + $0x8c] sm:$0xf]
                %167 = vst [vmem:[%s127 + $0x4c] sm:$0xf] %v166
                %v168 = vld [vmem:[%s126 + $0x90] sm:$0xf]
                %169 = vst [vmem:[%s127 + $0x50] sm:$0xf] %v168
                %v170 = vld [vmem:[%s126 + $0x94] sm:$0xf]
                %171 = vst [vmem:[%s127 + $0x54] sm:$0xf] %v170
                %v172 = vld [vmem:[%s126 + $0x98] sm:$0xf]
                %173 = vst [vmem:[%s127 + $0x58] sm:$0xf] %v172
                %v174 = vld [vmem:[%s126 + $0x9c] sm:$0xf]
                %175 = vst [vmem:[%s127 + $0x5c] sm:$0xf] %v174
                %v176 = vld [vmem:[%s126 + $0xc0] sm:$0xf]
                %177 = vst [vmem:[%s127 + $0x60] sm:$0xf] %v176
                %v178 = vld [vmem:[%s126 + $0xc4] sm:$0xf]
                %179 = vst [vmem:[%s127 + $0x64] sm:$0xf] %v178
                %v180 = vld [vmem:[%s126 + $0xc8] sm:$0xf]
                %181 = vst [vmem:[%s127 + $0x68] sm:$0xf] %v180
                %v182 = vld [vmem:[%s126 + $0xcc] sm:$0xf]
                %183 = vst [vmem:[%s127 + $0x6c] sm:$0xf] %v182
                %v184 = vld [vmem:[%s126 + $0xd0] sm:$0xf]
                %185 = vst [vmem:[%s127 + $0x70] sm:$0xf] %v184
                %v186 = vld [vmem:[%s126 + $0xd4] sm:$0xf]
                %187 = vst [vmem:[%s127 + $0x74] sm:$0xf] %v186
                %v188 = vld [vmem:[%s126 + $0xd8] sm:$0xf]
                %189 = vst [vmem:[%s127 + $0x78] sm:$0xf] %v188
                %v190 = vld [vmem:[%s126 + $0xdc] sm:$0xf]
                %191 = vst [vmem:[%s127 + $0x7c] sm:$0xf] %v190
                %v192 = vld [vmem:[%s126 + $0x100] sm:$0xf]
                %193 = vst [vmem:[%s127 + $0x80] sm:$0xf] %v192
                %v194 = vld [vmem:[%s126 + $0x104] sm:$0xf]
                %195 = vst [vmem:[%s127 + $0x84] sm:$0xf] %v194
                %v196 = vld [vmem:[%s126 + $0x108] sm:$0xf]
                %197 = vst [vmem:[%s127 + $0x88] sm:$0xf] %v196
                %v198 = vld [vmem:[%s126 + $0x10c] sm:$0xf]
                %199 = vst [vmem:[%s127 + $0x8c] sm:$0xf] %v198
                %v200 = vld [vmem:[%s126 + $0x110] sm:$0xf]
                %201 = vst [vmem:[%s127 + $0x90] sm:$0xf] %v200
                %v202 = vld [vmem:[%s126 + $0x114] sm:$0xf]
                %203 = vst [vmem:[%s127 + $0x94] sm:$0xf] %v202
                %v204 = vld [vmem:[%s126 + $0x118] sm:$0xf]
                %205 = vst [vmem:[%s127 + $0x98] sm:$0xf] %v204
                %v206 = vld [vmem:[%s126 + $0x11c] sm:$0xf]
                %207 = vst [vmem:[%s127 + $0x9c] sm:$0xf] %v206
                %v208 = vld [vmem:[%s126 + $0x140] sm:$0xf]
                %209 = vst [vmem:[%s127 + $0xa0] sm:$0xf] %v208
                %v210 = vld [vmem:[%s126 + $0x144] sm:$0xf]
                %211 = vst [vmem:[%s127 + $0xa4] sm:$0xf] %v210
                %v212 = vld [vmem:[%s126 + $0x148] sm:$0xf]
                %213 = vst [vmem:[%s127 + $0xa8] sm:$0xf] %v212
                %v214 = vld [vmem:[%s126 + $0x14c] sm:$0xf]
                %215 = vst [vmem:[%s127 + $0xac] sm:$0xf] %v214
                %v216 = vld [vmem:[%s126 + $0x150] sm:$0xf]
                %217 = vst [vmem:[%s127 + $0xb0] sm:$0xf] %v216
                %v218 = vld [vmem:[%s126 + $0x154] sm:$0xf]
                %219 = vst [vmem:[%s127 + $0xb4] sm:$0xf] %v218
                %v220 = vld [vmem:[%s126 + $0x158] sm:$0xf]
                %221 = vst [vmem:[%s127 + $0xb8] sm:$0xf] %v220
                %v222 = vld [vmem:[%s126 + $0x15c] sm:$0xf]
                %223 = vst [vmem:[%s127 + $0xbc] sm:$0xf] %v222
              $region41: #{cell_embedder_forward.2} parent=35 // loop_footer
                %s125 = sadd.s32 1, %s121
              $region42: #{cell_embedder_forward.2} parent=35 // loop_footer_branch
                %120 = sbr.rel target = $region38
              $region43: #{cell_embedder_forward.2} parent=35 // loop_exit
                _
            $region36: #{cell_embedder_forward.2} parent=27 // pred_fallthru
              _
          $region28: #{cell_embedder_forward.2} parent=23 // pred_fallthru
            _
          %339 = vnop
        $region24: #{cell_embedder_forward.2} parent=19 // pred_fallthru
          _
      $region20: #{cell_embedder_forward.2} parent=5 // pred_fallthru
        _
      %p340 = scmp.le.s32.totalorder 1, %s8
      %p341 = scmp.lt.s32.totalorder %s8, 3
      %p342 = pnand %p340, %p341
      %p343 = pneg %p342
      // Predicated region
      $region62: #{cell_embedder_forward.2} parent=5 // pred_check
        _
      $region63: #{cell_embedder_forward.2} parent=5 // pred_check_branch
        %345 = sbr.rel (%p342) target = $region65
      $region64: #{cell_embedder_forward.2} parent=5 // pred_region
        %s346 = ssub.s32 %s8, 1
        %s347 = sand.u32 %s21, 1
        %s348 = sand.u32 %s21, 1
        %s349 = smul.addr %s348, 192
        %s350 = scalar_lea.vmem [#allocation2], %s349
        // Predicated region
        $region66: #{cell_embedder_forward.2} parent=64 // pred_check
          %p351 = pneg %p34
        $region67: #{cell_embedder_forward.2} parent=64 // pred_check_branch
          %353 = sbr.rel (%p351) target = $region69
        $region68: #{cell_embedder_forward.2} parent=64 // pred_region
          _
        $region69: #{cell_embedder_forward.2} parent=64 // pred_fallthru
          _
        %s354 = sand.u32 %s21, 1
        %s355 = sand.u32 %s21, 1
        %s356 = smul.addr %s355, 192
        %s357 = scalar_lea.vmem [#allocation2], %s356
        %p358 = pneg %p34
        %p359 = pneg %p31
        %p360 = pneg %p55
        %p361 = pneg %p52
        %p362 = pneg %p81
        %p363 = pneg %p78
        %s364 = smul.u32 8, %s13
        %p365 = scmp.lt.s32.totalorder %s364, 15
        %s366 = scalar_select %p365, %s364, 15
        %s367 = smul.addr %s366, 4
        %s368 = scalar_lea.vmem %s2, %s367
        %s369 = smul.u32 8, %s13
        %s370 = smul.u32 8, %s13
        %p371 = scmp.lt.s32.totalorder %s370, 15
        %s372 = scalar_select %p371, %s370, 15
        %s373 = smul.addr %s372, 4
        %s374 = scalar_lea.vmem %s2, %s373
        %s375 = smul.u32 8, %s13
        %v377 = vld [vmem:[%s350] sm:$0xf]
        %v378 = vld [vmem:[%s350 + $0x4] sm:$0xf]
        %v379 = vld [vmem:[%s350 + $0x8] sm:$0xf]
        %v380 = vld [vmem:[%s350 + $0xc] sm:$0xf]
        %v381 = vld [vmem:[%s350 + $0x10] sm:$0xf]
        %v382 = vld [vmem:[%s350 + $0x14] sm:$0xf]
        %v383 = vld [vmem:[%s350 + $0x18] sm:$0xf]
        %v384 = vld [vmem:[%s350 + $0x1c] sm:$0xf]
        %v385 = vld [vmem:[%s350 + $0x20] sm:$0xf]
        %v386 = vld [vmem:[%s350 + $0x24] sm:$0xf]
        %v387 = vld [vmem:[%s350 + $0x28] sm:$0xf]
        %v388 = vld [vmem:[%s350 + $0x2c] sm:$0xf]
        %v389 = vld [vmem:[%s350 + $0x30] sm:$0xf]
        %v390 = vld [vmem:[%s350 + $0x34] sm:$0xf]
        %v391 = vld [vmem:[%s350 + $0x38] sm:$0xf]
        %v392 = vld [vmem:[%s350 + $0x3c] sm:$0xf]
        %v393 = vld [vmem:[%s350 + $0x40] sm:$0xf]
        %v394 = vld [vmem:[%s350 + $0x44] sm:$0xf]
        %v395 = vld [vmem:[%s350 + $0x48] sm:$0xf]
        %v396 = vld [vmem:[%s350 + $0x4c] sm:$0xf]
        %v397 = vld [vmem:[%s350 + $0x50] sm:$0xf]
        %v398 = vld [vmem:[%s350 + $0x54] sm:$0xf]
        %v399 = vld [vmem:[%s350 + $0x58] sm:$0xf]
        %v400 = vld [vmem:[%s350 + $0x5c] sm:$0xf]
        %v401 = vld [vmem:[%s350 + $0x60] sm:$0xf]
        %v402 = vld [vmem:[%s350 + $0x64] sm:$0xf]
        %v403 = vld [vmem:[%s350 + $0x68] sm:$0xf]
        %v404 = vld [vmem:[%s350 + $0x6c] sm:$0xf]
        %v405 = vld [vmem:[%s350 + $0x70] sm:$0xf]
        %v406 = vld [vmem:[%s350 + $0x74] sm:$0xf]
        %v407 = vld [vmem:[%s350 + $0x78] sm:$0xf]
        %v408 = vld [vmem:[%s350 + $0x7c] sm:$0xf]
        %v409 = vld [vmem:[%s350 + $0x80] sm:$0xf]
        %v410 = vld [vmem:[%s350 + $0x84] sm:$0xf]
        %v411 = vld [vmem:[%s350 + $0x88] sm:$0xf]
        %v412 = vld [vmem:[%s350 + $0x8c] sm:$0xf]
        %v413 = vld [vmem:[%s350 + $0x90] sm:$0xf]
        %v414 = vld [vmem:[%s350 + $0x94] sm:$0xf]
        %v415 = vld [vmem:[%s350 + $0x98] sm:$0xf]
        %v416 = vld [vmem:[%s350 + $0x9c] sm:$0xf]
        %v417 = vld [vmem:[%s350 + $0xa0] sm:$0xf]
        %v418 = vld [vmem:[%s350 + $0xa4] sm:$0xf]
        %v419 = vld [vmem:[%s350 + $0xa8] sm:$0xf]
        %v420 = vld [vmem:[%s350 + $0xac] sm:$0xf]
        %v421 = vld [vmem:[%s350 + $0xb0] sm:$0xf]
        %v422 = vld [vmem:[%s350 + $0xb4] sm:$0xf]
        %v423 = vld [vmem:[%s350 + $0xb8] sm:$0xf]
        %v424 = vld [vmem:[%s350 + $0xbc] sm:$0xf]
        %v425 = vld [vmem:[%s1] sm:$0xf]
        %v426 = vld [vmem:[%s1 + $0x4] sm:$0xf]
        %v427 = vld [vmem:[%s1 + $0x8] sm:$0xf]
        %v428 = vld [vmem:[%s1 + $0xc] sm:$0xf]
        %v429 = vld [vmem:[%s1 + $0x10] sm:$0xf]
        %v430 = vld [vmem:[%s1 + $0x14] sm:$0xf]
        %v431 = vld [vmem:[%s1 + $0x18] sm:$0xf]
        %v432 = vld [vmem:[%s1 + $0x1c] sm:$0xf]
        %v433 = vld [vmem:[%s1 + $0x20] sm:$0xf]
        %v434 = vld [vmem:[%s1 + $0x24] sm:$0xf]
        %v435 = vld [vmem:[%s1 + $0x28] sm:$0xf]
        %v436 = vld [vmem:[%s1 + $0x2c] sm:$0xf]
        %v437 = vld [vmem:[%s1 + $0x30] sm:$0xf]
        %v438 = vld [vmem:[%s1 + $0x34] sm:$0xf]
        %v439 = vld [vmem:[%s1 + $0x38] sm:$0xf]
        %v440 = vld [vmem:[%s1 + $0x3c] sm:$0xf]
        %v489 = vunpack.c.l.b16 %v377
        %v490 = vunpack.c.l.b16 %v378
        %v491 = vunpack.c.l.b16 %v379
        %v492 = vunpack.c.l.b16 %v380
        %v493 = vunpack.c.l.b16 %v381
        %v494 = vunpack.c.l.b16 %v382
        %v495 = vunpack.c.l.b16 %v383
        %v496 = vunpack.c.l.b16 %v384
        %v497 = vunpack.c.l.b16 %v385
        %v498 = vunpack.c.l.b16 %v386
        %v499 = vunpack.c.l.b16 %v387
        %v500 = vunpack.c.l.b16 %v388
        %v501 = vunpack.c.l.b16 %v389
        %v502 = vunpack.c.l.b16 %v390
        %v503 = vunpack.c.l.b16 %v391
        %v504 = vunpack.c.l.b16 %v392
        %v505 = vunpack.c.l.b16 %v393
        %v506 = vunpack.c.l.b16 %v394
        %v507 = vunpack.c.l.b16 %v395
        %v508 = vunpack.c.l.b16 %v396
        %v509 = vunpack.c.l.b16 %v397
        %v510 = vunpack.c.l.b16 %v398
        %v511 = vunpack.c.l.b16 %v399
        %v512 = vunpack.c.l.b16 %v400
        %v513 = vunpack.c.l.b16 %v401
        %v514 = vunpack.c.l.b16 %v402
        %v515 = vunpack.c.l.b16 %v403
        %v516 = vunpack.c.l.b16 %v404
        %v517 = vunpack.c.l.b16 %v405
        %v518 = vunpack.c.l.b16 %v406
        %v519 = vunpack.c.l.b16 %v407
        %v520 = vunpack.c.l.b16 %v408
        %v521 = vunpack.c.l.b16 %v409
        %v522 = vunpack.c.l.b16 %v410
        %v523 = vunpack.c.l.b16 %v411
        %v524 = vunpack.c.l.b16 %v412
        %v525 = vunpack.c.l.b16 %v413
        %v526 = vunpack.c.l.b16 %v414
        %v527 = vunpack.c.l.b16 %v415
        %v528 = vunpack.c.l.b16 %v416
        %v529 = vunpack.c.l.b16 %v417
        %v530 = vunpack.c.l.b16 %v418
        %v531 = vunpack.c.l.b16 %v419
        %v532 = vunpack.c.l.b16 %v420
        %v533 = vunpack.c.l.b16 %v421
        %v534 = vunpack.c.l.b16 %v422
        %v535 = vunpack.c.l.b16 %v423
        %v536 = vunpack.c.l.b16 %v424
        %v537 = vpack.c.b16 %v490, %v489
        %v538 = vpack.c.b16 %v492, %v491
        %v539 = vpack.c.b16 %v494, %v493
        %v540 = vpack.c.b16 %v496, %v495
        %v541 = vpack.c.b16 %v498, %v497
        %v542 = vpack.c.b16 %v500, %v499
        %v543 = vpack.c.b16 %v502, %v501
        %v544 = vpack.c.b16 %v504, %v503
        %v545 = vpack.c.b16 %v506, %v505
        %v546 = vpack.c.b16 %v508, %v507
        %v547 = vpack.c.b16 %v510, %v509
        %v548 = vpack.c.b16 %v512, %v511
        %v549 = vpack.c.b16 %v514, %v513
        %v550 = vpack.c.b16 %v516, %v515
        %v551 = vpack.c.b16 %v518, %v517
        %v552 = vpack.c.b16 %v520, %v519
        %v553 = vpack.c.b16 %v522, %v521
        %v554 = vpack.c.b16 %v524, %v523
        %v555 = vpack.c.b16 %v526, %v525
        %v556 = vpack.c.b16 %v528, %v527
        %v557 = vpack.c.b16 %v530, %v529
        %v558 = vpack.c.b16 %v532, %v531
        %v559 = vpack.c.b16 %v534, %v533
        %v560 = vpack.c.b16 %v536, %v535
        %v601 = vunpack.c.l.b16 %v425
        %v602 = vunpack.c.l.b16 %v426
        %v603 = vunpack.c.l.b16 %v427
        %v604 = vunpack.c.l.b16 %v428
        %v605 = vunpack.c.l.b16 %v429
        %v606 = vunpack.c.l.b16 %v430
        %v607 = vunpack.c.l.b16 %v431
        %v608 = vunpack.c.l.b16 %v432
        %v609 = vunpack.c.l.b16 %v433
        %v610 = vunpack.c.l.b16 %v434
        %v611 = vunpack.c.l.b16 %v435
        %v612 = vunpack.c.l.b16 %v436
        %v613 = vunpack.c.l.b16 %v437
        %v614 = vunpack.c.l.b16 %v438
        %v615 = vunpack.c.l.b16 %v439
        %v616 = vunpack.c.l.b16 %v440
        %v617 = vpack.c.b16 %v602, %v601
        %v618 = vpack.c.b16 %v604, %v603
        %v619 = vpack.c.b16 %v606, %v605
        %v620 = vpack.c.b16 %v608, %v607
        %v621 = vpack.c.b16 %v610, %v609
        %v622 = vpack.c.b16 %v612, %v611
        %v623 = vpack.c.b16 %v614, %v613
        %v624 = vpack.c.b16 %v616, %v615
        %633 = vmatprep.subr.bf16.mxu0 0
        %634 = vmatpush1.bf16.msra.mxu0 %v617
        %635 = vmatprep.subr.bf16.mxu0 0
        %636 = vmatpush1.bf16.msra.mxu0 %v618
        %637 = vmatprep.subr.bf16.mxu0 0
        %638 = vmatpush1.bf16.msra.mxu0 %v619
        %639 = vmatprep.subr.bf16.mxu0 0
        %640 = vmatpush1.bf16.msra.mxu0 %v620
        %641 = vmatprep.subr.bf16.mxu0 0
        %642 = vmatpush1.bf16.msra.mxu0 %v621
        %643 = vmatprep.subr.bf16.mxu0 0
        %644 = vmatpush1.bf16.msra.mxu0 %v622
        %645 = vmatprep.subr.bf16.mxu0 0
        %646 = vmatpush1.bf16.msra.mxu0 %v623
        %647 = vmatprep.subr.bf16.mxu0 0
        %648 = vmatpush1.bf16.msra.mxu0 %v624
        %649 = vmatprep.subr.bf16.mxu0 0
        %650 = vmatpush1.bf16.msra.mxu0 0
        %651 = vmatprep.subr.bf16.mxu0 0
        %652 = vmatpush1.bf16.msra.mxu0 0
        %653 = vmatprep.subr.bf16.mxu0 0
        %654 = vmatpush1.bf16.msra.mxu0 0
        %655 = vmatprep.subr.bf16.mxu0 0
        %656 = vmatpush1.bf16.msra.mxu0 0
        %657 = vmatprep.subr.bf16.mxu0 0
        %658 = vmatpush1.bf16.msra.mxu0 0
        %659 = vmatprep.subr.bf16.mxu0 0
        %660 = vmatpush1.bf16.msra.mxu0 0
        %661 = vmatprep.subr.bf16.mxu0 0
        %662 = vmatpush1.bf16.msra.mxu0 0
        %663 = vmatprep.subr.bf16.mxu0 0
        %664 = vmatpush1.bf16.msra.mxu0 0
        %665 = vmatprep.mubr.bf16.mxu0 0
        %666 = vmatmul.mubr.bf16.gmra.mrb[0].mxu0 %v537
        %v667 = vpop.f32.mrb[0].mxu0
        %v668 = vadd.f32 0.0, %v667
        %v669 = vpop.f32.mrb[0].mxu0
        %v670 = vpop.f32.mrb[0].mxu0
        %v671 = vadd.f32 0.0, %v670
        %v672 = vpop.f32.mrb[0].mxu0
        %673 = vmatprep.mubr.bf16.mxu0 0
        %674 = vmatmul.mubr.bf16.gmra.mrb[0].mxu0 %v538
        %v675 = vpop.f32.mrb[0].mxu0
        %v676 = vadd.f32 0.0, %v675
        %v677 = vpop.f32.mrb[0].mxu0
        %v678 = vpop.f32.mrb[0].mxu0
        %v679 = vadd.f32 0.0, %v678
        %v680 = vpop.f32.mrb[0].mxu0
        %681 = vmatprep.mubr.bf16.mxu0 0
        %682 = vmatmul.mubr.bf16.gmra.mrb[0].mxu0 %v539
        %v683 = vpop.f32.mrb[0].mxu0
        %v684 = vadd.f32 0.0, %v683
        %v685 = vpop.f32.mrb[0].mxu0
        %v686 = vpop.f32.mrb[0].mxu0
        %v687 = vadd.f32 0.0, %v686
        %v688 = vpop.f32.mrb[0].mxu0
        %689 = vmatprep.mubr.bf16.mxu0 0
        %690 = vmatmul.mubr.bf16.gmra.mrb[0].mxu0 %v540
        %v691 = vpop.f32.mrb[0].mxu0
        %v692 = vadd.f32 0.0, %v691
        %v693 = vpop.f32.mrb[0].mxu0
        %v694 = vpop.f32.mrb[0].mxu0
        %v695 = vadd.f32 0.0, %v694
        %v696 = vpop.f32.mrb[0].mxu0
        %697 = vmatprep.mubr.bf16.mxu0 0
        %698 = vmatmul.mubr.bf16.gmra.mrb[0].mxu0 %v541
        %v699 = vpop.f32.mrb[0].mxu0
        %v700 = vadd.f32 0.0, %v699
        %v701 = vpop.f32.mrb[0].mxu0
        %v702 = vpop.f32.mrb[0].mxu0
        %v703 = vadd.f32 0.0, %v702
        %v704 = vpop.f32.mrb[0].mxu0
        %705 = vmatprep.mubr.bf16.mxu0 0
        %706 = vmatmul.mubr.bf16.gmra.mrb[0].mxu0 %v542
        %v707 = vpop.f32.mrb[0].mxu0
        %v708 = vadd.f32 0.0, %v707
        %v709 = vpop.f32.mrb[0].mxu0
        %v710 = vpop.f32.mrb[0].mxu0
        %v711 = vadd.f32 0.0, %v710
        %v712 = vpop.f32.mrb[0].mxu0
        %713 = vmatprep.mubr.bf16.mxu0 0
        %714 = vmatmul.mubr.bf16.gmra.mrb[0].mxu0 %v543
        %v715 = vpop.f32.mrb[0].mxu0
        %v716 = vadd.f32 0.0, %v715
        %v717 = vpop.f32.mrb[0].mxu0
        %v718 = vpop.f32.mrb[0].mxu0
        %v719 = vadd.f32 0.0, %v718
        %v720 = vpop.f32.mrb[0].mxu0
        %721 = vmatprep.mubr.bf16.mxu0 0
        %722 = vmatmul.mubr.bf16.gmra.mrb[0].mxu0 %v544
        %v723 = vpop.f32.mrb[0].mxu0
        %v724 = vadd.f32 0.0, %v723
        %v725 = vpop.f32.mrb[0].mxu0
        %v726 = vpop.f32.mrb[0].mxu0
        %v727 = vadd.f32 0.0, %v726
        %v728 = vpop.f32.mrb[0].mxu0
        %729 = vmatprep.mubr.bf16.mxu0 0
        %730 = vmatmul.mubr.bf16.gmra.mrb[0].mxu0 %v545
        %v731 = vpop.f32.mrb[0].mxu0
        %v732 = vadd.f32 0.0, %v731
        %v733 = vpop.f32.mrb[0].mxu0
        %v734 = vpop.f32.mrb[0].mxu0
        %v735 = vadd.f32 0.0, %v734
        %v736 = vpop.f32.mrb[0].mxu0
        %737 = vmatprep.mubr.bf16.mxu0 0
        %738 = vmatmul.mubr.bf16.gmra.mrb[0].mxu0 %v546
        %v739 = vpop.f32.mrb[0].mxu0
        %v740 = vadd.f32 0.0, %v739
        %v741 = vpop.f32.mrb[0].mxu0
        %v742 = vpop.f32.mrb[0].mxu0
        %v743 = vadd.f32 0.0, %v742
        %v744 = vpop.f32.mrb[0].mxu0
        %745 = vmatprep.mubr.bf16.mxu0 0
        %746 = vmatmul.mubr.bf16.gmra.mrb[0].mxu0 %v547
        %v747 = vpop.f32.mrb[0].mxu0
        %v748 = vadd.f32 0.0, %v747
        %v749 = vpop.f32.mrb[0].mxu0
        %v750 = vpop.f32.mrb[0].mxu0
        %v751 = vadd.f32 0.0, %v750
        %v752 = vpop.f32.mrb[0].mxu0
        %753 = vmatprep.mubr.bf16.mxu0 0
        %754 = vmatmul.mubr.bf16.gmra.mrb[0].mxu0 %v548
        %v755 = vpop.f32.mrb[0].mxu0
        %v756 = vadd.f32 0.0, %v755
        %v757 = vpop.f32.mrb[0].mxu0
        %v758 = vpop.f32.mrb[0].mxu0
        %v759 = vadd.f32 0.0, %v758
        %v760 = vpop.f32.mrb[0].mxu0
        %761 = vmatprep.mubr.bf16.mxu0 0
        %762 = vmatmul.mubr.bf16.gmra.mrb[0].mxu0 %v549
        %v763 = vpop.f32.mrb[0].mxu0
        %v764 = vadd.f32 0.0, %v763
        %v765 = vpop.f32.mrb[0].mxu0
        %v766 = vpop.f32.mrb[0].mxu0
        %v767 = vadd.f32 0.0, %v766
        %v768 = vpop.f32.mrb[0].mxu0
        %769 = vmatprep.mubr.bf16.mxu0 0
        %770 = vmatmul.mubr.bf16.gmra.mrb[0].mxu0 %v550
        %v771 = vpop.f32.mrb[0].mxu0
        %v772 = vadd.f32 0.0, %v771
        %v773 = vpop.f32.mrb[0].mxu0
        %v774 = vpop.f32.mrb[0].mxu0
        %v775 = vadd.f32 0.0, %v774
        %v776 = vpop.f32.mrb[0].mxu0
        %777 = vmatprep.mubr.bf16.mxu0 0
        %778 = vmatmul.mubr.bf16.gmra.mrb[0].mxu0 %v551
        %v779 = vpop.f32.mrb[0].mxu0
        %v780 = vadd.f32 0.0, %v779
        %v781 = vpop.f32.mrb[0].mxu0
        %v782 = vpop.f32.mrb[0].mxu0
        %v783 = vadd.f32 0.0, %v782
        %v784 = vpop.f32.mrb[0].mxu0
        %785 = vmatprep.mubr.bf16.mxu0 0
        %786 = vmatmul.mubr.bf16.gmra.mrb[0].mxu0 %v552
        %v787 = vpop.f32.mrb[0].mxu0
        %v788 = vadd.f32 0.0, %v787
        %v789 = vpop.f32.mrb[0].mxu0
        %v790 = vpop.f32.mrb[0].mxu0
        %v791 = vadd.f32 0.0, %v790
        %v792 = vpop.f32.mrb[0].mxu0
        %793 = vmatprep.mubr.bf16.mxu0 0
        %794 = vmatmul.mubr.bf16.gmra.mrb[0].mxu0 %v553
        %v795 = vpop.f32.mrb[0].mxu0
        %v796 = vadd.f32 0.0, %v795
        %v797 = vpop.f32.mrb[0].mxu0
        %v798 = vpop.f32.mrb[0].mxu0
        %v799 = vadd.f32 0.0, %v798
        %v800 = vpop.f32.mrb[0].mxu0
        %801 = vmatprep.mubr.bf16.mxu0 0
        %802 = vmatmul.mubr.bf16.gmra.mrb[0].mxu0 %v554
        %v803 = vpop.f32.mrb[0].mxu0
        %v804 = vadd.f32 0.0, %v803
        %v805 = vpop.f32.mrb[0].mxu0
        %v806 = vpop.f32.mrb[0].mxu0
        %v807 = vadd.f32 0.0, %v806
        %v808 = vpop.f32.mrb[0].mxu0
        %809 = vmatprep.mubr.bf16.mxu0 0
        %810 = vmatmul.mubr.bf16.gmra.mrb[0].mxu0 %v555
        %v811 = vpop.f32.mrb[0].mxu0
        %v812 = vadd.f32 0.0, %v811
        %v813 = vpop.f32.mrb[0].mxu0
        %v814 = vpop.f32.mrb[0].mxu0
        %v815 = vadd.f32 0.0, %v814
        %v816 = vpop.f32.mrb[0].mxu0
        %817 = vmatprep.mubr.bf16.mxu0 0
        %818 = vmatmul.mubr.bf16.gmra.mrb[0].mxu0 %v556
        %v819 = vpop.f32.mrb[0].mxu0
        %v820 = vadd.f32 0.0, %v819
        %v821 = vpop.f32.mrb[0].mxu0
        %v822 = vpop.f32.mrb[0].mxu0
        %v823 = vadd.f32 0.0, %v822
        %v824 = vpop.f32.mrb[0].mxu0
        %825 = vmatprep.mubr.bf16.mxu0 0
        %826 = vmatmul.mubr.bf16.gmra.mrb[0].mxu0 %v557
        %v827 = vpop.f32.mrb[0].mxu0
        %v828 = vadd.f32 0.0, %v827
        %v829 = vpop.f32.mrb[0].mxu0
        %v830 = vpop.f32.mrb[0].mxu0
        %v831 = vadd.f32 0.0, %v830
        %v832 = vpop.f32.mrb[0].mxu0
        %833 = vmatprep.mubr.bf16.mxu0 0
        %834 = vmatmul.mubr.bf16.gmra.mrb[0].mxu0 %v558
        %v835 = vpop.f32.mrb[0].mxu0
        %v836 = vadd.f32 0.0, %v835
        %v837 = vpop.f32.mrb[0].mxu0
        %v838 = vpop.f32.mrb[0].mxu0
        %v839 = vadd.f32 0.0, %v838
        %v840 = vpop.f32.mrb[0].mxu0
        %841 = vmatprep.mubr.bf16.mxu0 0
        %842 = vmatmul.mubr.bf16.gmra.mrb[0].mxu0 %v559
        %v843 = vpop.f32.mrb[0].mxu0
        %v844 = vadd.f32 0.0, %v843
        %v845 = vpop.f32.mrb[0].mxu0
        %v846 = vpop.f32.mrb[0].mxu0
        %v847 = vadd.f32 0.0, %v846
        %v848 = vpop.f32.mrb[0].mxu0
        %849 = vmatprep.mubr.bf16.mxu0 0
        %850 = vmatmul.mubr.bf16.gmra.mrb[0].mxu0 %v560
        %v851 = vpop.f32.mrb[0].mxu0
        %v852 = vadd.f32 0.0, %v851
        %v853 = vpop.f32.mrb[0].mxu0
        %v854 = vpop.f32.mrb[0].mxu0
        %v855 = vadd.f32 0.0, %v854
        %v856 = vpop.f32.mrb[0].mxu0
        %857 = vdwg.mxu0
        %v858 = vmax.f32 %v668, %v700
        %v859 = vmax.f32 %v671, %v703
        %v860 = vmax.f32 %v676, %v708
        %v861 = vmax.f32 %v679, %v711
        %v862 = vmax.f32 %v684, %v716
        %v863 = vmax.f32 %v687, %v719
        %v864 = vmax.f32 %v692, %v724
        %v865 = vmax.f32 %v695, %v727
        %v866 = vmax.f32 %v858, %v732
        %v867 = vmax.f32 %v859, %v735
        %v868 = vmax.f32 %v860, %v740
        %v869 = vmax.f32 %v861, %v743
        %v870 = vmax.f32 %v862, %v748
        %v871 = vmax.f32 %v863, %v751
        %v872 = vmax.f32 %v864, %v756
        %v873 = vmax.f32 %v865, %v759
        %v874 = vmax.f32 %v866, %v764
        %v875 = vmax.f32 %v867, %v767
        %v876 = vmax.f32 %v868, %v772
        %v877 = vmax.f32 %v869, %v775
        %v878 = vmax.f32 %v870, %v780
        %v879 = vmax.f32 %v871, %v783
        %v880 = vmax.f32 %v872, %v788
        %v881 = vmax.f32 %v873, %v791
        %v882 = vmax.f32 %v874, %v796
        %v883 = vmax.f32 %v875, %v799
        %v884 = vmax.f32 %v876, %v804
        %v885 = vmax.f32 %v877, %v807
        %v886 = vmax.f32 %v878, %v812
        %v887 = vmax.f32 %v879, %v815
        %v888 = vmax.f32 %v880, %v820
        %v889 = vmax.f32 %v881, %v823
        %v890 = vmax.f32 %v882, %v828
        %v891 = vmax.f32 %v883, %v831
        %v892 = vmax.f32 %v884, %v836
        %v893 = vmax.f32 %v885, %v839
        %v894 = vmax.f32 %v886, %v844
        %v895 = vmax.f32 %v887, %v847
        %v896 = vmax.f32 %v888, %v852
        %v897 = vmax.f32 %v889, %v855
        %v898 = vmax.f32 %v890, 0.0
        %v899 = vmax.f32 %v891, 0.0
        %v900 = vmax.f32 %v892, 0.0
        %v901 = vmax.f32 %v893, 0.0
        %v902 = vmax.f32 %v894, 0.0
        %v903 = vmax.f32 %v895, 0.0
        %v904 = vmax.f32 %v896, 0.0
        %v905 = vmax.f32 %v897, 0.0
        %v906 = vpack.c.bf16 %v899, %v898
        %v907 = vpack.c.bf16 %v901, %v900
        %v908 = vpack.c.bf16 %v903, %v902
        %v909 = vpack.c.bf16 %v905, %v904
        %v914 = vunpack.c.l.b16 %v906
        %v915 = vunpack.c.h.b16 %v906
        %v916 = vunpack.c.l.b16 %v907
        %v917 = vunpack.c.h.b16 %v907
        %v918 = vunpack.c.l.b16 %v908
        %v919 = vunpack.c.h.b16 %v908
        %v920 = vunpack.c.l.b16 %v909
        %v921 = vunpack.c.h.b16 %v909
        %v922 = vpack.c.b16 %v914, %v914
        %v923 = vpack.c.b16 %v915, %v915
        %v924 = vpack.c.b16 %v916, %v916
        %v925 = vpack.c.b16 %v917, %v917
        %v926 = vpack.c.b16 %v918, %v918
        %v927 = vpack.c.b16 %v919, %v919
        %v928 = vpack.c.b16 %v920, %v920
        %v929 = vpack.c.b16 %v921, %v921
        %938 = vst [vmem:[%s374] sm:$0xf] %v922
        %939 = vst [vmem:[%s374 + $0x4] sm:$0xf] %v923
        %940 = vst [vmem:[%s374 + $0x8] sm:$0xf] %v924
        %941 = vst [vmem:[%s374 + $0xc] sm:$0xf] %v925
        %942 = vst [vmem:[%s374 + $0x10] sm:$0xf] %v926
        %943 = vst [vmem:[%s374 + $0x14] sm:$0xf] %v927
        %944 = vst [vmem:[%s374 + $0x18] sm:$0xf] %v928
        %945 = vst [vmem:[%s374 + $0x1c] sm:$0xf] %v929
        %s946 = smul.u32 8, %s13
        %p947 = scmp.lt.s32.totalorder %s946, 15
        %s948 = scalar_select %p947, %s946, 15
        %s949 = smul.addr %s948, 4
        %s950 = scalar_lea.vmem %s2, %s949
        // Predicated region
        $region70: #{cell_embedder_forward.2} parent=64 // pred_check
          %p951 = pneg %p78
        $region71: #{cell_embedder_forward.2} parent=64 // pred_check_branch
          %953 = sbr.rel (%p951) target = $region73
        $region72: #{cell_embedder_forward.2} parent=64 // pred_region
          %s954 = smul.u32 8, %s13
        $region73: #{cell_embedder_forward.2} parent=64 // pred_fallthru
          _
      $region65: #{cell_embedder_forward.2} parent=5 // pred_fallthru
        _
      %p955 = scmp.le.s32.totalorder 2, %s8
      // Predicated region
      $region74: #{cell_embedder_forward.2} parent=5 // pred_check
        %p956 = pneg %p955
      $region75: #{cell_embedder_forward.2} parent=5 // pred_check_branch
        %958 = sbr.rel (%p956) target = $region77
      $region76: #{cell_embedder_forward.2} parent=5 // pred_region
        %s959 = ssub.s32 %s8, 2
        // Predicated region
        $region78: #{cell_embedder_forward.2} parent=76 // pred_check
          %p960 = pneg %p84
        $region79: #{cell_embedder_forward.2} parent=76 // pred_check_branch
          %962 = sbr.rel (%p960) target = $region81
        $region80: #{cell_embedder_forward.2} parent=76 // pred_region
          %s963 = smul.u32 8, %s14
          %p964 = scmp.lt.s32.totalorder %s963, 15
          %s965 = scalar_select %p964, %s963, 15
          %s966 = smul.addr %s965, 4
          %s967 = scalar_lea.vmem %s2, %s966
        $region81: #{cell_embedder_forward.2} parent=76 // pred_fallthru
          _
      $region77: #{cell_embedder_forward.2} parent=5 // pred_fallthru
        _
    $region6: #{cell_embedder_forward.2} parent=1 // loop_footer
      %s12 = sadd.s32 1, %s8
    $region7: #{cell_embedder_forward.2} parent=1 // loop_footer_branch
      %7 = sbr.rel target = $region3
    $region8: #{cell_embedder_forward.2} parent=1 // loop_exit
      _

// kernel: cell_embedder_forward.3
$region0: #{cell_embedder_forward.3}
  #allocation0 [shape = 'u32[]', space=smem, size = 0x4, offset = 0x4, fixed_abs, tag = 'smem constant byte address 0x4 - core index']
  #allocation1 [shape = 'u32[144,128]{1,0:T(1,128)}', space=vmem, size = 0x12000, scoped, tag = 'internal scratch']
  %s0 = inlined_call_operand.vmem [shape: bf16[4,32,32], index: 0, kind: input, shape index: {}]
  %s1 = inlined_call_operand.vmem [shape: bf16[4,32,128], index: 1, kind: input, shape index: {}]
  %s2 = inlined_call_operand.vmem [shape: bf16[32,512], index: 2, kind: input, shape index: {}]
  %s3 = inlined_call_operand.vmem [shape: bf16[128,512], index: 3, kind: input, shape index: {}]
  %s4 = inlined_call_operand.vmem [shape: bf16[64,256], index: 4, kind: input, shape index: {}]
  %s5 = inlined_call_operand.vmem [shape: bf16[64,256], index: 5, kind: input, shape index: {}]
  %s6 = inlined_call_operand.vmem [shape: f32[1,512], index: 6, kind: input, shape index: {}]
  %s7 = inlined_call_operand.hbm [shape: f32[32,128], index: 7, kind: output, shape index: {}]
  %s8 = sld [smem:[#allocation0]]
  $region143: #{cell_embedder_forward.3} parent=0
    _
  %s10 = ssub.s32 1, %s8
  %s11 = scalar_select 0, %s10, %s8
  $region1: #{cell_embedder_forward.3} parent=0
    #allocation2 [shape = 'u8[32768]{0}', space=vmem, size = 0x8000, scoped, tag = 'input window, operand 0']
    #allocation3 [shape = 'u8[32768]{0}', space=vmem, size = 0x8000, scoped, tag = 'input window, operand 1']
    #allocation4 [shape = 'u8[16384]{0}', space=vmem, size = 0x4000, scoped, tag = 'output window, operand 0']
    #allocation5 [shape = 's32[2]{0}', space=sflag, size = 0x8, scoped, tag = 'scoped memory for cell_embedder_forward.3']
    %12 = vsyncpa [#allocation5], 0
    %s13 = scalar_lea.sflag [#allocation5], 1
    %14 = vsyncpa %s13, 0
    loop: start=0, step=1, limit=4
    $region2: #{cell_embedder_forward.3} parent=1 // loop_pre_header
      _
    $region3: #{cell_embedder_forward.3} parent=1 // loop_header
      %s16 = sphi 0, %s20
      %p17 = scmp.ge.s32.totalorder %s16, 4
      %s26 = sphi 0, %s28
      %s29 = sphi 0, %s26
      %s30 = sphi 0, %s29
      %s46 = sphi 0, %s30
      %s52 = sphi 0, %s54
      %s55 = sphi 0, %s52
      %s56 = sphi 0, %s55
      %s72 = sphi 0, %s56
      %s76 = sphi 0, %s76
      %s78 = sphi 0, %s76
      %s79 = sphi 0, %s78
      %s93 = sphi 0, %s79
      %s97 = sphi 0, %s97
      %s99 = sphi 0, %s97
      %s100 = sphi 0, %s99
      %s114 = sphi 0, %s100
      %s118 = sphi 0, %s118
      %s120 = sphi 0, %s118
      %s121 = sphi 0, %s120
      %s135 = sphi 0, %s121
      %s139 = sphi 0, %s139
      %s141 = sphi 0, %s139
      %s142 = sphi 0, %s141
      %s156 = sphi 0, %s142
      %s160 = sphi 0, %s160
      %s162 = sphi 0, %s160
      %s163 = sphi 0, %s162
      %s177 = sphi 0, %s163
      %s183 = sphi 0, %s185
      %s186 = sphi 0, %s183
      %s187 = sphi 0, %s186
      %s203 = sphi 0, %s187
    $region4: #{cell_embedder_forward.3} parent=1 // loop_header_branch
      %19 = sbr.rel (%p17) target = $region8
    $region5: #{cell_embedder_forward.3} parent=1 // loop_body
      %s21 = ssub.s32 %s16, 1
      %s22 = ssub.s32 %s16, 2
      %s23 = sadd.s32 %s16, 1
      %s24 = ssub.s32 %s16, %s23
      %p25 = scmp.eq.s32.totalorder %s24, 0
      %s27 = sadd.s32 %s26, 1
      %s28 = scalar_select %p25, %s26, %s27
      %p31 = pneg %p25
      %p32 = scmp.eq.s32.totalorder %s16, 1
      %p33 = por %p31, %p32
      %p34 = scmp.ne.s32.totalorder %s26, %s29
      %p35 = scmp.eq.s32.totalorder %s16, 0
      %p36 = por %p34, %p35
      %p37 = scmp.ne.s32.totalorder %s26, %s29
      %p38 = scmp.eq.s32.totalorder %s21, 1
      %p39 = por %p37, %p38
      %p40 = scmp.ne.s32.totalorder %s29, %s30
      %p41 = scmp.eq.s32.totalorder %s21, 0
      %p42 = por %p40, %p41
      %p43 = scmp.ne.s32.totalorder %s29, %s30
      %p44 = scmp.eq.s32.totalorder %s22, 1
      %p45 = por %p43, %p44
      %p47 = scmp.ne.s32.totalorder %s30, %s46
      %p48 = scmp.eq.s32.totalorder %s22, 0
      %p49 = por %p47, %p48
      %s50 = ssub.s32 %s16, %s23
      %p51 = scmp.eq.s32.totalorder %s50, 0
      %s53 = sadd.s32 %s52, 1
      %s54 = scalar_select %p51, %s52, %s53
      %p57 = pneg %p51
      %p58 = scmp.eq.s32.totalorder %s16, 1
      %p59 = por %p57, %p58
      %p60 = scmp.ne.s32.totalorder %s52, %s55
      %p61 = scmp.eq.s32.totalorder %s16, 0
      %p62 = por %p60, %p61
      %p63 = scmp.ne.s32.totalorder %s52, %s55
      %p64 = scmp.eq.s32.totalorder %s21, 1
      %p65 = por %p63, %p64
      %p66 = scmp.ne.s32.totalorder %s55, %s56
      %p67 = scmp.eq.s32.totalorder %s21, 0
      %p68 = por %p66, %p67
      %p69 = scmp.ne.s32.totalorder %s55, %s56
      %p70 = scmp.eq.s32.totalorder %s22, 1
      %p71 = por %p69, %p70
      %p73 = scmp.ne.s32.totalorder %s56, %s72
      %p74 = scmp.eq.s32.totalorder %s22, 0
      %p75 = por %p73, %p74
      %s77 = sadd.s32 %s76, 1
      %p80 = scmp.eq.s32.totalorder %s16, 1
      %p81 = scmp.ne.s32.totalorder %s76, %s78
      %p82 = scmp.eq.s32.totalorder %s16, 0
      %p83 = por %p81, %p82
      %p84 = scmp.ne.s32.totalorder %s76, %s78
      %p85 = scmp.eq.s32.totalorder %s21, 1
      %p86 = por %p84, %p85
      %p87 = scmp.ne.s32.totalorder %s78, %s79
      %p88 = scmp.eq.s32.totalorder %s21, 0
      %p89 = por %p87, %p88
      %p90 = scmp.ne.s32.totalorder %s78, %s79
      %p91 = scmp.eq.s32.totalorder %s22, 1
      %p92 = por %p90, %p91
      %p94 = scmp.ne.s32.totalorder %s79, %s93
      %p95 = scmp.eq.s32.totalorder %s22, 0
      %p96 = por %p94, %p95
      %s98 = sadd.s32 %s97, 1
      %p101 = scmp.eq.s32.totalorder %s16, 1
      %p102 = scmp.ne.s32.totalorder %s97, %s99
      %p103 = scmp.eq.s32.totalorder %s16, 0
      %p104 = por %p102, %p103
      %p105 = scmp.ne.s32.totalorder %s97, %s99
      %p106 = scmp.eq.s32.totalorder %s21, 1
      %p107 = por %p105, %p106
      %p108 = scmp.ne.s32.totalorder %s99, %s100
      %p109 = scmp.eq.s32.totalorder %s21, 0
      %p110 = por %p108, %p109
      %p111 = scmp.ne.s32.totalorder %s99, %s100
      %p112 = scmp.eq.s32.totalorder %s22, 1
      %p113 = por %p111, %p112
      %p115 = scmp.ne.s32.totalorder %s100, %s114
      %p116 = scmp.eq.s32.totalorder %s22, 0
      %p117 = por %p115, %p116
      %s119 = sadd.s32 %s118, 1
      %p122 = scmp.eq.s32.totalorder %s16, 1
      %p123 = scmp.ne.s32.totalorder %s118, %s120
      %p124 = scmp.eq.s32.totalorder %s16, 0
      %p125 = por %p123, %p124
      %p126 = scmp.ne.s32.totalorder %s118, %s120
      %p127 = scmp.eq.s32.totalorder %s21, 1
      %p128 = por %p126, %p127
      %p129 = scmp.ne.s32.totalorder %s120, %s121
      %p130 = scmp.eq.s32.totalorder %s21, 0
      %p131 = por %p129, %p130
      %p132 = scmp.ne.s32.totalorder %s120, %s121
      %p133 = scmp.eq.s32.totalorder %s22, 1
      %p134 = por %p132, %p133
      %p136 = scmp.ne.s32.totalorder %s121, %s135
      %p137 = scmp.eq.s32.totalorder %s22, 0
      %p138 = por %p136, %p137
      %s140 = sadd.s32 %s139, 1
      %p143 = scmp.eq.s32.totalorder %s16, 1
      %p144 = scmp.ne.s32.totalorder %s139, %s141
      %p145 = scmp.eq.s32.totalorder %s16, 0
      %p146 = por %p144, %p145
      %p147 = scmp.ne.s32.totalorder %s139, %s141
      %p148 = scmp.eq.s32.totalorder %s21, 1
      %p149 = por %p147, %p148
      %p150 = scmp.ne.s32.totalorder %s141, %s142
      %p151 = scmp.eq.s32.totalorder %s21, 0
      %p152 = por %p150, %p151
      %p153 = scmp.ne.s32.totalorder %s141, %s142
      %p154 = scmp.eq.s32.totalorder %s22, 1
      %p155 = por %p153, %p154
      %p157 = scmp.ne.s32.totalorder %s142, %s156
      %p158 = scmp.eq.s32.totalorder %s22, 0
      %p159 = por %p157, %p158
      %s161 = sadd.s32 %s160, 1
      %p164 = scmp.eq.s32.totalorder %s16, 1
      %p165 = scmp.ne.s32.totalorder %s160, %s162
      %p166 = scmp.eq.s32.totalorder %s16, 0
      %p167 = por %p165, %p166
      %p168 = scmp.ne.s32.totalorder %s160, %s162
      %p169 = scmp.eq.s32.totalorder %s21, 1
      %p170 = por %p168, %p169
      %p171 = scmp.ne.s32.totalorder %s162, %s163
      %p172 = scmp.eq.s32.totalorder %s21, 0
      %p173 = por %p171, %p172
      %p174 = scmp.ne.s32.totalorder %s162, %s163
      %p175 = scmp.eq.s32.totalorder %s22, 1
      %p176 = por %p174, %p175
      %p178 = scmp.ne.s32.totalorder %s163, %s177
      %p179 = scmp.eq.s32.totalorder %s22, 0
      %p180 = por %p178, %p179
      %s181 = ssub.s32 %s16, %s23
      %p182 = scmp.eq.s32.totalorder %s181, 0
      %s184 = sadd.s32 %s183, 1
      %s185 = scalar_select %p182, %s183, %s184
      %p188 = pneg %p182
      %p189 = scmp.eq.s32.totalorder %s16, 1
      %p190 = por %p188, %p189
      %p191 = scmp.ne.s32.totalorder %s183, %s186
      %p192 = scmp.eq.s32.totalorder %s16, 0
      %p193 = por %p191, %p192
      %p194 = scmp.ne.s32.totalorder %s183, %s186
      %p195 = scmp.eq.s32.totalorder %s21, 1
      %p196 = por %p194, %p195
      %p197 = scmp.ne.s32.totalorder %s186, %s187
      %p198 = scmp.eq.s32.totalorder %s21, 0
      %p199 = por %p197, %p198
      %p200 = scmp.ne.s32.totalorder %s186, %s187
      %p201 = scmp.eq.s32.totalorder %s22, 1
      %p202 = por %p200, %p201
      %p204 = scmp.ne.s32.totalorder %s187, %s203
      %p205 = scmp.eq.s32.totalorder %s22, 0
      %p206 = por %p204, %p205
      %p207 = scmp.le.s32.totalorder 1, %s16
      %p208 = scmp.lt.s32.totalorder %s16, 3
      %p209 = pnand %p207, %p208
      %p210 = pneg %p209
      // Predicated region
      $region9: #{cell_embedder_forward.3} parent=5 // pred_check
        _
      $region10: #{cell_embedder_forward.3} parent=5 // pred_check_branch
        %212 = sbr.rel (%p209) target = $region12
      $region11: #{cell_embedder_forward.3} parent=5 // pred_region
        %s213 = ssub.s32 %s16, 1
        // Predicated region
        $region13: #{cell_embedder_forward.3} parent=11 // pred_check
          %p214 = pneg %p89
        $region14: #{cell_embedder_forward.3} parent=11 // pred_check_branch
          %216 = sbr.rel (%p214) target = $region16
        $region15: #{cell_embedder_forward.3} parent=11 // pred_region
          _
        $region16: #{cell_embedder_forward.3} parent=11 // pred_fallthru
          _
        // Predicated region
        $region17: #{cell_embedder_forward.3} parent=11 // pred_check
          %p217 = pneg %p110
        $region18: #{cell_embedder_forward.3} parent=11 // pred_check_branch
          %219 = sbr.rel (%p217) target = $region20
        $region19: #{cell_embedder_forward.3} parent=11 // pred_region
          _
        $region20: #{cell_embedder_forward.3} parent=11 // pred_fallthru
          _
        // Predicated region
        $region21: #{cell_embedder_forward.3} parent=11 // pred_check
          %p220 = pneg %p131
        $region22: #{cell_embedder_forward.3} parent=11 // pred_check_branch
          %222 = sbr.rel (%p220) target = $region24
        $region23: #{cell_embedder_forward.3} parent=11 // pred_region
          _
        $region24: #{cell_embedder_forward.3} parent=11 // pred_fallthru
          _
        // Predicated region
        $region25: #{cell_embedder_forward.3} parent=11 // pred_check
          %p223 = pneg %p152
        $region26: #{cell_embedder_forward.3} parent=11 // pred_check_branch
          %225 = sbr.rel (%p223) target = $region28
        $region27: #{cell_embedder_forward.3} parent=11 // pred_region
          _
        $region28: #{cell_embedder_forward.3} parent=11 // pred_fallthru
          _
        // Predicated region
        $region29: #{cell_embedder_forward.3} parent=11 // pred_check
          %p226 = pneg %p173
        $region30: #{cell_embedder_forward.3} parent=11 // pred_check_branch
          %228 = sbr.rel (%p226) target = $region32
        $region31: #{cell_embedder_forward.3} parent=11 // pred_region
          _
        $region32: #{cell_embedder_forward.3} parent=11 // pred_fallthru
          _
      $region12: #{cell_embedder_forward.3} parent=5 // pred_fallthru
        _
      %p229 = scmp.lt.s32.totalorder %s16, 2
      // Predicated region
      $region33: #{cell_embedder_forward.3} parent=5 // pred_check
        %p230 = pneg %p229
      $region34: #{cell_embedder_forward.3} parent=5 // pred_check_branch
        %232 = sbr.rel (%p230) target = $region36
      $region35: #{cell_embedder_forward.3} parent=5 // pred_region
        // Predicated region
        $region37: #{cell_embedder_forward.3} parent=35 // pred_check
          %p233 = pneg %p36
        $region38: #{cell_embedder_forward.3} parent=35 // pred_check_branch
          %235 = sbr.rel (%p233) target = $region40
        $region39: #{cell_embedder_forward.3} parent=35 // pred_region
          %s236 = sand.u32 %s26, 1
          %s237 = sand.u32 %s26, 1
          %s238 = smul.addr %s237, 32
          %s239 = scalar_lea.vmem [#allocation2], %s238
          %s240 = smul.u32 2, %s16
          %s241 = smul.addr %s240, 4
          %s242 = scalar_lea.vmem %s0, %s241
          // Predicated region
          $region41: #{cell_embedder_forward.3} parent=39 // pred_check
            _
          $region42: #{cell_embedder_forward.3} parent=39 // pred_check_branch
            %244 = sbr.rel (0) target = $region44
          $region43: #{cell_embedder_forward.3} parent=39 // pred_region
            // Predicated region
            $region45: #{cell_embedder_forward.3} parent=43 // pred_check
              _
            $region46: #{cell_embedder_forward.3} parent=43 // pred_check_branch
              %246 = sbr.rel target = $region48
            $region47: #{cell_embedder_forward.3} parent=43 // pred_region
              // Predicated region
              $region60: #{cell_embedder_forward.3} parent=47 // pred_check
                _
              $region61: #{cell_embedder_forward.3} parent=47 // pred_check_branch
                %275 = sbr.rel (0) target = $region63
              $region62: #{cell_embedder_forward.3} parent=47 // pred_region
                loop: start=0, step=1, limit=1
                $region64: #{cell_embedder_forward.3} parent=62 // loop_pre_header
                  _
                $region65: #{cell_embedder_forward.3} parent=62 // loop_header
                  %s277 = sphi 0, %s281
                  %p278 = scmp.ge.s32.totalorder %s277, 1
                  %s282 = sphi %s242, %s242
                  %s283 = sphi %s239, %s239
                $region66: #{cell_embedder_forward.3} parent=62 // loop_header_branch
                  %280 = sbr.rel (%p278) target = $region70
                $region67: #{cell_embedder_forward.3} parent=62 // loop_body
                  _
                $region68: #{cell_embedder_forward.3} parent=62 // loop_footer
                  %s281 = sadd.s32 1, %s277
                $region69: #{cell_embedder_forward.3} parent=62 // loop_footer_branch
                  %276 = sbr.rel target = $region65
                $region70: #{cell_embedder_forward.3} parent=62 // loop_exit
                  _
                loop: start=0, step=1, limit=1
                $region71: #{cell_embedder_forward.3} parent=62 // loop_pre_header
                  _
                $region72: #{cell_embedder_forward.3} parent=62 // loop_header
                  %s286 = sphi 0, %s290
                  %p287 = scmp.ge.s32.totalorder %s286, 1
                  %s291 = sphi %s242, %s242
                  %s292 = sphi %s239, %s239
                $region73: #{cell_embedder_forward.3} parent=62 // loop_header_branch
                  %289 = sbr.rel (%p287) target = $region77
                $region74: #{cell_embedder_forward.3} parent=62 // loop_body
                  %v293 = vld [vmem:[%s291] sm:$0xf]
                  %294 = vst [vmem:[%s292] sm:$0xf] %v293
                  %v295 = vld [vmem:[%s291 + $0x4] sm:$0xf]
                  %296 = vst [vmem:[%s292 + $0x4] sm:$0xf] %v295
                  %v297 = vld [vmem:[%s291 + $0x10] sm:$0xf]
                  %298 = vst [vmem:[%s292 + $0x8] sm:$0xf] %v297
                  %v299 = vld [vmem:[%s291 + $0x14] sm:$0xf]
                  %300 = vst [vmem:[%s292 + $0xc] sm:$0xf] %v299
                  %v301 = vld [vmem:[%s291 + $0x20] sm:$0xf]
                  %302 = vst [vmem:[%s292 + $0x10] sm:$0xf] %v301
                  %v303 = vld [vmem:[%s291 + $0x24] sm:$0xf]
                  %304 = vst [vmem:[%s292 + $0x14] sm:$0xf] %v303
                  %v305 = vld [vmem:[%s291 + $0x30] sm:$0xf]
                  %306 = vst [vmem:[%s292 + $0x18] sm:$0xf] %v305
                  %v307 = vld [vmem:[%s291 + $0x34] sm:$0xf]
                  %308 = vst [vmem:[%s292 + $0x1c] sm:$0xf] %v307
                $region75: #{cell_embedder_forward.3} parent=62 // loop_footer
                  %s290 = sadd.s32 1, %s286
                $region76: #{cell_embedder_forward.3} parent=62 // loop_footer_branch
                  %285 = sbr.rel target = $region72
                $region77: #{cell_embedder_forward.3} parent=62 // loop_exit
                  _
              $region63: #{cell_embedder_forward.3} parent=47 // pred_fallthru
                _
            $region48: #{cell_embedder_forward.3} parent=43 // pred_fallthru
              _
            // Predicated region
            $region49: #{cell_embedder_forward.3} parent=43 // pred_check
              _
            $region50: #{cell_embedder_forward.3} parent=43 // pred_check_branch
              %248 = sbr.rel (0) target = $region52
            $region51: #{cell_embedder_forward.3} parent=43 // pred_region
              loop: start=0, step=1, limit=1
              $region53: #{cell_embedder_forward.3} parent=51 // loop_pre_header
                _
              $region54: #{cell_embedder_forward.3} parent=51 // loop_header
                %s251 = sphi 0, %s255
                %p252 = scmp.ge.s32.totalorder %s251, 1
                %s256 = sphi %s242, %s242
                %s257 = sphi %s239, %s239
              $region55: #{cell_embedder_forward.3} parent=51 // loop_header_branch
                %254 = sbr.rel (%p252) target = $region59
              $region56: #{cell_embedder_forward.3} parent=51 // loop_body
                %v258 = vld [vmem:[%s256] sm:$0xf]
                %259 = vst [vmem:[%s257] sm:$0xf] %v258
                %v260 = vld [vmem:[%s256 + $0x4] sm:$0xf]
                %261 = vst [vmem:[%s257 + $0x4] sm:$0xf] %v260
                %v262 = vld [vmem:[%s256 + $0x10] sm:$0xf]
                %263 = vst [vmem:[%s257 + $0x8] sm:$0xf] %v262
                %v264 = vld [vmem:[%s256 + $0x14] sm:$0xf]
                %265 = vst [vmem:[%s257 + $0xc] sm:$0xf] %v264
                %v266 = vld [vmem:[%s256 + $0x20] sm:$0xf]
                %267 = vst [vmem:[%s257 + $0x10] sm:$0xf] %v266
                %v268 = vld [vmem:[%s256 + $0x24] sm:$0xf]
                %269 = vst [vmem:[%s257 + $0x14] sm:$0xf] %v268
                %v270 = vld [vmem:[%s256 + $0x30] sm:$0xf]
                %271 = vst [vmem:[%s257 + $0x18] sm:$0xf] %v270
                %v272 = vld [vmem:[%s256 + $0x34] sm:$0xf]
                %273 = vst [vmem:[%s257 + $0x1c] sm:$0xf] %v272
              $region57: #{cell_embedder_forward.3} parent=51 // loop_footer
                %s255 = sadd.s32 1, %s251
              $region58: #{cell_embedder_forward.3} parent=51 // loop_footer_branch
                %250 = sbr.rel target = $region54
              $region59: #{cell_embedder_forward.3} parent=51 // loop_exit
                _
            $region52: #{cell_embedder_forward.3} parent=43 // pred_fallthru
              _
          $region44: #{cell_embedder_forward.3} parent=39 // pred_fallthru
            _
          %309 = vnop
        $region40: #{cell_embedder_forward.3} parent=35 // pred_fallthru
          _
        // Predicated region
        $region78: #{cell_embedder_forward.3} parent=35 // pred_check
          %p310 = pneg %p62
        $region79: #{cell_embedder_forward.3} parent=35 // pred_check_branch
          %312 = sbr.rel (%p310) target = $region81
        $region80: #{cell_embedder_forward.3} parent=35 // pred_region
          %s313 = sand.u32 %s52, 1
          %s314 = sand.u32 %s52, 1
          %s315 = smul.addr %s314, 32
          %s316 = scalar_lea.vmem [#allocation3], %s315
          %s317 = smul.u32 2, %s16
          %s318 = smul.addr %s317, 4
          %s319 = scalar_lea.vmem %s1, %s318
          // Predicated region
          $region82: #{cell_embedder_forward.3} parent=80 // pred_check
            _
          $region83: #{cell_embedder_forward.3} parent=80 // pred_check_branch
            %321 = sbr.rel (0) target = $region85
          $region84: #{cell_embedder_forward.3} parent=80 // pred_region
            // Predicated region
            $region86: #{cell_embedder_forward.3} parent=84 // pred_check
              _
            $region87: #{cell_embedder_forward.3} parent=84 // pred_check_branch
              %323 = sbr.rel target = $region89
            $region88: #{cell_embedder_forward.3} parent=84 // pred_region
              // Predicated region
              $region101: #{cell_embedder_forward.3} parent=88 // pred_check
                _
              $region102: #{cell_embedder_forward.3} parent=88 // pred_check_branch
                %352 = sbr.rel (0) target = $region104
              $region103: #{cell_embedder_forward.3} parent=88 // pred_region
                loop: start=0, step=1, limit=1
                $region105: #{cell_embedder_forward.3} parent=103 // loop_pre_header
                  _
                $region106: #{cell_embedder_forward.3} parent=103 // loop_header
                  %s354 = sphi 0, %s358
                  %p355 = scmp.ge.s32.totalorder %s354, 1
                  %s359 = sphi %s319, %s319
                  %s360 = sphi %s316, %s316
                $region107: #{cell_embedder_forward.3} parent=103 // loop_header_branch
                  %357 = sbr.rel (%p355) target = $region111
                $region108: #{cell_embedder_forward.3} parent=103 // loop_body
                  _
                $region109: #{cell_embedder_forward.3} parent=103 // loop_footer
                  %s358 = sadd.s32 1, %s354
                $region110: #{cell_embedder_forward.3} parent=103 // loop_footer_branch
                  %353 = sbr.rel target = $region106
                $region111: #{cell_embedder_forward.3} parent=103 // loop_exit
                  _
                loop: start=0, step=1, limit=1
                $region112: #{cell_embedder_forward.3} parent=103 // loop_pre_header
                  _
                $region113: #{cell_embedder_forward.3} parent=103 // loop_header
                  %s363 = sphi 0, %s367
                  %p364 = scmp.ge.s32.totalorder %s363, 1
                  %s368 = sphi %s319, %s319
                  %s369 = sphi %s316, %s316
                $region114: #{cell_embedder_forward.3} parent=103 // loop_header_branch
                  %366 = sbr.rel (%p364) target = $region118
                $region115: #{cell_embedder_forward.3} parent=103 // loop_body
                  %v370 = vld [vmem:[%s368] sm:$0xf]
                  %371 = vst [vmem:[%s369] sm:$0xf] %v370
                  %v372 = vld [vmem:[%s368 + $0x4] sm:$0xf]
                  %373 = vst [vmem:[%s369 + $0x4] sm:$0xf] %v372
                  %v374 = vld [vmem:[%s368 + $0x10] sm:$0xf]
                  %375 = vst [vmem:[%s369 + $0x8] sm:$0xf] %v374
                  %v376 = vld [vmem:[%s368 + $0x14] sm:$0xf]
                  %377 = vst [vmem:[%s369 + $0xc] sm:$0xf] %v376
                  %v378 = vld [vmem:[%s368 + $0x20] sm:$0xf]
                  %379 = vst [vmem:[%s369 + $0x10] sm:$0xf] %v378
                  %v380 = vld [vmem:[%s368 + $0x24] sm:$0xf]
                  %381 = vst [vmem:[%s369 + $0x14] sm:$0xf] %v380
                  %v382 = vld [vmem:[%s368 + $0x30] sm:$0xf]
                  %383 = vst [vmem:[%s369 + $0x18] sm:$0xf] %v382
                  %v384 = vld [vmem:[%s368 + $0x34] sm:$0xf]
                  %385 = vst [vmem:[%s369 + $0x1c] sm:$0xf] %v384
                $region116: #{cell_embedder_forward.3} parent=103 // loop_footer
                  %s367 = sadd.s32 1, %s363
                $region117: #{cell_embedder_forward.3} parent=103 // loop_footer_branch
                  %362 = sbr.rel target = $region113
                $region118: #{cell_embedder_forward.3} parent=103 // loop_exit
                  _
              $region104: #{cell_embedder_forward.3} parent=88 // pred_fallthru
                _
            $region89: #{cell_embedder_forward.3} parent=84 // pred_fallthru
              _
            // Predicated region
            $region90: #{cell_embedder_forward.3} parent=84 // pred_check
              _
            $region91: #{cell_embedder_forward.3} parent=84 // pred_check_branch
              %325 = sbr.rel (0) target = $region93
            $region92: #{cell_embedder_forward.3} parent=84 // pred_region
              loop: start=0, step=1, limit=1
              $region94: #{cell_embedder_forward.3} parent=92 // loop_pre_header
                _
              $region95: #{cell_embedder_forward.3} parent=92 // loop_header
                %s328 = sphi 0, %s332
                %p329 = scmp.ge.s32.totalorder %s328, 1
                %s333 = sphi %s319, %s319
                %s334 = sphi %s316, %s316
              $region96: #{cell_embedder_forward.3} parent=92 // loop_header_branch
                %331 = sbr.rel (%p329) target = $region100
              $region97: #{cell_embedder_forward.3} parent=92 // loop_body
                %v335 = vld [vmem:[%s333] sm:$0xf]
                %336 = vst [vmem:[%s334] sm:$0xf] %v335
                %v337 = vld [vmem:[%s333 + $0x4] sm:$0xf]
                %338 = vst [vmem:[%s334 + $0x4] sm:$0xf] %v337
                %v339 = vld [vmem:[%s333 + $0x10] sm:$0xf]
                %340 = vst [vmem:[%s334 + $0x8] sm:$0xf] %v339
                %v341 = vld [vmem:[%s333 + $0x14] sm:$0xf]
                %342 = vst [vmem:[%s334 + $0xc] sm:$0xf] %v341
                %v343 = vld [vmem:[%s333 + $0x20] sm:$0xf]
                %344 = vst [vmem:[%s334 + $0x10] sm:$0xf] %v343
                %v345 = vld [vmem:[%s333 + $0x24] sm:$0xf]
                %346 = vst [vmem:[%s334 + $0x14] sm:$0xf] %v345
                %v347 = vld [vmem:[%s333 + $0x30] sm:$0xf]
                %348 = vst [vmem:[%s334 + $0x18] sm:$0xf] %v347
                %v349 = vld [vmem:[%s333 + $0x34] sm:$0xf]
                %350 = vst [vmem:[%s334 + $0x1c] sm:$0xf] %v349
              $region98: #{cell_embedder_forward.3} parent=92 // loop_footer
                %s332 = sadd.s32 1, %s328
              $region99: #{cell_embedder_forward.3} parent=92 // loop_footer_branch
                %327 = sbr.rel target = $region95
              $region100: #{cell_embedder_forward.3} parent=92 // loop_exit
                _
            $region93: #{cell_embedder_forward.3} parent=84 // pred_fallthru
              _
          $region85: #{cell_embedder_forward.3} parent=80 // pred_fallthru
            _
          %386 = vnop
        $region81: #{cell_embedder_forward.3} parent=35 // pred_fallthru
          _
      $region36: #{cell_embedder_forward.3} parent=5 // pred_fallthru
        _
      %p387 = scmp.le.s32.totalorder 1, %s16
      %p388 = scmp.lt.s32.totalorder %s16, 3
      %p389 = pnand %p387, %p388
      %p390 = pneg %p389
      // Predicated region
      $region119: #{cell_embedder_forward.3} parent=5 // pred_check
        _
      $region120: #{cell_embedder_forward.3} parent=5 // pred_check_branch
        %392 = sbr.rel (%p389) target = $region122
      $region121: #{cell_embedder_forward.3} parent=5 // pred_region
        %s393 = ssub.s32 %s16, 1
        %s394 = sand.u32 %s29, 1
        %s395 = sand.u32 %s29, 1
        %s396 = smul.addr %s395, 32
        %s397 = scalar_lea.vmem [#allocation2], %s396
        // Predicated region
        $region123: #{cell_embedder_forward.3} parent=121 // pred_check
          %p398 = pneg %p42
        $region124: #{cell_embedder_forward.3} parent=121 // pred_check_branch
          %400 = sbr.rel (%p398) target = $region126
        $region125: #{cell_embedder_forward.3} parent=121 // pred_region
          _
        $region126: #{cell_embedder_forward.3} parent=121 // pred_fallthru
          _
        %s401 = sand.u32 %s55, 1
        %s402 = sand.u32 %s55, 1
        %s403 = smul.addr %s402, 32
        %s404 = scalar_lea.vmem [#allocation3], %s403
        // Predicated region
        $region127: #{cell_embedder_forward.3} parent=121 // pred_check
          %p405 = pneg %p68
        $region128: #{cell_embedder_forward.3} parent=121 // pred_check_branch
          %407 = sbr.rel (%p405) target = $region130
        $region129: #{cell_embedder_forward.3} parent=121 // pred_region
          _
        $region130: #{cell_embedder_forward.3} parent=121 // pred_fallthru
          _
        %s408 = sand.u32 %s29, 1
        %s409 = sand.u32 %s29, 1
        %s410 = smul.addr %s409, 32
        %s411 = scalar_lea.vmem [#allocation2], %s410
        %p412 = pneg %p42
        %p413 = pneg %p39
        %s414 = sand.u32 %s55, 1
        %s415 = sand.u32 %s55, 1
        %s416 = smul.addr %s415, 32
        %s417 = scalar_lea.vmem [#allocation3], %s416
        %p418 = pneg %p68
        %p419 = pneg %p65
        %p420 = pneg %p89
        %p421 = pneg %p86
        %p422 = pneg %p110
        %p423 = pneg %p107
        %p424 = pneg %p131
        %p425 = pneg %p128
        %p426 = pneg %p152
        %p427 = pneg %p149
        %p428 = pneg %p173
        %p429 = pneg %p170
        %p430 = pneg %p199
        %p431 = pneg %p196
        %s432 = sand.u32 %s186, 1
        %s433 = scalar_lea.sflag [#allocation5], %s432
        %s434 = sand.u32 %s186, 1
        %s435 = smul.addr %s434, 16
        %s436 = scalar_lea.vmem [#allocation4], %s435
        %s437 = smul.u32 2, %s21
        %s438 = smul.u32 2, %s21
        %s439 = smul.u32 2, %s21
        %v441 = vld [vmem:[%s397] sm:$0xf]
        %v442 = vld [vmem:[%s397 + $0x4] sm:$0xf]
        %v443 = vld [vmem:[%s397 + $0x8] sm:$0xf]
        %v444 = vld [vmem:[%s397 + $0xc] sm:$0xf]
        %v445 = vld [vmem:[%s397 + $0x10] sm:$0xf]
        %v446 = vld [vmem:[%s397 + $0x14] sm:$0xf]
        %v447 = vld [vmem:[%s397 + $0x18] sm:$0xf]
        %v448 = vld [vmem:[%s397 + $0x1c] sm:$0xf]
        %v449 = vld [vmem:[%s404] sm:$0xf]
        %v450 = vld [vmem:[%s404 + $0x4] sm:$0xf]
        %v451 = vld [vmem:[%s404 + $0x8] sm:$0xf]
        %v452 = vld [vmem:[%s404 + $0xc] sm:$0xf]
        %v453 = vld [vmem:[%s404 + $0x10] sm:$0xf]
        %v454 = vld [vmem:[%s404 + $0x14] sm:$0xf]
        %v455 = vld [vmem:[%s404 + $0x18] sm:$0xf]
        %v456 = vld [vmem:[%s404 + $0x1c] sm:$0xf]
        %v457 = vld [vmem:[%s2] sm:$0xff]
        %v458 = vld [vmem:[%s2 + $0x8] sm:$0xff]
        %v459 = vld [vmem:[%s2 + $0x10] sm:$0xff]
        %v460 = vld [vmem:[%s2 + $0x18] sm:$0xff]
        %v461 = vld [vmem:[%s2 + $0x20] sm:$0xff]
        %v462 = vld [vmem:[%s2 + $0x28] sm:$0xff]
        %v463 = vld [vmem:[%s2 + $0x30] sm:$0xff]
        %v464 = vld [vmem:[%s2 + $0x38] sm:$0xff]
        %v465 = vld [vmem:[%s3] sm:$0xff]
        %v466 = vld [vmem:[%s3 + $0x8] sm:$0xff]
        %v467 = vld [vmem:[%s3 + $0x10] sm:$0xff]
        %v468 = vld [vmem:[%s3 + $0x18] sm:$0xff]
        %v469 = vld [vmem:[%s3 + $0x20] sm:$0xff]
        %v470 = vld [vmem:[%s3 + $0x28] sm:$0xff]
        %v471 = vld [vmem:[%s3 + $0x30] sm:$0xff]
        %v472 = vld [vmem:[%s3 + $0x38] sm:$0xff]
        %v473 = vld [vmem:[%s3 + $0x40] sm:$0xff]
        %v474 = vld [vmem:[%s3 + $0x48] sm:$0xff]
        %v475 = vld [vmem:[%s3 + $0x50] sm:$0xff]
        %v476 = vld [vmem:[%s3 + $0x58] sm:$0xff]
        %v477 = vld [vmem:[%s3 + $0x60] sm:$0xff]
        %v478 = vld [vmem:[%s3 + $0x68] sm:$0xff]
        %v479 = vld [vmem:[%s3 + $0x70] sm:$0xff]
        %v480 = vld [vmem:[%s3 + $0x78] sm:$0xff]
        %v481 = vld [vmem:[%s3 + $0x80] sm:$0xff]
        %v482 = vld [vmem:[%s3 + $0x88] sm:$0xff]
        %v483 = vld [vmem:[%s3 + $0x90] sm:$0xff]
        %v484 = vld [vmem:[%s3 + $0x98] sm:$0xff]
        %v485 = vld [vmem:[%s3 + $0xa0] sm:$0xff]
        %v486 = vld [vmem:[%s3 + $0xa8] sm:$0xff]
        %v487 = vld [vmem:[%s3 + $0xb0] sm:$0xff]
        %v488 = vld [vmem:[%s3 + $0xb8] sm:$0xff]
        %v489 = vld [vmem:[%s3 + $0xc0] sm:$0xff]
        %v490 = vld [vmem:[%s3 + $0xc8] sm:$0xff]
        %v491 = vld [vmem:[%s3 + $0xd0] sm:$0xff]
        %v492 = vld [vmem:[%s3 + $0xd8] sm:$0xff]
        %v493 = vld [vmem:[%s3 + $0xe0] sm:$0xff]
        %v494 = vld [vmem:[%s3 + $0xe8] sm:$0xff]
        %v495 = vld [vmem:[%s3 + $0xf0] sm:$0xff]
        %v496 = vld [vmem:[%s3 + $0xf8] sm:$0xff]
        %v505 = vunpack.c.l.b16 %v449
        %v506 = vunpack.c.l.b16 %v450
        %v507 = vunpack.c.l.b16 %v451
        %v508 = vunpack.c.l.b16 %v452
        %v509 = vunpack.c.l.b16 %v453
        %v510 = vunpack.c.l.b16 %v454
        %v511 = vunpack.c.l.b16 %v455
        %v512 = vunpack.c.l.b16 %v456
        %v513 = vpack.c.b16 %v506, %v505
        %v514 = vpack.c.b16 %v508, %v507
        %v515 = vpack.c.b16 %v510, %v509
        %v516 = vpack.c.b16 %v512, %v511
        %v553 = vunpack.c.l.b16 %v465
        %v554 = vunpack.c.h.b16 %v465
        %v555 = vunpack.c.l.b16 %v466
        %v556 = vunpack.c.h.b16 %v466
        %v557 = vunpack.c.l.b16 %v467
        %v558 = vunpack.c.h.b16 %v467
        %v559 = vunpack.c.l.b16 %v468
        %v560 = vunpack.c.h.b16 %v468
        %v561 = vunpack.c.l.b16 %v469
        %v562 = vunpack.c.h.b16 %v469
        %v563 = vunpack.c.l.b16 %v470
        %v564 = vunpack.c.h.b16 %v470
        %v565 = vunpack.c.l.b16 %v471
        %v566 = vunpack.c.h.b16 %v471
        %v567 = vunpack.c.l.b16 %v472
        %v568 = vunpack.c.h.b16 %v472
        %v569 = vunpack.c.l.b16 %v473
        %v570 = vunpack.c.h.b16 %v473
        %v571 = vunpack.c.l.b16 %v474
        %v572 = vunpack.c.h.b16 %v474
        %v573 = vunpack.c.l.b16 %v475
        %v574 = vunpack.c.h.b16 %v475
        %v575 = vunpack.c.l.b16 %v476
        %v576 = vunpack.c.h.b16 %v476
        %v577 = vunpack.c.l.b16 %v477
        %v578 = vunpack.c.h.b16 %v477
        %v579 = vunpack.c.l.b16 %v478
        %v580 = vunpack.c.h.b16 %v478
        %v581 = vunpack.c.l.b16 %v479
        %v582 = vunpack.c.h.b16 %v479
        %v583 = vunpack.c.l.b16 %v480
        %v584 = vunpack.c.h.b16 %v480
        %v585 = vunpack.c.l.b16 %v481
        %v586 = vunpack.c.h.b16 %v481
        %v587 = vunpack.c.l.b16 %v482
        %v588 = vunpack.c.h.b16 %v482
        %v589 = vunpack.c.l.b16 %v483
        %v590 = vunpack.c.h.b16 %v483
        %v591 = vunpack.c.l.b16 %v484
        %v592 = vunpack.c.h.b16 %v484
        %v593 = vunpack.c.l.b16 %v485
        %v594 = vunpack.c.h.b16 %v485
        %v595 = vunpack.c.l.b16 %v486
        %v596 = vunpack.c.h.b16 %v486
        %v597 = vunpack.c.l.b16 %v487
        %v598 = vunpack.c.h.b16 %v487
        %v599 = vunpack.c.l.b16 %v488
        %v600 = vunpack.c.h.b16 %v488
        %v601 = vunpack.c.l.b16 %v489
        %v602 = vunpack.c.h.b16 %v489
        %v603 = vunpack.c.l.b16 %v490
        %v604 = vunpack.c.h.b16 %v490
        %v605 = vunpack.c.l.b16 %v491
        %v606 = vunpack.c.h.b16 %v491
        %v607 = vunpack.c.l.b16 %v492
        %v608 = vunpack.c.h.b16 %v492
        %v609 = vunpack.c.l.b16 %v493
        %v610 = vunpack.c.h.b16 %v493
        %v611 = vunpack.c.l.b16 %v494
        %v612 = vunpack.c.h.b16 %v494
        %v613 = vunpack.c.l.b16 %v495
        %v614 = vunpack.c.h.b16 %v495
        %v615 = vunpack.c.l.b16 %v496
        %v616 = vunpack.c.h.b16 %v496
        %v617 = vpack.c.b16 %v557, %v553
        %v618 = vpack.c.b16 %v558, %v554
        %v619 = vpack.c.b16 %v559, %v555
        %v620 = vpack.c.b16 %v560, %v556
        %v621 = vpack.c.b16 %v565, %v561
        %v622 = vpack.c.b16 %v566, %v562
        %v623 = vpack.c.b16 %v567, %v563
        %v624 = vpack.c.b16 %v568, %v564
        %v625 = vpack.c.b16 %v573, %v569
        %v626 = vpack.c.b16 %v574, %v570
        %v627 = vpack.c.b16 %v575, %v571
        %v628 = vpack.c.b16 %v576, %v572
        %v629 = vpack.c.b16 %v581, %v577
        %v630 = vpack.c.b16 %v582, %v578
        %v631 = vpack.c.b16 %v583, %v579
        %v632 = vpack.c.b16 %v584, %v580
        %v633 = vpack.c.b16 %v589, %v585
        %v634 = vpack.c.b16 %v590, %v586
        %v635 = vpack.c.b16 %v591, %v587
        %v636 = vpack.c.b16 %v592, %v588
        %v637 = vpack.c.b16 %v597, %v593
        %v638 = vpack.c.b16 %v598, %v594
        %v639 = vpack.c.b16 %v599, %v595
        %v640 = vpack.c.b16 %v600, %v596
        %v641 = vpack.c.b16 %v605, %v601
        %v642 = vpack.c.b16 %v606, %v602
        %v643 = vpack.c.b16 %v607, %v603
        %v644 = vpack.c.b16 %v608, %v604
        %v645 = vpack.c.b16 %v613, %v609
        %v646 = vpack.c.b16 %v614, %v610
        %v647 = vpack.c.b16 %v615, %v611
        %v648 = vpack.c.b16 %v616, %v612
        %681 = vmatprep.subr.bf16.mxu0 %v618
        %682 = vmatpush1.bf16.msra.mxu0 %v617
        %683 = vmatprep.subr.bf16.mxu0 %v622
        %684 = vmatpush1.bf16.msra.mxu0 %v621
        %685 = vmatprep.subr.bf16.mxu0 %v626
        %686 = vmatpush1.bf16.msra.mxu0 %v625
        %687 = vmatprep.subr.bf16.mxu0 %v630
        %688 = vmatpush1.bf16.msra.mxu0 %v629
        %689 = vmatprep.subr.bf16.mxu0 %v634
        %690 = vmatpush1.bf16.msra.mxu0 %v633
        %691 = vmatprep.subr.bf16.mxu0 %v638
        %692 = vmatpush1.bf16.msra.mxu0 %v637
        %693 = vmatprep.subr.bf16.mxu0 %v642
        %694 = vmatpush1.bf16.msra.mxu0 %v641
        %695 = vmatprep.subr.bf16.mxu0 %v646
        %696 = vmatpush1.bf16.msra.mxu0 %v645
        %697 = vmatprep.subr.bf16.mxu0 0
        %698 = vmatpush1.bf16.msra.mxu0 0
        %699 = vmatprep.subr.bf16.mxu0 0
        %700 = vmatpush1.bf16.msra.mxu0 0
        %701 = vmatprep.subr.bf16.mxu0 0
        %702 = vmatpush1.bf16.msra.mxu0 0
        %703 = vmatprep.subr.bf16.mxu0 0
        %704 = vmatpush1.bf16.msra.mxu0 0
        %705 = vmatprep.subr.bf16.mxu0 0
        %706 = vmatpush1.bf16.msra.mxu0 0
        %707 = vmatprep.subr.bf16.mxu0 0
        %708 = vmatpush1.bf16.msra.mxu0 0
        %709 = vmatprep.subr.bf16.mxu0 0
        %710 = vmatpush1.bf16.msra.mxu0 0
        %711 = vmatprep.subr.bf16.mxu0 0
        %712 = vmatpush1.bf16.msra.mxu0 0
        %713 = vmatprep.mubr.bf16.mxu0 0
        %714 = vmatmul.mubr.bf16.gmra.mrb[0].mxu0 %v513
        %v715 = vpop.f32.mrb[0].mxu0
        %v716 = vadd.f32 0.0, %v715
        %v717 = vpop.f32.mrb[0].mxu0
        %v718 = vadd.f32 0.0, %v717
        %v719 = vpop.f32.mrb[0].mxu0
        %v720 = vadd.f32 0.0, %v719
        %v721 = vpop.f32.mrb[0].mxu0
        %v722 = vadd.f32 0.0, %v721
        %723 = vmatprep.mubr.bf16.mxu0 0
        %724 = vmatmul.mubr.bf16.gmra.mrb[0].mxu0 %v514
        %v725 = vpop.f32.mrb[0].mxu0
        %v726 = vadd.f32 0.0, %v725
        %v727 = vpop.f32.mrb[0].mxu0
        %v728 = vadd.f32 0.0, %v727
        %v729 = vpop.f32.mrb[0].mxu0
        %v730 = vadd.f32 0.0, %v729
        %v731 = vpop.f32.mrb[0].mxu0
        %v732 = vadd.f32 0.0, %v731
        %733 = vmatprep.mubr.bf16.mxu0 0
        %734 = vmatmul.mubr.bf16.gmra.mrb[0].mxu0 %v515
        %v735 = vpop.f32.mrb[0].mxu0
        %v736 = vadd.f32 0.0, %v735
        %v737 = vpop.f32.mrb[0].mxu0
        %v738 = vadd.f32 0.0, %v737
        %v739 = vpop.f32.mrb[0].mxu0
        %v740 = vadd.f32 0.0, %v739
        %v741 = vpop.f32.mrb[0].mxu0
        %v742 = vadd.f32 0.0, %v741
        %743 = vmatprep.mubr.bf16.mxu0 0
        %744 = vmatmul.mubr.bf16.gmra.mrb[0].mxu0 %v516
        %v745 = vpop.f32.mrb[0].mxu0
        %v746 = vadd.f32 0.0, %v745
        %v747 = vpop.f32.mrb[0].mxu0
        %v748 = vadd.f32 0.0, %v747
        %v749 = vpop.f32.mrb[0].mxu0
        %v750 = vadd.f32 0.0, %v749
        %v751 = vpop.f32.mrb[0].mxu0
        %v752 = vadd.f32 0.0, %v751
        %753 = vdwg.mxu0
        %754 = vmatprep.subr.bf16.mxu0 %v620
        %755 = vmatpush1.bf16.msra.mxu0 %v619
        %756 = vmatprep.subr.bf16.mxu0 %v624
        %757 = vmatpush1.bf16.msra.mxu0 %v623
        %758 = vmatprep.subr.bf16.mxu0 %v628
        %759 = vmatpush1.bf16.msra.mxu0 %v627
        %760 = vmatprep.subr.bf16.mxu0 %v632
        %761 = vmatpush1.bf16.msra.mxu0 %v631
        %762 = vmatprep.subr.bf16.mxu0 %v636
        %763 = vmatpush1.bf16.msra.mxu0 %v635
        %764 = vmatprep.subr.bf16.mxu0 %v640
        %765 = vmatpush1.bf16.msra.mxu0 %v639
        %766 = vmatprep.subr.bf16.mxu0 %v644
        %767 = vmatpush1.bf16.msra.mxu0 %v643
        %768 = vmatprep.subr.bf16.mxu0 %v648
        %769 = vmatpush1.bf16.msra.mxu0 %v647
        %770 = vmatprep.subr.bf16.mxu0 0
        %771 = vmatpush1.bf16.msra.mxu0 0
        %772 = vmatprep.subr.bf16.mxu0 0
        %773 = vmatpush1.bf16.msra.mxu0 0
        %774 = vmatprep.subr.bf16.mxu0 0
        %775 = vmatpush1.bf16.msra.mxu0 0
        %776 = vmatprep.subr.bf16.mxu0 0
        %777 = vmatpush1.bf16.msra.mxu0 0
        %778 = vmatprep.subr.bf16.mxu0 0
        %779 = vmatpush1.bf16.msra.mxu0 0
        %780 = vmatprep.subr.bf16.mxu0 0
        %781 = vmatpush1.bf16.msra.mxu0 0
        %782 = vmatprep.subr.bf16.mxu0 0
        %783 = vmatpush1.bf16.msra.mxu0 0
        %784 = vmatprep.subr.bf16.mxu0 0
        %785 = vmatpush1.bf16.msra.mxu0 0
        %786 = vmatprep.mubr.bf16.mxu0 0
        %787 = vmatmul.mubr.bf16.gmra.mrb[0].mxu0 %v513
        %v788 = vpop.f32.mrb[0].mxu0
        %v789 = vadd.f32 0.0, %v788
        %v790 = vpop.f32.mrb[0].mxu0
        %v791 = vadd.f32 0.0, %v790
        %v792 = vpop.f32.mrb[0].mxu0
        %v793 = vadd.f32 0.0, %v792
        %v794 = vpop.f32.mrb[0].mxu0
        %v795 = vadd.f32 0.0, %v794
        %796 = vmatprep.mubr.bf16.mxu0 0
        %797 = vmatmul.mubr.bf16.gmra.mrb[0].mxu0 %v514
        %v798 = vpop.f32.mrb[0].mxu0
        %v799 = vadd.f32 0.0, %v798
        %v800 = vpop.f32.mrb[0].mxu0
        %v801 = vadd.f32 0.0, %v800
        %v802 = vpop.f32.mrb[0].mxu0
        %v803 = vadd.f32 0.0, %v802
        %v804 = vpop.f32.mrb[0].mxu0
        %v805 = vadd.f32 0.0, %v804
        %806 = vmatprep.mubr.bf16.mxu0 0
        %807 = vmatmul.mubr.bf16.gmra.mrb[0].mxu0 %v515
        %v808 = vpop.f32.mrb[0].mxu0
        %v809 = vadd.f32 0.0, %v808
        %v810 = vpop.f32.mrb[0].mxu0
        %v811 = vadd.f32 0.0, %v810
        %v812 = vpop.f32.mrb[0].mxu0
        %v813 = vadd.f32 0.0, %v812
        %v814 = vpop.f32.mrb[0].mxu0
        %v815 = vadd.f32 0.0, %v814
        %816 = vmatprep.mubr.bf16.mxu0 0
        %817 = vmatmul.mubr.bf16.gmra.mrb[0].mxu0 %v516
        %v818 = vpop.f32.mrb[0].mxu0
        %v819 = vadd.f32 0.0, %v818
        %v820 = vpop.f32.mrb[0].mxu0
        %v821 = vadd.f32 0.0, %v820
        %v822 = vpop.f32.mrb[0].mxu0
        %v823 = vadd.f32 0.0, %v822
        %v824 = vpop.f32.mrb[0].mxu0
        %v825 = vadd.f32 0.0, %v824
        %826 = vdwg.mxu0
        %v835 = vunpack.c.l.b16 %v441
        %v836 = vunpack.c.l.b16 %v442
        %v837 = vunpack.c.l.b16 %v443
        %v838 = vunpack.c.l.b16 %v444
        %v839 = vunpack.c.l.b16 %v445
        %v840 = vunpack.c.l.b16 %v446
        %v841 = vunpack.c.l.b16 %v447
        %v842 = vunpack.c.l.b16 %v448
        %v843 = vpack.c.b16 %v836, %v835
        %v844 = vpack.c.b16 %v838, %v837
        %v845 = vpack.c.b16 %v840, %v839
        %v846 = vpack.c.b16 %v842, %v841
        %v855 = vunpack.c.l.b16 %v457
        %v856 = vunpack.c.h.b16 %v457
        %v857 = vunpack.c.l.b16 %v458
        %v858 = vunpack.c.h.b16 %v458
        %v859 = vunpack.c.l.b16 %v459
        %v860 = vunpack.c.h.b16 %v459
        %v861 = vunpack.c.l.b16 %v460
        %v862 = vunpack.c.h.b16 %v460
        %v863 = vunpack.c.l.b16 %v461
        %v864 = vunpack.c.h.b16 %v461
        %v865 = vunpack.c.l.b16 %v462
        %v866 = vunpack.c.h.b16 %v462
        %v867 = vunpack.c.l.b16 %v463
        %v868 = vunpack.c.h.b16 %v463
        %v869 = vunpack.c.l.b16 %v464
        %v870 = vunpack.c.h.b16 %v464
        %v871 = vpack.c.b16 %v859, %v855
        %v872 = vpack.c.b16 %v860, %v856
        %v873 = vpack.c.b16 %v861, %v857
        %v874 = vpack.c.b16 %v862, %v858
        %v875 = vpack.c.b16 %v867, %v863
        %v876 = vpack.c.b16 %v868, %v864
        %v877 = vpack.c.b16 %v869, %v865
        %v878 = vpack.c.b16 %v870, %v866
        %vm887 = vcmask 261120
        %v889 = vsel %vm887, %v843, 0
        %v892 = vsel %vm887, %v844, 0
        %v895 = vsel %vm887, %v845, 0
        %v898 = vsel %vm887, %v846, 0
        %900 = vmatprep.subr.bf16.mxu0 %v872
        %901 = vmatpush1.bf16.msra.mxu0 %v871
        %902 = vmatprep.subr.bf16.mxu0 %v876
        %903 = vmatpush1.bf16.msra.mxu0 %v875
        %904 = vmatprep.subr.bf16.mxu0 0
        %905 = vmatpush1.bf16.msra.mxu0 0
        %906 = vmatprep.subr.bf16.mxu0 0
        %907 = vmatpush1.bf16.msra.mxu0 0
        %908 = vmatprep.subr.bf16.mxu0 0
        %909 = vmatpush1.bf16.msra.mxu0 0
        %910 = vmatprep.subr.bf16.mxu0 0
        %911 = vmatpush1.bf16.msra.mxu0 0
        %912 = vmatprep.subr.bf16.mxu0 0
        %913 = vmatpush1.bf16.msra.mxu0 0
        %914 = vmatprep.subr.bf16.mxu0 0
        %915 = vmatpush1.bf16.msra.mxu0 0
        %916 = vmatprep.subr.bf16.mxu0 0
        %917 = vmatpush1.bf16.msra.mxu0 0
        %918 = vmatprep.subr.bf16.mxu0 0
        %919 = vmatpush1.bf16.msra.mxu0 0
        %920 = vmatprep.subr.bf16.mxu0 0
        %921 = vmatpush1.bf16.msra.mxu0 0
        %922 = vmatprep.subr.bf16.mxu0 0
        %923 = vmatpush1.bf16.msra.mxu0 0
        %924 = vmatprep.subr.bf16.mxu0 0
        %925 = vmatpush1.bf16.msra.mxu0 0
        %926 = vmatprep.subr.bf16.mxu0 0
        %927 = vmatpush1.bf16.msra.mxu0 0
        %928 = vmatprep.subr.bf16.mxu0 0
        %929 = vmatpush1.bf16.msra.mxu0 0
        %930 = vmatprep.subr.bf16.mxu0 0
        %931 = vmatpush1.bf16.msra.mxu0 0
        %932 = vmatprep.mubr.bf16.mxu0 0
        %933 = vmatmul.mubr.bf16.gmra.mrb[0].mxu0 %v889
        %v934 = vpop.f32.mrb[0].mxu0
        %v935 = vadd.f32 %v716, %v934
        %v936 = vpop.f32.mrb[0].mxu0
        %v937 = vadd.f32 %v718, %v936
        %v938 = vpop.f32.mrb[0].mxu0
        %v939 = vadd.f32 %v720, %v938
        %v940 = vpop.f32.mrb[0].mxu0
        %v941 = vadd.f32 %v722, %v940
        %942 = vmatprep.mubr.bf16.mxu0 0
        %943 = vmatmul.mubr.bf16.gmra.mrb[0].mxu0 %v892
        %v944 = vpop.f32.mrb[0].mxu0
        %v945 = vadd.f32 %v726, %v944
        %v946 = vpop.f32.mrb[0].mxu0
        %v947 = vadd.f32 %v728, %v946
        %v948 = vpop.f32.mrb[0].mxu0
        %v949 = vadd.f32 %v730, %v948
        %v950 = vpop.f32.mrb[0].mxu0
        %v951 = vadd.f32 %v732, %v950
        %952 = vmatprep.mubr.bf16.mxu0 0
        %953 = vmatmul.mubr.bf16.gmra.mrb[0].mxu0 %v895
        %v954 = vpop.f32.mrb[0].mxu0
        %v955 = vadd.f32 %v736, %v954
        %v956 = vpop.f32.mrb[0].mxu0
        %v957 = vadd.f32 %v738, %v956
        %v958 = vpop.f32.mrb[0].mxu0
        %v959 = vadd.f32 %v740, %v958
        %v960 = vpop.f32.mrb[0].mxu0
        %v961 = vadd.f32 %v742, %v960
        %962 = vmatprep.mubr.bf16.mxu0 0
        %963 = vmatmul.mubr.bf16.gmra.mrb[0].mxu0 %v898
        %v964 = vpop.f32.mrb[0].mxu0
        %v965 = vadd.f32 %v746, %v964
        %v966 = vpop.f32.mrb[0].mxu0
        %v967 = vadd.f32 %v748, %v966
        %v968 = vpop.f32.mrb[0].mxu0
        %v969 = vadd.f32 %v750, %v968
        %v970 = vpop.f32.mrb[0].mxu0
        %v971 = vadd.f32 %v752, %v970
        %972 = vdwg.mxu0
        %973 = vmatprep.subr.bf16.mxu0 %v874
        %974 = vmatpush1.bf16.msra.mxu0 %v873
        %975 = vmatprep.subr.bf16.mxu0 %v878
        %976 = vmatpush1.bf16.msra.mxu0 %v877
        %977 = vmatprep.subr.bf16.mxu0 0
        %978 = vmatpush1.bf16.msra.mxu0 0
        %979 = vmatprep.subr.bf16.mxu0 0
        %980 = vmatpush1.bf16.msra.mxu0 0
        %981 = vmatprep.subr.bf16.mxu0 0
        %982 = vmatpush1.bf16.msra.mxu0 0
        %983 = vmatprep.subr.bf16.mxu0 0
        %984 = vmatpush1.bf16.msra.mxu0 0
        %985 = vmatprep.subr.bf16.mxu0 0
        %986 = vmatpush1.bf16.msra.mxu0 0
        %987 = vmatprep.subr.bf16.mxu0 0
        %988 = vmatpush1.bf16.msra.mxu0 0
        %989 = vmatprep.subr.bf16.mxu0 0
        %990 = vmatpush1.bf16.msra.mxu0 0
        %991 = vmatprep.subr.bf16.mxu0 0
        %992 = vmatpush1.bf16.msra.mxu0 0
        %993 = vmatprep.subr.bf16.mxu0 0
        %994 = vmatpush1.bf16.msra.mxu0 0
        %995 = vmatprep.subr.bf16.mxu0 0
        %996 = vmatpush1.bf16.msra.mxu0 0
        %997 = vmatprep.subr.bf16.mxu0 0
        %998 = vmatpush1.bf16.msra.mxu0 0
        %999 = vmatprep.subr.bf16.mxu0 0
        %1000 = vmatpush1.bf16.msra.mxu0 0
        %1001 = vmatprep.subr.bf16.mxu0 0
        %1002 = vmatpush1.bf16.msra.mxu0 0
        %1003 = vmatprep.subr.bf16.mxu0 0
        %1004 = vmatpush1.bf16.msra.mxu0 0
        %1005 = vmatprep.mubr.bf16.mxu0 0
        %1006 = vmatmul.mubr.bf16.gmra.mrb[0].mxu0 %v889
        %v1007 = vpop.f32.mrb[0].mxu0
        %v1008 = vadd.f32 %v789, %v1007
        %v1009 = vpop.f32.mrb[0].mxu0
        %v1010 = vadd.f32 %v791, %v1009
        %v1011 = vpop.f32.mrb[0].mxu0
        %v1012 = vadd.f32 %v793, %v1011
        %v1013 = vpop.f32.mrb[0].mxu0
        %v1014 = vadd.f32 %v795, %v1013
        %1015 = vmatprep.mubr.bf16.mxu0 0
        %1016 = vmatmul.mubr.bf16.gmra.mrb[0].mxu0 %v892
        %v1017 = vpop.f32.mrb[0].mxu0
        %v1018 = vadd.f32 %v799, %v1017
        %v1019 = vpop.f32.mrb[0].mxu0
        %v1020 = vadd.f32 %v801, %v1019
        %v1021 = vpop.f32.mrb[0].mxu0
        %v1022 = vadd.f32 %v803, %v1021
        %v1023 = vpop.f32.mrb[0].mxu0
        %v1024 = vadd.f32 %v805, %v1023
        %1025 = vmatprep.mubr.bf16.mxu0 0
        %1026 = vmatmul.mubr.bf16.gmra.mrb[0].mxu0 %v895
        %v1027 = vpop.f32.mrb[0].mxu0
        %v1028 = vadd.f32 %v809, %v1027
        %v1029 = vpop.f32.mrb[0].mxu0
        %v1030 = vadd.f32 %v811, %v1029
        %v1031 = vpop.f32.mrb[0].mxu0
        %v1032 = vadd.f32 %v813, %v1031
        %v1033 = vpop.f32.mrb[0].mxu0
        %v1034 = vadd.f32 %v815, %v1033
        %1035 = vmatprep.mubr.bf16.mxu0 0
        %1036 = vmatmul.mubr.bf16.gmra.mrb[0].mxu0 %v898
        %v1037 = vpop.f32.mrb[0].mxu0
        %v1038 = vadd.f32 %v819, %v1037
        %v1039 = vpop.f32.mrb[0].mxu0
        %v1040 = vadd.f32 %v821, %v1039
        %v1041 = vpop.f32.mrb[0].mxu0
        %v1042 = vadd.f32 %v823, %v1041
        %v1043 = vpop.f32.mrb[0].mxu0
        %v1044 = vadd.f32 %v825, %v1043
        %1045 = vdwg.mxu0
        %v1046 = vld [vmem:[%s6] sm:$0xf]
        %v1048 = vlaneseq
        %v1049 = vshrl.u32 %v1048, 7
        %v1050 = vsub.s32 0, %v1049
        %v1051 = vrot.slane %v1046, %v1050
        %v1052 = vlaneseq
        %v1053 = vshrl.u32 %v1052, 7
        %v1054 = vsub.s32 1, %v1053
        %v1055 = vrot.slane %v1046, %v1054
        %v1056 = vlaneseq
        %v1057 = vshrl.u32 %v1056, 7
        %v1058 = vsub.s32 2, %v1057
        %v1059 = vrot.slane %v1046, %v1058
        %v1060 = vlaneseq
        %v1061 = vshrl.u32 %v1060, 7
        %v1062 = vsub.s32 3, %v1061
        %v1063 = vrot.slane %v1046, %v1062
        %v1068 = vadd.f32 %v935, %v1051
        %v1069 = vadd.f32 %v937, %v1055
        %v1070 = vadd.f32 %v1008, %v1059
        %v1071 = vadd.f32 %v1010, %v1063
        %v1072 = vadd.f32 %v939, %v1051
        %v1073 = vadd.f32 %v941, %v1055
        %v1074 = vadd.f32 %v1012, %v1059
        %v1075 = vadd.f32 %v1014, %v1063
        %v1076 = vadd.f32 %v945, %v1051
        %v1077 = vadd.f32 %v947, %v1055
        %v1078 = vadd.f32 %v1018, %v1059
        %v1079 = vadd.f32 %v1020, %v1063
        %v1080 = vadd.f32 %v949, %v1051
        %v1081 = vadd.f32 %v951, %v1055
        %v1082 = vadd.f32 %v1022, %v1059
        %v1083 = vadd.f32 %v1024, %v1063
        %v1084 = vadd.f32 %v955, %v1051
        %v1085 = vadd.f32 %v957, %v1055
        %v1086 = vadd.f32 %v1028, %v1059
        %v1087 = vadd.f32 %v1030, %v1063
        %v1088 = vadd.f32 %v959, %v1051
        %v1089 = vadd.f32 %v961, %v1055
        %v1090 = vadd.f32 %v1032, %v1059
        %v1091 = vadd.f32 %v1034, %v1063
        %v1092 = vadd.f32 %v965, %v1051
        %v1093 = vadd.f32 %v967, %v1055
        %v1094 = vadd.f32 %v1038, %v1059
        %v1095 = vadd.f32 %v1040, %v1063
        %v1096 = vadd.f32 %v969, %v1051
        %v1097 = vadd.f32 %v971, %v1055
        %v1098 = vadd.f32 %v1042, %v1059
        %v1099 = vadd.f32 %v1044, %v1063
        %v1100 = vld [vmem:[%s4] sm:$0xff]
        %v1101 = vld [vmem:[%s4 + $0x8] sm:$0xff]
        %v1102 = vld [vmem:[%s4 + $0x10] sm:$0xff]
        %v1103 = vld [vmem:[%s4 + $0x18] sm:$0xff]
        %v1104 = vld [vmem:[%s4 + $0x20] sm:$0xff]
        %v1105 = vld [vmem:[%s4 + $0x28] sm:$0xff]
        %v1106 = vld [vmem:[%s4 + $0x30] sm:$0xff]
        %v1107 = vld [vmem:[%s4 + $0x38] sm:$0xff]
        %v1108 = vld [vmem:[%s5] sm:$0xff]
        %v1109 = vld [vmem:[%s5 + $0x8] sm:$0xff]
        %v1110 = vld [vmem:[%s5 + $0x10] sm:$0xff]
        %v1111 = vld [vmem:[%s5 + $0x18] sm:$0xff]
        %v1112 = vld [vmem:[%s5 + $0x20] sm:$0xff]
        %v1113 = vld [vmem:[%s5 + $0x28] sm:$0xff]
        %v1114 = vld [vmem:[%s5 + $0x30] sm:$0xff]
        %v1115 = vld [vmem:[%s5 + $0x38] sm:$0xff]
        %v1124 = vunpack.c.l.b16 %v1100
        %v1125 = vunpack.c.h.b16 %v1100
        %v1126 = vunpack.c.l.b16 %v1101
        %v1127 = vunpack.c.h.b16 %v1101
        %v1128 = vunpack.c.l.b16 %v1102
        %v1129 = vunpack.c.h.b16 %v1102
        %v1130 = vunpack.c.l.b16 %v1103
        %v1131 = vunpack.c.h.b16 %v1103
        %v1132 = vunpack.c.l.b16 %v1104
        %v1133 = vunpack.c.h.b16 %v1104
        %v1134 = vunpack.c.l.b16 %v1105
        %v1135 = vunpack.c.h.b16 %v1105
        %v1136 = vunpack.c.l.b16 %v1106
        %v1137 = vunpack.c.h.b16 %v1106
        %v1138 = vunpack.c.l.b16 %v1107
        %v1139 = vunpack.c.h.b16 %v1107
        %v1140 = vpack.c.b16 %v1126, %v1124
        %v1141 = vpack.c.b16 %v1127, %v1125
        %v1142 = vpack.c.b16 %v1130, %v1128
        %v1143 = vpack.c.b16 %v1131, %v1129
        %v1144 = vpack.c.b16 %v1134, %v1132
        %v1145 = vpack.c.b16 %v1135, %v1133
        %v1146 = vpack.c.b16 %v1138, %v1136
        %v1147 = vpack.c.b16 %v1139, %v1137
        %vm1156 = vcmask 523264
        %v1158 = vsel %vm1156, 0, 0
        %1160 = vmatprep.subr.bf16.mxu0 %v1141
        %1161 = vmatpush1.bf16.msra.mxu0 %v1140
        %1162 = vmatprep.subr.bf16.mxu0 %v1143
        %1163 = vmatpush1.bf16.msra.mxu0 %v1142
        %1164 = vmatprep.subr.bf16.mxu0 %v1145
        %1165 = vmatpush1.bf16.msra.mxu0 %v1144
        %1166 = vmatprep.subr.bf16.mxu0 %v1147
        %1167 = vmatpush1.bf16.msra.mxu0 %v1146
        %1168 = vmatprep.subr.bf16.mxu0 0
        %1169 = vmatpush1.bf16.msra.mxu0 0
        %1170 = vmatprep.subr.bf16.mxu0 0
        %1171 = vmatpush1.bf16.msra.mxu0 0
        %1172 = vmatprep.subr.bf16.mxu0 0
        %1173 = vmatpush1.bf16.msra.mxu0 0
        %1174 = vmatprep.subr.bf16.mxu0 0
        %1175 = vmatpush1.bf16.msra.mxu0 0
        %1176 = vmatprep.subr.bf16.mxu0 0
        %1177 = vmatpush1.bf16.msra.mxu0 0
        %1178 = vmatprep.subr.bf16.mxu0 0
        %1179 = vmatpush1.bf16.msra.mxu0 0
        %1180 = vmatprep.subr.bf16.mxu0 0
        %1181 = vmatpush1.bf16.msra.mxu0 0
        %1182 = vmatprep.subr.bf16.mxu0 0
        %1183 = vmatpush1.bf16.msra.mxu0 0
        %1184 = vmatprep.subr.bf16.mxu0 0
        %1185 = vmatpush1.bf16.msra.mxu0 0
        %1186 = vmatprep.subr.bf16.mxu0 0
        %1187 = vmatpush1.bf16.msra.mxu0 0
        %1188 = vmatprep.subr.bf16.mxu0 0
        %1189 = vmatpush1.bf16.msra.mxu0 0
        %1190 = vmatprep.subr.bf16.mxu0 0
        %1191 = vmatpush1.bf16.msra.mxu0 0
        %1192 = vmatprep.mubr.bf16.mxu0 0
        %1193 = vmatmul.mubr.bf16.gmra.mrb[0].mxu0 %v1158
        %v1194 = vpop.f32.mrb[0].mxu0
        %v1195 = vadd.f32 0.0, %v1194
        %v1196 = vpop.f32.mrb[0].mxu0
        %v1197 = vadd.f32 0.0, %v1196
        %v1198 = vpop.f32.mrb[0].mxu0
        %v1199 = vadd.f32 0.0, %v1198
        %v1200 = vpop.f32.mrb[0].mxu0
        %v1201 = vadd.f32 0.0, %v1200
        %1202 = vdwg.mxu0
        %v1203 = vadd.f32 %v1068, %v1195
        %v1204 = vadd.f32 %v1069, %v1197
        %v1205 = vadd.f32 %v1072, %v1199
        %v1206 = vadd.f32 %v1073, %v1201
        %v1207 = vxor.u32 %v1203, 2147483648
        %v1208 = vxor.u32 %v1205, 2147483648
        %v1209 = vmul.f32 %v1207, 1.442695
        %v1210 = vpow.pop %v1209
        %v1211 = vmul.f32 %v1208, 1.442695
        %v1212 = vpow.pop %v1211
        %v1213 = vadd.f32 %v1210, 1.0
        %v1214 = vadd.f32 %v1212, 1.0
        %v1215 = vrcp.pop %v1213
        %v1216 = vmul.f32 1.0, %v1215
        %v1217 = vrcp.pop %v1214
        %v1218 = vmul.f32 1.0, %v1217
        %v1219 = vtanh.pop %v1204
        %v1220 = vtanh.pop %v1206
        %v1221 = vxor.u32 %v1204, 2147483648
        %v1222 = vxor.u32 %v1206, 2147483648
        %v1223 = vmul.f32 %v1221, 1.442695
        %v1224 = vpow.pop %v1223
        %v1225 = vmul.f32 %v1222, 1.442695
        %v1226 = vpow.pop %v1225
        %v1227 = vadd.f32 %v1224, 1.0
        %v1228 = vadd.f32 %v1226, 1.0
        %v1229 = vrcp.pop %v1227
        %v1230 = vmul.f32 1.0, %v1229
        %v1231 = vrcp.pop %v1228
        %v1232 = vmul.f32 1.0, %v1231
        %v1233 = vmul.f32 %v1216, 0.0
        %v1234 = vmul.f32 %v1218, 0.0
        %v1235 = vmul.f32 %v1216, %v1219
        %v1236 = vmul.f32 %v1218, %v1220
        %1239 = vrot.lane.b32.xlu0 %v1235, 64
        %v1240 = vpop.permute.xlu0 %1239
        %1241 = vrot.lane.b32.xlu0 %v1236, 64
        %v1242 = vpop.permute.xlu0 %1241
        %v1245 = vadd.f32 %v1233, %v1240
        %v1246 = vadd.f32 %v1234, %v1242
        %v1247 = vtanh.pop %v1245
        %v1248 = vtanh.pop %v1246
        %v1249 = vmul.f32 %v1230, %v1247
        %v1250 = vmul.f32 %v1232, %v1248
        %v1259 = vunpack.c.l.b16 %v1108
        %v1260 = vunpack.c.h.b16 %v1108
        %v1261 = vunpack.c.l.b16 %v1109
        %v1262 = vunpack.c.h.b16 %v1109
        %v1263 = vunpack.c.l.b16 %v1110
        %v1264 = vunpack.c.h.b16 %v1110
        %v1265 = vunpack.c.l.b16 %v1111
        %v1266 = vunpack.c.h.b16 %v1111
        %v1267 = vunpack.c.l.b16 %v1112
        %v1268 = vunpack.c.h.b16 %v1112
        %v1269 = vunpack.c.l.b16 %v1113
        %v1270 = vunpack.c.h.b16 %v1113
        %v1271 = vunpack.c.l.b16 %v1114
        %v1272 = vunpack.c.h.b16 %v1114
        %v1273 = vunpack.c.l.b16 %v1115
        %v1274 = vunpack.c.h.b16 %v1115
        %v1275 = vpack.c.b16 %v1261, %v1259
        %v1276 = vpack.c.b16 %v1262, %v1260
        %v1277 = vpack.c.b16 %v1265, %v1263
        %v1278 = vpack.c.b16 %v1266, %v1264
        %v1279 = vpack.c.b16 %v1269, %v1267
        %v1280 = vpack.c.b16 %v1270, %v1268
        %v1281 = vpack.c.b16 %v1273, %v1271
        %v1282 = vpack.c.b16 %v1274, %v1272
        %1291 = vmatprep.subr.bf16.mxu0 %v1276
        %1292 = vmatpush1.bf16.msra.mxu0 %v1275
        %1293 = vmatprep.subr.bf16.mxu0 %v1278
        %1294 = vmatpush1.bf16.msra.mxu0 %v1277
        %1295 = vmatprep.subr.bf16.mxu0 %v1280
        %1296 = vmatpush1.bf16.msra.mxu0 %v1279
        %1297 = vmatprep.subr.bf16.mxu0 %v1282
        %1298 = vmatpush1.bf16.msra.mxu0 %v1281
        %1299 = vmatprep.subr.bf16.mxu0 0
        %1300 = vmatpush1.bf16.msra.mxu0 0
        %1301 = vmatprep.subr.bf16.mxu0 0
        %1302 = vmatpush1.bf16.msra.mxu0 0
        %1303 = vmatprep.subr.bf16.mxu0 0
        %1304 = vmatpush1.bf16.msra.mxu0 0
        %1305 = vmatprep.subr.bf16.mxu0 0
        %1306 = vmatpush1.bf16.msra.mxu0 0
        %1307 = vmatprep.subr.bf16.mxu0 0
        %1308 = vmatpush1.bf16.msra.mxu0 0
        %1309 = vmatprep.subr.bf16.mxu0 0
        %1310 = vmatpush1.bf16.msra.mxu0 0
        %1311 = vmatprep.subr.bf16.mxu0 0
        %1312 = vmatpush1.bf16.msra.mxu0 0
        %1313 = vmatprep.subr.bf16.mxu0 0
        %1314 = vmatpush1.bf16.msra.mxu0 0
        %1315 = vmatprep.subr.bf16.mxu0 0
        %1316 = vmatpush1.bf16.msra.mxu0 0
        %1317 = vmatprep.subr.bf16.mxu0 0
        %1318 = vmatpush1.bf16.msra.mxu0 0
        %1319 = vmatprep.subr.bf16.mxu0 0
        %1320 = vmatpush1.bf16.msra.mxu0 0
        %1321 = vmatprep.subr.bf16.mxu0 0
        %1322 = vmatpush1.bf16.msra.mxu0 0
        %1323 = vmatprep.mubr.bf16.mxu0 0
        %1324 = vmatmul.mubr.bf16.gmra.mrb[0].mxu0 %v1158
        %v1325 = vpop.f32.mrb[0].mxu0
        %v1326 = vadd.f32 0.0, %v1325
        %v1327 = vpop.f32.mrb[0].mxu0
        %v1328 = vadd.f32 0.0, %v1327
        %v1329 = vpop.f32.mrb[0].mxu0
        %v1330 = vadd.f32 0.0, %v1329
        %v1331 = vpop.f32.mrb[0].mxu0
        %v1332 = vadd.f32 0.0, %v1331
        %1333 = vdwg.mxu0
        %v1334 = vadd.f32 %v1094, %v1326
        %v1335 = vadd.f32 %v1095, %v1328
        %v1336 = vadd.f32 %v1098, %v1330
        %v1337 = vadd.f32 %v1099, %v1332
        %v1338 = vxor.u32 %v1334, 2147483648
        %v1339 = vxor.u32 %v1336, 2147483648
        %v1340 = vmul.f32 %v1338, 1.442695
        %v1341 = vpow.pop %v1340
        %v1342 = vmul.f32 %v1339, 1.442695
        %v1343 = vpow.pop %v1342
        %v1344 = vadd.f32 %v1341, 1.0
        %v1345 = vadd.f32 %v1343, 1.0
        %v1346 = vrcp.pop %v1344
        %v1347 = vmul.f32 1.0, %v1346
        %v1348 = vrcp.pop %v1345
        %v1349 = vmul.f32 1.0, %v1348
        %v1350 = vtanh.pop %v1335
        %v1351 = vtanh.pop %v1337
        %v1352 = vxor.u32 %v1335, 2147483648
        %v1353 = vxor.u32 %v1337, 2147483648
        %v1354 = vmul.f32 %v1352, 1.442695
        %v1355 = vpow.pop %v1354
        %v1356 = vmul.f32 %v1353, 1.442695
        %v1357 = vpow.pop %v1356
        %v1358 = vadd.f32 %v1355, 1.0
        %v1359 = vadd.f32 %v1357, 1.0
        %v1360 = vrcp.pop %v1358
        %v1361 = vmul.f32 1.0, %v1360
        %v1362 = vrcp.pop %v1359
        %v1363 = vmul.f32 1.0, %v1362
        %v1364 = vmul.f32 %v1347, 0.0
        %v1365 = vmul.f32 %v1349, 0.0
        %v1366 = vmul.f32 %v1347, %v1350
        %v1367 = vmul.f32 %v1349, %v1351
        %1370 = vrot.lane.b32.xlu0 %v1366, 64
        %v1371 = vpop.permute.xlu0 %1370
        %1372 = vrot.lane.b32.xlu0 %v1367, 64
        %v1373 = vpop.permute.xlu0 %1372
        %v1376 = vadd.f32 %v1364, %v1371
        %v1377 = vadd.f32 %v1365, %v1373
        %v1378 = vtanh.pop %v1376
        %v1379 = vtanh.pop %v1377
        %v1380 = vmul.f32 %v1361, %v1378
        %v1381 = vmul.f32 %v1363, %v1379
        %v1382 = vpack.c.bf16 %v1250, %v1249
        %1384 = vrot.lane.b32.xlu0 %v1382, 64
        %v1385 = vpop.permute.xlu0 %1384
        %v1387 = vsel %vm1156, %v1385, 0
        %1389 = vmatprep.subr.bf16.mxu0 %v1141
        %1390 = vmatpush1.bf16.msra.mxu0 %v1140
        %1391 = vmatprep.subr.bf16.mxu0 %v1143
        %1392 = vmatpush1.bf16.msra.mxu0 %v1142
        %1393 = vmatprep.subr.bf16.mxu0 %v1145
        %1394 = vmatpush1.bf16.msra.mxu0 %v1144
        %1395 = vmatprep.subr.bf16.mxu0 %v1147
        %1396 = vmatpush1.bf16.msra.mxu0 %v1146
        %1397 = vmatprep.subr.bf16.mxu0 0
        %1398 = vmatpush1.bf16.msra.mxu0 0
        %1399 = vmatprep.subr.bf16.mxu0 0
        %1400 = vmatpush1.bf16.msra.mxu0 0
        %1401 = vmatprep.subr.bf16.mxu0 0
        %1402 = vmatpush1.bf16.msra.mxu0 0
        %1403 = vmatprep.subr.bf16.mxu0 0
        %1404 = vmatpush1.bf16.msra.mxu0 0
        %1405 = vmatprep.subr.bf16.mxu0 0
        %1406 = vmatpush1.bf16.msra.mxu0 0
        %1407 = vmatprep.subr.bf16.mxu0 0
        %1408 = vmatpush1.bf16.msra.mxu0 0
        %1409 = vmatprep.subr.bf16.mxu0 0
        %1410 = vmatpush1.bf16.msra.mxu0 0
        %1411 = vmatprep.subr.bf16.mxu0 0
        %1412 = vmatpush1.bf16.msra.mxu0 0
        %1413 = vmatprep.subr.bf16.mxu0 0
        %1414 = vmatpush1.bf16.msra.mxu0 0
        %1415 = vmatprep.subr.bf16.mxu0 0
        %1416 = vmatpush1.bf16.msra.mxu0 0
        %1417 = vmatprep.subr.bf16.mxu0 0
        %1418 = vmatpush1.bf16.msra.mxu0 0
        %1419 = vmatprep.subr.bf16.mxu0 0
        %1420 = vmatpush1.bf16.msra.mxu0 0
        %1421 = vmatprep.mubr.bf16.mxu0 0
        %1422 = vmatmul.mubr.bf16.gmra.mrb[0].mxu0 %v1387
        %v1423 = vpop.f32.mrb[0].mxu0
        %v1424 = vadd.f32 0.0, %v1423
        %v1425 = vpop.f32.mrb[0].mxu0
        %v1426 = vadd.f32 0.0, %v1425
        %v1427 = vpop.f32.mrb[0].mxu0
        %v1428 = vadd.f32 0.0, %v1427
        %v1429 = vpop.f32.mrb[0].mxu0
        %v1430 = vadd.f32 0.0, %v1429
        %1431 = vdwg.mxu0
        %v1432 = vadd.f32 %v1076, %v1424
        %v1433 = vadd.f32 %v1077, %v1426
        %v1434 = vadd.f32 %v1080, %v1428
        %v1435 = vadd.f32 %v1081, %v1430
        %v1436 = vxor.u32 %v1432, 2147483648
        %v1437 = vxor.u32 %v1434, 2147483648
        %v1438 = vmul.f32 %v1436, 1.442695
        %v1439 = vpow.pop %v1438
        %v1440 = vmul.f32 %v1437, 1.442695
        %v1441 = vpow.pop %v1440
        %v1442 = vadd.f32 %v1439, 1.0
        %v1443 = vadd.f32 %v1441, 1.0
        %v1444 = vrcp.pop %v1442
        %v1445 = vmul.f32 1.0, %v1444
        %v1446 = vrcp.pop %v1443
        %v1447 = vmul.f32 1.0, %v1446
        %v1448 = vtanh.pop %v1433
        %v1449 = vtanh.pop %v1435
        %v1450 = vxor.u32 %v1433, 2147483648
        %v1451 = vxor.u32 %v1435, 2147483648
        %v1452 = vmul.f32 %v1450, 1.442695
        %v1453 = vpow.pop %v1452
        %v1454 = vmul.f32 %v1451, 1.442695
        %v1455 = vpow.pop %v1454
        %v1456 = vadd.f32 %v1453, 1.0
        %v1457 = vadd.f32 %v1455, 1.0
        %v1458 = vrcp.pop %v1456
        %v1459 = vmul.f32 1.0, %v1458
        %v1460 = vrcp.pop %v1457
        %v1461 = vmul.f32 1.0, %v1460
        %v1462 = vmul.f32 %v1445, %v1245
        %v1463 = vmul.f32 %v1447, %v1246
        %v1464 = vmul.f32 %v1445, %v1448
        %v1465 = vmul.f32 %v1447, %v1449
        %1468 = vrot.lane.b32.xlu0 %v1464, 64
        %v1469 = vpop.permute.xlu0 %1468
        %1470 = vrot.lane.b32.xlu0 %v1465, 64
        %v1471 = vpop.permute.xlu0 %1470
        %v1474 = vadd.f32 %v1462, %v1469
        %v1475 = vadd.f32 %v1463, %v1471
        %v1476 = vtanh.pop %v1474
        %v1477 = vtanh.pop %v1475
        %v1478 = vmul.f32 %v1459, %v1476
        %v1479 = vmul.f32 %v1461, %v1477
        %v1480 = vpack.c.bf16 %v1381, %v1380
        %1482 = vrot.lane.b32.xlu0 %v1480, 64
        %v1483 = vpop.permute.xlu0 %1482
        %v1485 = vsel %vm1156, %v1483, 0
        %1487 = vmatprep.subr.bf16.mxu0 %v1276
        %1488 = vmatpush1.bf16.msra.mxu0 %v1275
        %1489 = vmatprep.subr.bf16.mxu0 %v1278
        %1490 = vmatpush1.bf16.msra.mxu0 %v1277
        %1491 = vmatprep.subr.bf16.mxu0 %v1280
        %1492 = vmatpush1.bf16.msra.mxu0 %v1279
        %1493 = vmatprep.subr.bf16.mxu0 %v1282
        %1494 = vmatpush1.bf16.msra.mxu0 %v1281
        %1495 = vmatprep.subr.bf16.mxu0 0
        %1496 = vmatpush1.bf16.msra.mxu0 0
        %1497 = vmatprep.subr.bf16.mxu0 0
        %1498 = vmatpush1.bf16.msra.mxu0 0
        %1499 = vmatprep.subr.bf16.mxu0 0
        %1500 = vmatpush1.bf16.msra.mxu0 0
        %1501 = vmatprep.subr.bf16.mxu0 0
        %1502 = vmatpush1.bf16.msra.mxu0 0
        %1503 = vmatprep.subr.bf16.mxu0 0
        %1504 = vmatpush1.bf16.msra.mxu0 0
        %1505 = vmatprep.subr.bf16.mxu0 0
        %1506 = vmatpush1.bf16.msra.mxu0 0
        %1507 = vmatprep.subr.bf16.mxu0 0
        %1508 = vmatpush1.bf16.msra.mxu0 0
        %1509 = vmatprep.subr.bf16.mxu0 0
        %1510 = vmatpush1.bf16.msra.mxu0 0
        %1511 = vmatprep.subr.bf16.mxu0 0
        %1512 = vmatpush1.bf16.msra.mxu0 0
        %1513 = vmatprep.subr.bf16.mxu0 0
        %1514 = vmatpush1.bf16.msra.mxu0 0
        %1515 = vmatprep.subr.bf16.mxu0 0
        %1516 = vmatpush1.bf16.msra.mxu0 0
        %1517 = vmatprep.subr.bf16.mxu0 0
        %1518 = vmatpush1.bf16.msra.mxu0 0
        %1519 = vmatprep.mubr.bf16.mxu0 0
        %1520 = vmatmul.mubr.bf16.gmra.mrb[0].mxu0 %v1485
        %v1521 = vpop.f32.mrb[0].mxu0
        %v1522 = vadd.f32 0.0, %v1521
        %v1523 = vpop.f32.mrb[0].mxu0
        %v1524 = vadd.f32 0.0, %v1523
        %v1525 = vpop.f32.mrb[0].mxu0
        %v1526 = vadd.f32 0.0, %v1525
        %v1527 = vpop.f32.mrb[0].mxu0
        %v1528 = vadd.f32 0.0, %v1527
        %1529 = vdwg.mxu0
        %v1530 = vadd.f32 %v1086, %v1522
        %v1531 = vadd.f32 %v1087, %v1524
        %v1532 = vadd.f32 %v1090, %v1526
        %v1533 = vadd.f32 %v1091, %v1528
        %v1534 = vxor.u32 %v1530, 2147483648
        %v1535 = vxor.u32 %v1532, 2147483648
        %v1536 = vmul.f32 %v1534, 1.442695
        %v1537 = vpow.pop %v1536
        %v1538 = vmul.f32 %v1535, 1.442695
        %v1539 = vpow.pop %v1538
        %v1540 = vadd.f32 %v1537, 1.0
        %v1541 = vadd.f32 %v1539, 1.0
        %v1542 = vrcp.pop %v1540
        %v1543 = vmul.f32 1.0, %v1542
        %v1544 = vrcp.pop %v1541
        %v1545 = vmul.f32 1.0, %v1544
        %v1546 = vtanh.pop %v1531
        %v1547 = vtanh.pop %v1533
        %v1548 = vxor.u32 %v1531, 2147483648
        %v1549 = vxor.u32 %v1533, 2147483648
        %v1550 = vmul.f32 %v1548, 1.442695
        %v1551 = vpow.pop %v1550
        %v1552 = vmul.f32 %v1549, 1.442695
        %v1553 = vpow.pop %v1552
        %v1554 = vadd.f32 %v1551, 1.0
        %v1555 = vadd.f32 %v1553, 1.0
        %v1556 = vrcp.pop %v1554
        %v1557 = vmul.f32 1.0, %v1556
        %v1558 = vrcp.pop %v1555
        %v1559 = vmul.f32 1.0, %v1558
        %v1560 = vmul.f32 %v1543, %v1376
        %v1561 = vmul.f32 %v1545, %v1377
        %v1562 = vmul.f32 %v1543, %v1546
        %v1563 = vmul.f32 %v1545, %v1547
        %1566 = vrot.lane.b32.xlu0 %v1562, 64
        %v1567 = vpop.permute.xlu0 %1566
        %1568 = vrot.lane.b32.xlu0 %v1563, 64
        %v1569 = vpop.permute.xlu0 %1568
        %v1572 = vadd.f32 %v1560, %v1567
        %v1573 = vadd.f32 %v1561, %v1569
        %v1574 = vtanh.pop %v1572
        %v1575 = vtanh.pop %v1573
        %v1576 = vmul.f32 %v1557, %v1574
        %v1577 = vmul.f32 %v1559, %v1575
        %v1578 = vpack.c.bf16 %v1479, %v1478
        %1580 = vrot.lane.b32.xlu0 %v1578, 64
        %v1581 = vpop.permute.xlu0 %1580
        %v1583 = vsel %vm1156, %v1581, 0
        %1585 = vmatprep.subr.bf16.mxu0 %v1141
        %1586 = vmatpush1.bf16.msra.mxu0 %v1140
        %1587 = vmatprep.subr.bf16.mxu0 %v1143
        %1588 = vmatpush1.bf16.msra.mxu0 %v1142
        %1589 = vmatprep.subr.bf16.mxu0 %v1145
        %1590 = vmatpush1.bf16.msra.mxu0 %v1144
        %1591 = vmatprep.subr.bf16.mxu0 %v1147
        %1592 = vmatpush1.bf16.msra.mxu0 %v1146
        %1593 = vmatprep.subr.bf16.mxu0 0
        %1594 = vmatpush1.bf16.msra.mxu0 0
        %1595 = vmatprep.subr.bf16.mxu0 0
        %1596 = vmatpush1.bf16.msra.mxu0 0
        %1597 = vmatprep.subr.bf16.mxu0 0
        %1598 = vmatpush1.bf16.msra.mxu0 0
        %1599 = vmatprep.subr.bf16.mxu0 0
        %1600 = vmatpush1.bf16.msra.mxu0 0
        %1601 = vmatprep.subr.bf16.mxu0 0
        %1602 = vmatpush1.bf16.msra.mxu0 0
        %1603 = vmatprep.subr.bf16.mxu0 0
        %1604 = vmatpush1.bf16.msra.mxu0 0
        %1605 = vmatprep.subr.bf16.mxu0 0
        %1606 = vmatpush1.bf16.msra.mxu0 0
        %1607 = vmatprep.subr.bf16.mxu0 0
        %1608 = vmatpush1.bf16.msra.mxu0 0
        %1609 = vmatprep.subr.bf16.mxu0 0
        %1610 = vmatpush1.bf16.msra.mxu0 0
        %1611 = vmatprep.subr.bf16.mxu0 0
        %1612 = vmatpush1.bf16.msra.mxu0 0
        %1613 = vmatprep.subr.bf16.mxu0 0
        %1614 = vmatpush1.bf16.msra.mxu0 0
        %1615 = vmatprep.subr.bf16.mxu0 0
        %1616 = vmatpush1.bf16.msra.mxu0 0
        %1617 = vmatprep.mubr.bf16.mxu0 0
        %1618 = vmatmul.mubr.bf16.gmra.mrb[0].mxu0 %v1583
        %v1619 = vpop.f32.mrb[0].mxu0
        %v1620 = vadd.f32 0.0, %v1619
        %v1621 = vpop.f32.mrb[0].mxu0
        %v1622 = vadd.f32 0.0, %v1621
        %v1623 = vpop.f32.mrb[0].mxu0
        %v1624 = vadd.f32 0.0, %v1623
        %v1625 = vpop.f32.mrb[0].mxu0
        %v1626 = vadd.f32 0.0, %v1625
        %1627 = vdwg.mxu0
        %v1628 = vadd.f32 %v1084, %v1620
        %v1629 = vadd.f32 %v1085, %v1622
        %v1630 = vadd.f32 %v1088, %v1624
        %v1631 = vadd.f32 %v1089, %v1626
        %v1632 = vxor.u32 %v1628, 2147483648
        %v1633 = vxor.u32 %v1630, 2147483648
        %v1634 = vmul.f32 %v1632, 1.442695
        %v1635 = vpow.pop %v1634
        %v1636 = vmul.f32 %v1633, 1.442695
        %v1637 = vpow.pop %v1636
        %v1638 = vadd.f32 %v1635, 1.0
        %v1639 = vadd.f32 %v1637, 1.0
        %v1640 = vrcp.pop %v1638
        %v1641 = vmul.f32 1.0, %v1640
        %v1642 = vrcp.pop %v1639
        %v1643 = vmul.f32 1.0, %v1642
        %v1644 = vtanh.pop %v1629
        %v1645 = vtanh.pop %v1631
        %v1646 = vxor.u32 %v1629, 2147483648
        %v1647 = vxor.u32 %v1631, 2147483648
        %v1648 = vmul.f32 %v1646, 1.442695
        %v1649 = vpow.pop %v1648
        %v1650 = vmul.f32 %v1647, 1.442695
        %v1651 = vpow.pop %v1650
        %v1652 = vadd.f32 %v1649, 1.0
        %v1653 = vadd.f32 %v1651, 1.0
        %v1654 = vrcp.pop %v1652
        %v1655 = vmul.f32 1.0, %v1654
        %v1656 = vrcp.pop %v1653
        %v1657 = vmul.f32 1.0, %v1656
        %v1658 = vmul.f32 %v1641, %v1474
        %v1659 = vmul.f32 %v1643, %v1475
        %v1660 = vmul.f32 %v1641, %v1644
        %v1661 = vmul.f32 %v1643, %v1645
        %1664 = vrot.lane.b32.xlu0 %v1660, 64
        %v1665 = vpop.permute.xlu0 %1664
        %1666 = vrot.lane.b32.xlu0 %v1661, 64
        %v1667 = vpop.permute.xlu0 %1666
        %v1670 = vadd.f32 %v1658, %v1665
        %v1671 = vadd.f32 %v1659, %v1667
        %v1672 = vtanh.pop %v1670
        %v1673 = vtanh.pop %v1671
        %v1674 = vmul.f32 %v1655, %v1672
        %v1675 = vmul.f32 %v1657, %v1673
        %v1676 = vpack.c.bf16 %v1577, %v1576
        %1678 = vrot.lane.b32.xlu0 %v1676, 64
        %v1679 = vpop.permute.xlu0 %1678
        %v1681 = vsel %vm1156, %v1679, 0
        %1683 = vmatprep.subr.bf16.mxu0 %v1276
        %1684 = vmatpush1.bf16.msra.mxu0 %v1275
        %1685 = vmatprep.subr.bf16.mxu0 %v1278
        %1686 = vmatpush1.bf16.msra.mxu0 %v1277
        %1687 = vmatprep.subr.bf16.mxu0 %v1280
        %1688 = vmatpush1.bf16.msra.mxu0 %v1279
        %1689 = vmatprep.subr.bf16.mxu0 %v1282
        %1690 = vmatpush1.bf16.msra.mxu0 %v1281
        %1691 = vmatprep.subr.bf16.mxu0 0
        %1692 = vmatpush1.bf16.msra.mxu0 0
        %1693 = vmatprep.subr.bf16.mxu0 0
        %1694 = vmatpush1.bf16.msra.mxu0 0
        %1695 = vmatprep.subr.bf16.mxu0 0
        %1696 = vmatpush1.bf16.msra.mxu0 0
        %1697 = vmatprep.subr.bf16.mxu0 0
        %1698 = vmatpush1.bf16.msra.mxu0 0
        %1699 = vmatprep.subr.bf16.mxu0 0
        %1700 = vmatpush1.bf16.msra.mxu0 0
        %1701 = vmatprep.subr.bf16.mxu0 0
        %1702 = vmatpush1.bf16.msra.mxu0 0
        %1703 = vmatprep.subr.bf16.mxu0 0
        %1704 = vmatpush1.bf16.msra.mxu0 0
        %1705 = vmatprep.subr.bf16.mxu0 0
        %1706 = vmatpush1.bf16.msra.mxu0 0
        %1707 = vmatprep.subr.bf16.mxu0 0
        %1708 = vmatpush1.bf16.msra.mxu0 0
        %1709 = vmatprep.subr.bf16.mxu0 0
        %1710 = vmatpush1.bf16.msra.mxu0 0
        %1711 = vmatprep.subr.bf16.mxu0 0
        %1712 = vmatpush1.bf16.msra.mxu0 0
        %1713 = vmatprep.subr.bf16.mxu0 0
        %1714 = vmatpush1.bf16.msra.mxu0 0
        %1715 = vmatprep.mubr.bf16.mxu0 0
        %1716 = vmatmul.mubr.bf16.gmra.mrb[0].mxu0 %v1681
        %v1717 = vpop.f32.mrb[0].mxu0
        %v1718 = vadd.f32 0.0, %v1717
        %v1719 = vpop.f32.mrb[0].mxu0
        %v1720 = vadd.f32 0.0, %v1719
        %v1721 = vpop.f32.mrb[0].mxu0
        %v1722 = vadd.f32 0.0, %v1721
        %v1723 = vpop.f32.mrb[0].mxu0
        %v1724 = vadd.f32 0.0, %v1723
        %1725 = vdwg.mxu0
        %v1726 = vadd.f32 %v1078, %v1718
        %v1727 = vadd.f32 %v1079, %v1720
        %v1728 = vadd.f32 %v1082, %v1722
        %v1729 = vadd.f32 %v1083, %v1724
        %v1730 = vxor.u32 %v1726, 2147483648
        %v1731 = vxor.u32 %v1728, 2147483648
        %v1732 = vmul.f32 %v1730, 1.442695
        %v1733 = vpow.pop %v1732
        %v1734 = vmul.f32 %v1731, 1.442695
        %v1735 = vpow.pop %v1734
        %v1736 = vadd.f32 %v1733, 1.0
        %v1737 = vadd.f32 %v1735, 1.0
        %v1738 = vrcp.pop %v1736
        %v1739 = vmul.f32 1.0, %v1738
        %v1740 = vrcp.pop %v1737
        %v1741 = vmul.f32 1.0, %v1740
        %v1742 = vtanh.pop %v1727
        %v1743 = vtanh.pop %v1729
        %v1744 = vxor.u32 %v1727, 2147483648
        %v1745 = vxor.u32 %v1729, 2147483648
        %v1746 = vmul.f32 %v1744, 1.442695
        %v1747 = vpow.pop %v1746
        %v1748 = vmul.f32 %v1745, 1.442695
        %v1749 = vpow.pop %v1748
        %v1750 = vadd.f32 %v1747, 1.0
        %v1751 = vadd.f32 %v1749, 1.0
        %v1752 = vrcp.pop %v1750
        %v1753 = vmul.f32 1.0, %v1752
        %v1754 = vrcp.pop %v1751
        %v1755 = vmul.f32 1.0, %v1754
        %v1756 = vmul.f32 %v1739, %v1572
        %v1757 = vmul.f32 %v1741, %v1573
        %v1758 = vmul.f32 %v1739, %v1742
        %v1759 = vmul.f32 %v1741, %v1743
        %1762 = vrot.lane.b32.xlu0 %v1758, 64
        %v1763 = vpop.permute.xlu0 %1762
        %1764 = vrot.lane.b32.xlu0 %v1759, 64
        %v1765 = vpop.permute.xlu0 %1764
        %v1768 = vadd.f32 %v1756, %v1763
        %v1769 = vadd.f32 %v1757, %v1765
        %v1770 = vtanh.pop %v1768
        %v1771 = vtanh.pop %v1769
        %v1772 = vmul.f32 %v1753, %v1770
        %v1773 = vmul.f32 %v1755, %v1771
        %v1774 = vpack.c.bf16 %v1675, %v1674
        %1776 = vrot.lane.b32.xlu0 %v1774, 64
        %v1777 = vpop.permute.xlu0 %1776
        %v1779 = vsel %vm1156, %v1777, 0
        %1781 = vmatprep.subr.bf16.mxu0 %v1141
        %1782 = vmatpush1.bf16.msra.mxu0 %v1140
        %1783 = vmatprep.subr.bf16.mxu0 %v1143
        %1784 = vmatpush1.bf16.msra.mxu0 %v1142
        %1785 = vmatprep.subr.bf16.mxu0 %v1145
        %1786 = vmatpush1.bf16.msra.mxu0 %v1144
        %1787 = vmatprep.subr.bf16.mxu0 %v1147
        %1788 = vmatpush1.bf16.msra.mxu0 %v1146
        %1789 = vmatprep.subr.bf16.mxu0 0
        %1790 = vmatpush1.bf16.msra.mxu0 0
        %1791 = vmatprep.subr.bf16.mxu0 0
        %1792 = vmatpush1.bf16.msra.mxu0 0
        %1793 = vmatprep.subr.bf16.mxu0 0
        %1794 = vmatpush1.bf16.msra.mxu0 0
        %1795 = vmatprep.subr.bf16.mxu0 0
        %1796 = vmatpush1.bf16.msra.mxu0 0
        %1797 = vmatprep.subr.bf16.mxu0 0
        %1798 = vmatpush1.bf16.msra.mxu0 0
        %1799 = vmatprep.subr.bf16.mxu0 0
        %1800 = vmatpush1.bf16.msra.mxu0 0
        %1801 = vmatprep.subr.bf16.mxu0 0
        %1802 = vmatpush1.bf16.msra.mxu0 0
        %1803 = vmatprep.subr.bf16.mxu0 0
        %1804 = vmatpush1.bf16.msra.mxu0 0
        %1805 = vmatprep.subr.bf16.mxu0 0
        %1806 = vmatpush1.bf16.msra.mxu0 0
        %1807 = vmatprep.subr.bf16.mxu0 0
        %1808 = vmatpush1.bf16.msra.mxu0 0
        %1809 = vmatprep.subr.bf16.mxu0 0
        %1810 = vmatpush1.bf16.msra.mxu0 0
        %1811 = vmatprep.subr.bf16.mxu0 0
        %1812 = vmatpush1.bf16.msra.mxu0 0
        %1813 = vmatprep.mubr.bf16.mxu0 0
        %1814 = vmatmul.mubr.bf16.gmra.mrb[0].mxu0 %v1779
        %v1815 = vpop.f32.mrb[0].mxu0
        %v1816 = vadd.f32 0.0, %v1815
        %v1817 = vpop.f32.mrb[0].mxu0
        %v1818 = vadd.f32 0.0, %v1817
        %v1819 = vpop.f32.mrb[0].mxu0
        %v1820 = vadd.f32 0.0, %v1819
        %v1821 = vpop.f32.mrb[0].mxu0
        %v1822 = vadd.f32 0.0, %v1821
        %1823 = vdwg.mxu0
        %v1824 = vadd.f32 %v1092, %v1816
        %v1825 = vadd.f32 %v1093, %v1818
        %v1826 = vadd.f32 %v1096, %v1820
        %v1827 = vadd.f32 %v1097, %v1822
        %v1828 = vxor.u32 %v1824, 2147483648
        %v1829 = vxor.u32 %v1826, 2147483648
        %v1830 = vmul.f32 %v1828, 1.442695
        %v1831 = vpow.pop %v1830
        %v1832 = vmul.f32 %v1829, 1.442695
        %v1833 = vpow.pop %v1832
        %v1834 = vadd.f32 %v1831, 1.0
        %v1835 = vadd.f32 %v1833, 1.0
        %v1836 = vrcp.pop %v1834
        %v1837 = vmul.f32 1.0, %v1836
        %v1838 = vrcp.pop %v1835
        %v1839 = vmul.f32 1.0, %v1838
        %v1840 = vtanh.pop %v1825
        %v1841 = vtanh.pop %v1827
        %v1842 = vxor.u32 %v1825, 2147483648
        %v1843 = vxor.u32 %v1827, 2147483648
        %v1844 = vmul.f32 %v1842, 1.442695
        %v1845 = vpow.pop %v1844
        %v1846 = vmul.f32 %v1843, 1.442695
        %v1847 = vpow.pop %v1846
        %v1848 = vadd.f32 %v1845, 1.0
        %v1849 = vadd.f32 %v1847, 1.0
        %v1850 = vrcp.pop %v1848
        %v1851 = vmul.f32 1.0, %v1850
        %v1852 = vrcp.pop %v1849
        %v1853 = vmul.f32 1.0, %v1852
        %v1854 = vmul.f32 %v1837, %v1670
        %v1855 = vmul.f32 %v1839, %v1671
        %v1856 = vmul.f32 %v1837, %v1840
        %v1857 = vmul.f32 %v1839, %v1841
        %1860 = vrot.lane.b32.xlu0 %v1856, 64
        %v1861 = vpop.permute.xlu0 %1860
        %1862 = vrot.lane.b32.xlu0 %v1857, 64
        %v1863 = vpop.permute.xlu0 %1862
        %v1866 = vadd.f32 %v1854, %v1861
        %v1867 = vadd.f32 %v1855, %v1863
        %v1868 = vtanh.pop %v1866
        %v1869 = vtanh.pop %v1867
        %v1870 = vmul.f32 %v1851, %v1868
        %v1871 = vmul.f32 %v1853, %v1869
        %v1872 = vpack.c.bf16 %v1773, %v1772
        %1874 = vrot.lane.b32.xlu0 %v1872, 64
        %v1875 = vpop.permute.xlu0 %1874
        %v1877 = vsel %vm1156, %v1875, 0
        %1879 = vmatprep.subr.bf16.mxu0 %v1276
        %1880 = vmatpush1.bf16.msra.mxu0 %v1275
        %1881 = vmatprep.subr.bf16.mxu0 %v1278
        %1882 = vmatpush1.bf16.msra.mxu0 %v1277
        %1883 = vmatprep.subr.bf16.mxu0 %v1280
        %1884 = vmatpush1.bf16.msra.mxu0 %v1279
        %1885 = vmatprep.subr.bf16.mxu0 %v1282
        %1886 = vmatpush1.bf16.msra.mxu0 %v1281
        %1887 = vmatprep.subr.bf16.mxu0 0
        %1888 = vmatpush1.bf16.msra.mxu0 0
        %1889 = vmatprep.subr.bf16.mxu0 0
        %1890 = vmatpush1.bf16.msra.mxu0 0
        %1891 = vmatprep.subr.bf16.mxu0 0
        %1892 = vmatpush1.bf16.msra.mxu0 0
        %1893 = vmatprep.subr.bf16.mxu0 0
        %1894 = vmatpush1.bf16.msra.mxu0 0
        %1895 = vmatprep.subr.bf16.mxu0 0
        %1896 = vmatpush1.bf16.msra.mxu0 0
        %1897 = vmatprep.subr.bf16.mxu0 0
        %1898 = vmatpush1.bf16.msra.mxu0 0
        %1899 = vmatprep.subr.bf16.mxu0 0
        %1900 = vmatpush1.bf16.msra.mxu0 0
        %1901 = vmatprep.subr.bf16.mxu0 0
        %1902 = vmatpush1.bf16.msra.mxu0 0
        %1903 = vmatprep.subr.bf16.mxu0 0
        %1904 = vmatpush1.bf16.msra.mxu0 0
        %1905 = vmatprep.subr.bf16.mxu0 0
        %1906 = vmatpush1.bf16.msra.mxu0 0
        %1907 = vmatprep.subr.bf16.mxu0 0
        %1908 = vmatpush1.bf16.msra.mxu0 0
        %1909 = vmatprep.subr.bf16.mxu0 0
        %1910 = vmatpush1.bf16.msra.mxu0 0
        %1911 = vmatprep.mubr.bf16.mxu0 0
        %1912 = vmatmul.mubr.bf16.gmra.mrb[0].mxu0 %v1877
        %v1913 = vpop.f32.mrb[0].mxu0
        %v1914 = vadd.f32 0.0, %v1913
        %v1915 = vpop.f32.mrb[0].mxu0
        %v1916 = vadd.f32 0.0, %v1915
        %v1917 = vpop.f32.mrb[0].mxu0
        %v1918 = vadd.f32 0.0, %v1917
        %v1919 = vpop.f32.mrb[0].mxu0
        %v1920 = vadd.f32 0.0, %v1919
        %1921 = vdwg.mxu0
        %v1922 = vadd.f32 %v1070, %v1914
        %v1923 = vadd.f32 %v1071, %v1916
        %v1924 = vadd.f32 %v1074, %v1918
        %v1925 = vadd.f32 %v1075, %v1920
        %v1926 = vxor.u32 %v1922, 2147483648
        %v1927 = vxor.u32 %v1924, 2147483648
        %v1928 = vmul.f32 %v1926, 1.442695
        %v1929 = vpow.pop %v1928
        %v1930 = vmul.f32 %v1927, 1.442695
        %v1931 = vpow.pop %v1930
        %v1932 = vadd.f32 %v1929, 1.0
        %v1933 = vadd.f32 %v1931, 1.0
        %v1934 = vrcp.pop %v1932
        %v1935 = vmul.f32 1.0, %v1934
        %v1936 = vrcp.pop %v1933
        %v1937 = vmul.f32 1.0, %v1936
        %v1938 = vtanh.pop %v1923
        %v1939 = vtanh.pop %v1925
        %v1940 = vxor.u32 %v1923, 2147483648
        %v1941 = vxor.u32 %v1925, 2147483648
        %v1942 = vmul.f32 %v1940, 1.442695
        %v1943 = vpow.pop %v1942
        %v1944 = vmul.f32 %v1941, 1.442695
        %v1945 = vpow.pop %v1944
        %v1946 = vadd.f32 %v1943, 1.0
        %v1947 = vadd.f32 %v1945, 1.0
        %v1948 = vrcp.pop %v1946
        %v1949 = vmul.f32 1.0, %v1948
        %v1950 = vrcp.pop %v1947
        %v1951 = vmul.f32 1.0, %v1950
        %v1952 = vmul.f32 %v1935, %v1768
        %v1953 = vmul.f32 %v1937, %v1769
        %v1954 = vmul.f32 %v1935, %v1938
        %v1955 = vmul.f32 %v1937, %v1939
        %1958 = vrot.lane.b32.xlu0 %v1954, 64
        %v1959 = vpop.permute.xlu0 %1958
        %1960 = vrot.lane.b32.xlu0 %v1955, 64
        %v1961 = vpop.permute.xlu0 %1960
        %v1964 = vadd.f32 %v1952, %v1959
        %v1965 = vadd.f32 %v1953, %v1961
        %v1966 = vtanh.pop %v1964
        %v1967 = vtanh.pop %v1965
        %v1968 = vmul.f32 %v1949, %v1966
        %v1969 = vmul.f32 %v1951, %v1967
        %1972 = vrot.lane.b32.xlu0 %v1870, 64
        %v1973 = vpop.permute.xlu0 %1972
        %1974 = vrot.lane.b32.xlu0 %v1871, 64
        %v1975 = vpop.permute.xlu0 %1974
        %1978 = vst.msk [vmem:[%s436] sm:$0xff] %vm1156, %v1973
        %1979 = vst.msk [vmem:[%s436 + $0x8] sm:$0xff] %vm1156, %v1975
        %vm1980 = vcmask 1048064
        %1981 = vst.msk [vmem:[%s436] sm:$0xff] %vm1980, %v1968
        %1982 = vst.msk [vmem:[%s436 + $0x8] sm:$0xff] %vm1980, %v1969
        %s1983 = sand.u32 %s186, 1
        %s1984 = scalar_lea.sflag [#allocation5], %s1983
        %s1985 = sand.u32 %s186, 1
        %s1986 = smul.addr %s1985, 16
        %s1987 = scalar_lea.vmem [#allocation4], %s1986
        // Predicated region
        $region131: #{cell_embedder_forward.3} parent=121 // pred_check
          %p1988 = pneg %p196
        $region132: #{cell_embedder_forward.3} parent=121 // pred_check_branch
          %1990 = sbr.rel (%p1988) target = $region134
        $region133: #{cell_embedder_forward.3} parent=121 // pred_region
          %s1991 = smul.u32 2, %s21
          %s1993 = ssub.s32 256, 256
          %1994 = vsyncadd %s1984, %s1993
          %s1995 = smul.addr %s1991, 128
          %s1996 = scalar_lea.hbm %s7, %s1995
          %s1997 = sshll.u32 %s1987, 4
          %s1998 = int_to_ptr.vmem [resolvable:$true] %s1997
          %2003 = dma.vmem_to_hbm [thread:$0]  %s1998, 256, %s1996, %s1984, 128, 128, 8
        $region134: #{cell_embedder_forward.3} parent=121 // pred_fallthru
          _
      $region122: #{cell_embedder_forward.3} parent=5 // pred_fallthru
        _
      %p2004 = scmp.le.s32.totalorder 2, %s16
      // Predicated region
      $region135: #{cell_embedder_forward.3} parent=5 // pred_check
        %p2005 = pneg %p2004
      $region136: #{cell_embedder_forward.3} parent=5 // pred_check_branch
        %2007 = sbr.rel (%p2005) target = $region138
      $region137: #{cell_embedder_forward.3} parent=5 // pred_region
        %s2008 = ssub.s32 %s16, 2
        // Predicated region
        $region139: #{cell_embedder_forward.3} parent=137 // pred_check
          %p2009 = pneg %p202
        $region140: #{cell_embedder_forward.3} parent=137 // pred_check_branch
          %2011 = sbr.rel (%p2009) target = $region142
        $region141: #{cell_embedder_forward.3} parent=137 // pred_region
          %s2012 = sand.u32 %s187, 1
          %s2013 = scalar_lea.sflag [#allocation5], %s2012
          %s2014 = sand.u32 %s187, 1
          %s2015 = smul.addr %s2014, 16
          %s2016 = scalar_lea.vmem [#allocation4], %s2015
          %2017 = dma.done %s2013, 256
        $region142: #{cell_embedder_forward.3} parent=137 // pred_fallthru
          _
      $region138: #{cell_embedder_forward.3} parent=5 // pred_fallthru
        _
    $region6: #{cell_embedder_forward.3} parent=1 // loop_footer
      %s20 = sadd.s32 1, %s16
    $region7: #{cell_embedder_forward.3} parent=1 // loop_footer_branch
      %15 = sbr.rel target = $region3
    $region8: #{cell_embedder_forward.3} parent=1 // loop_exit
      _
    %2018 = vsyncpa [#allocation5], 1
    %s2019 = scalar_lea.sflag [#allocation5], 1
    %2020 = vsyncpa %s2019, 1

</llo_original>
